<compile_context>
chip_gen: v6e
topology: v6e:2x2x1
jax: 0.10.0
libtpu: 0.0.40
codegen_flags: <defaults>
</compile_context>

<pallas_src>
from functools import partial

import jax
import jax.numpy as jnp
from jax.experimental import pallas as pl
from jax.experimental.pallas import tpu as pltpu

_CP = 128   # hidden channel counts zero-padded to one full lane tile
_PAD = 8    # halo padding along T; 8 keeps all pad concatenations sublane-aligned


# ------------------------- fused autoencoder kernel -------------------------

def _autoencoder_kernel(p0_ref, w0_ref, b0_ref, w1_ref, b1_ref,
                        w2_ref, b2_ref, w3_ref, b3_ref, op_ref, *, F, T):
    FT = F * T

    def pad_same(h):
        # (F, T, CP) -> (F+2, T+2*_PAD, CP): zero halo built in VMEM
        # (no HBM round trip, all segments tile-aligned).
        zt = jnp.zeros((F, _PAD, _CP), jnp.float32)
        h = jnp.concatenate([zt, h, zt], axis=1)
        zf = jnp.zeros((1, T + 2 * _PAD, _CP), jnp.float32)
        return jnp.concatenate([zf, h, zf], axis=0)

    def im2col(h):
        # (FT, CP) -> (FT, 9*CP): one big-K MXU contraction per conv layer.
        hp = pad_same(h.reshape(F, T, _CP))
        cols = [hp[dh:dh + F, _PAD - 1 + dw:_PAD - 1 + dw + T, :].reshape(FT, _CP)
                for dh in range(3) for dw in range(3)]
        return jnp.concatenate(cols, axis=-1)

    def dense(patches, w_ref, b_ref, relu):
        out = jnp.dot(patches.astype(jnp.bfloat16), w_ref[...],
                      preferred_element_type=jnp.float32) + b_ref[...]
        return jnp.maximum(out, 0.0) if relu else out

    h = dense(p0_ref[0], w0_ref, b0_ref, True)            # (FT, 128) conv0 (cin=1)
    h = dense(im2col(h), w1_ref, b1_ref, True)            # (FT, 128) conv1
    h = dense(im2col(h), w2_ref, b2_ref, True)            # (FT, 128) conv2
    op_ref[0] = dense(im2col(h), w3_ref, b3_ref, False)   # (FT, 1)   conv3 (cout=1)


def autoencoder_fwd(p0, w0, b0, w1, b1, w2, b2, w3, b3, *, F, T):
    B = p0.shape[0]
    FT = F * T
    kern = partial(_autoencoder_kernel, F=F, T=T)

    def _const(a):
        return pl.BlockSpec(a.shape, lambda i: (0, 0))

    return pl.pallas_call(
        kern,
        out_shape=jax.ShapeDtypeStruct((B, FT, 1), jnp.float32),
        grid=(B,),
        in_specs=[
            pl.BlockSpec((1, FT, 9), lambda i: (i, 0, 0)),
            _const(w0), _const(b0), _const(w1), _const(b1),
            _const(w2), _const(b2), _const(w3), _const(b3),
        ],
        out_specs=pl.BlockSpec((1, FT, 1), lambda i: (i, 0, 0)),
        compiler_params=pltpu.CompilerParams(dimension_semantics=("parallel",)),
    )(p0, w0, b0, w1, b1, w2, b2, w3, b3)


# ------------------------------- head kernel --------------------------------
# mask-mul + stacked linear + log_softmax / softmax, per batch item.

def _head_kernel(op_ref, y_ref, m_ref, flw_ref, flb_ref,
                 mop_ref, my_ref, dop_ref, dy_ref, *, T):
    m = m_ref[0]                                      # (T, F)
    mop = op_ref[0] * m                               # masked_op (time-major)
    my = y_ref[0] * m                                 # masked_y

    # one MXU matmul for both linear evaluations
    stacked = jnp.concatenate([mop, my], axis=0).astype(jnp.bfloat16)   # (2T, F)
    logits = jnp.dot(stacked, flw_ref[...],
                     preferred_element_type=jnp.float32) + flb_ref[...]  # (2T, C)
    lo = logits[:T]
    ly = logits[T:]

    # dec_op = log_softmax(first_layer(masked_op))
    zo = lo - jnp.max(lo, axis=-1, keepdims=True)
    dec_op = zo - jnp.log(jnp.sum(jnp.exp(zo), axis=-1, keepdims=True))

    # dec_y = exp(log_softmax(first_layer(masked_y))) == softmax, done directly
    zy = ly - jnp.max(ly, axis=-1, keepdims=True)
    ey = jnp.exp(zy)
    dec_y = ey * pl.reciprocal(jnp.sum(ey, axis=-1, keepdims=True), approx=True)

    mop_ref[0] = mop
    my_ref[0] = my
    dop_ref[0] = dec_op
    dy_ref[0] = dec_y


def head_fwd(op_t, y_t, m_t, flw, flb):
    B, T, F = op_t.shape
    C = flw.shape[1]
    kern = partial(_head_kernel, T=T)
    img = pl.BlockSpec((1, T, F), lambda i: (i, 0, 0))
    cls = pl.BlockSpec((1, T, C), lambda i: (i, 0, 0))
    return pl.pallas_call(
        kern,
        out_shape=(
            jax.ShapeDtypeStruct((B, T, F), jnp.float32),   # masked_op
            jax.ShapeDtypeStruct((B, T, F), jnp.float32),   # masked_y
            jax.ShapeDtypeStruct((B, T, C), jnp.float32),   # dec_op (log-probs)
            jax.ShapeDtypeStruct((B, T, C), jnp.float32),   # dec_y  (probs)
        ),
        grid=(B,),
        in_specs=[img, img, img,
                  pl.BlockSpec((F, C), lambda i: (0, 0)),
                  pl.BlockSpec((1, C), lambda i: (0, 0))],
        out_specs=(img, img, cls, cls),
        compiler_params=pltpu.CompilerParams(dimension_semantics=("parallel",)),
    )(op_t, y_t, m_t, flw, flb)


# ------------------------------ params & glue --------------------------------

def _prep_conv(w, b, cin_pad, cout_pad):
    """(cout, cin, 3, 3) OIHW -> im2col matrix (9*cin_pad, cout_pad) bf16,
    bias -> (1, cout_pad) f32, zero padded so padded lanes stay exactly zero."""
    cout, cin = w.shape[0], w.shape[1]
    wt = jnp.transpose(w, (2, 3, 1, 0))                               # (3,3,cin,cout)
    wt = jnp.pad(wt, ((0, 0), (0, 0), (0, cin_pad - cin), (0, cout_pad - cout)))
    w_mat = wt.reshape(9 * cin_pad, cout_pad).astype(jnp.bfloat16)
    b_row = jnp.pad(b, (0, cout_pad - cout)).reshape(1, cout_pad).astype(jnp.float32)
    return w_mat, b_row


def init_params(key, features, num_classes, widths=(1, 32, 128, 32, 1)):
    convs = []
    keys = jax.random.split(key, len(widths))
    for i in range(len(widths) - 1):
        cin, cout = widths[i], widths[i + 1]
        kw, kb = jax.random.split(keys[i])
        w = jax.random.normal(kw, (cout, cin, 3, 3), jnp.float32) / jnp.sqrt(9.0 * cin)
        b = 0.01 * jax.random.normal(kb, (cout,), jnp.float32)
        convs.append((w, b))
    kw, kb = jax.random.split(keys[-1])
    fl_w = jax.random.normal(kw, (features, num_classes), jnp.float32) / jnp.sqrt(features)
    fl_b = 0.01 * jax.random.normal(kb, (num_classes,), jnp.float32)
    return convs, fl_w, fl_b


def model_forward(params, X, y, mask):
    """X, y, mask: (B, 1, F, T) float32 (PyTorch NCHW convention)."""
    convs, fl_w, fl_b = params
    (w0, b0), (w1, b1), (w2, b2), (w3, b3) = convs
    B, _, F, T = X.shape

    x2, y2, m2 = X[:, 0], y[:, 0], mask[:, 0]                 # (B, F, T)

    # Layer-0 im2col of the tiny raw input is done once in XLA (18 KB); it keeps
    # the kernel free of lane-layout-changing reshapes for the cin=1 layer.
    xpad = jnp.pad(x2, ((0, 0), (1, 1), (1, 1)))
    p0 = jnp.stack([xpad[:, dh:dh + F, dw:dw + T].reshape(B, F * T)
                    for dh in range(3) for dw in range(3)], axis=-1)   # (B, F*T, 9)

    w0m, b0r = _prep_conv(w0, b0, 1, _CP)
    w1m, b1r = _prep_conv(w1, b1, _CP, _CP)
    w2m, b2r = _prep_conv(w2, b2, _CP, _CP)
    w3m, b3r = _prep_conv(w3, b3, _CP, 1)

    op_flat = autoencoder_fwd(p0, w0m, b0r, w1m, b1r, w2m, b2r, w3m, b3r,
                              F=F, T=T)                        # (B, F*T, 1)

    # time-major views (== .transpose(3, 2).squeeze() of the PyTorch forward)
    op_t = jnp.transpose(op_flat.reshape(B, F, T), (0, 2, 1))  # (B, T, F)
    y_t = jnp.transpose(y2, (0, 2, 1))
    m_t = jnp.transpose(m2, (0, 2, 1))

    flw = fl_w.astype(jnp.bfloat16)
    flb = fl_b.reshape(1, -1).astype(jnp.float32)

    masked_op, masked_y, dec_op, dec_y = head_fwd(op_t, y_t, m_t, flw, flb)

    Bo, To, C = dec_op.shape
    return (dec_op.reshape(Bo * To, C), dec_y.reshape(Bo * To, C),
            masked_op, masked_y)


# ----------------------------------- main ------------------------------------

if __name__ == "__main__":
    B, F, T, C = 2, 16, 16, 32   # batch, features, seq_length, num_classes (small)
    key = jax.random.PRNGKey(0)
    kx, ky, km, kp = jax.random.split(key, 4)

    X = jax.random.normal(kx, (B, 1, F, T), jnp.float32)
    y = jax.random.normal(ky, (B, 1, F, T), jnp.float32)
    mask = (jax.random.uniform(km, (B, 1, F, T)) > 0.2).astype(jnp.float32)

    params = init_params(kp, features=F, num_classes=C)

    dec_op, dec_y, masked_op, masked_y = jax.jit(model_forward)(params, X, y, mask)
    jax.block_until_ready((dec_op, dec_y, masked_op, masked_y))

    assert dec_op.shape == (B * T, C)
    assert dec_y.shape == (B * T, C)
    assert masked_op.shape == (B, T, F)
    assert masked_y.shape == (B, T, F)
    assert bool(jnp.all(jnp.isfinite(dec_op)))
    assert bool(jnp.all(jnp.isfinite(dec_y)))

    print("KERNEL_OK")
</pallas_src>

<mosaic_0001>
module attributes {stable_mosaic.version = 11 : i64} {
  func.func @_autoencoder_kernel(%arg0: i32, %arg1: memref<1x256x9xf32, #tpu.memory_space<vmem>>, %arg2: memref<9x128xbf16, #tpu.memory_space<vmem>>, %arg3: memref<1x128xf32, #tpu.memory_space<vmem>>, %arg4: memref<1152x128xbf16, #tpu.memory_space<vmem>>, %arg5: memref<1x128xf32, #tpu.memory_space<vmem>>, %arg6: memref<1152x128xbf16, #tpu.memory_space<vmem>>, %arg7: memref<1x128xf32, #tpu.memory_space<vmem>>, %arg8: memref<1152x1xbf16, #tpu.memory_space<vmem>>, %arg9: memref<1x1xf32, #tpu.memory_space<vmem>>, %arg10: memref<1x256x1xf32, #tpu.memory_space<vmem>>) attributes {dimension_semantics = [#tpu.dimension_semantics<parallel>], iteration_bounds = array<i64: 2>, scalar_prefetch = 0 : i64, scratch_operands = 0 : i64, tpu.core_type = #tpu.core_type<tc>, window_params = [{transform_indices = @transform_0, window_bounds = array<i64: 1, 256, 9>}, {pipeline_mode = #tpu.pipeline_mode<synchronous>, transform_indices = @transform_1, window_bounds = array<i64: 9, 128>}, {pipeline_mode = #tpu.pipeline_mode<synchronous>, transform_indices = @transform_2, window_bounds = array<i64: 1, 128>}, {pipeline_mode = #tpu.pipeline_mode<synchronous>, transform_indices = @transform_3, window_bounds = array<i64: 1152, 128>}, {pipeline_mode = #tpu.pipeline_mode<synchronous>, transform_indices = @transform_4, window_bounds = array<i64: 1, 128>}, {pipeline_mode = #tpu.pipeline_mode<synchronous>, transform_indices = @transform_5, window_bounds = array<i64: 1152, 128>}, {pipeline_mode = #tpu.pipeline_mode<synchronous>, transform_indices = @transform_6, window_bounds = array<i64: 1, 128>}, {pipeline_mode = #tpu.pipeline_mode<synchronous>, transform_indices = @transform_7, window_bounds = array<i64: 1152, 1>}, {pipeline_mode = #tpu.pipeline_mode<synchronous>, transform_indices = @transform_8, window_bounds = array<i64: 1, 1>}, {transform_indices = @transform_9, window_bounds = array<i64: 1, 256, 1>}]} {
    %c0 = arith.constant 0 : index
    %c0_0 = arith.constant 0 : index
    %c0_1 = arith.constant 0 : index
    %0 = vector.load %arg1[%c0, %c0_0, %c0_1] : memref<1x256x9xf32, #tpu.memory_space<vmem>>, vector<1x256x9xf32>
    %1 = vector.shape_cast %0 : vector<1x256x9xf32> to vector<256x9xf32>
    %2 = arith.truncf %1 : vector<256x9xf32> to vector<256x9xbf16>
    %c0_2 = arith.constant 0 : index
    %c0_3 = arith.constant 0 : index
    %3 = vector.load %arg2[%c0_2, %c0_3] : memref<9x128xbf16, #tpu.memory_space<vmem>>, vector<9x128xbf16>
    %cst = arith.constant dense<0.000000e+00> : vector<256x128xf32>
    %4 = tpu.matmul %2, %3, %cst {dimension_numbers = #tpu.dot_dimension_numbers<[1], [0], [0], [1], [0, 0, 1, 1], [], []>} : vector<256x9xbf16>, vector<9x128xbf16>, vector<256x128xf32> -> vector<256x128xf32>
    %c0_4 = arith.constant 0 : index
    %c0_5 = arith.constant 0 : index
    %5 = vector.load %arg3[%c0_4, %c0_5] : memref<1x128xf32, #tpu.memory_space<vmem>>, vector<1x128xf32>
    %6 = vector.broadcast %5 : vector<1x128xf32> to vector<256x128xf32>
    %7 = arith.addf %4, %6 : vector<256x128xf32>
    %cst_6 = arith.constant 0.000000e+00 : f32
    %8 = vector.broadcast %cst_6 : f32 to vector<256x128xf32>
    %9 = arith.maximumf %7, %8 : vector<256x128xf32>
    %10 = vector.shape_cast %9 : vector<256x128xf32> to vector<16x16x128xf32>
    %cst_7 = arith.constant 0.000000e+00 : f32
    %11 = vector.broadcast %cst_7 : f32 to vector<16x8x128xf32>
    %12 = tpu.concatenate %11, %10, %11 in 1 : vector<16x8x128xf32>, vector<16x16x128xf32>, vector<16x8x128xf32> -> vector<16x32x128xf32>
    %cst_8 = arith.constant 0.000000e+00 : f32
    %13 = vector.broadcast %cst_8 : f32 to vector<1x32x128xf32>
    %14 = tpu.concatenate %13, %12, %13 in 0 : vector<1x32x128xf32>, vector<16x32x128xf32>, vector<1x32x128xf32> -> vector<18x32x128xf32>
    %15 = vector.extract_strided_slice %14 {offsets = [0, 7, 0], sizes = [16, 16, 128], strides = [1, 1, 1]} : vector<18x32x128xf32> to vector<16x16x128xf32>
    %16 = vector.shape_cast %15 : vector<16x16x128xf32> to vector<256x128xf32>
    %17 = vector.extract_strided_slice %14 {offsets = [0, 8, 0], sizes = [16, 16, 128], strides = [1, 1, 1]} : vector<18x32x128xf32> to vector<16x16x128xf32>
    %18 = vector.shape_cast %17 : vector<16x16x128xf32> to vector<256x128xf32>
    %19 = vector.extract_strided_slice %14 {offsets = [0, 9, 0], sizes = [16, 16, 128], strides = [1, 1, 1]} : vector<18x32x128xf32> to vector<16x16x128xf32>
    %20 = vector.shape_cast %19 : vector<16x16x128xf32> to vector<256x128xf32>
    %21 = vector.extract_strided_slice %14 {offsets = [1, 7, 0], sizes = [16, 16, 128], strides = [1, 1, 1]} : vector<18x32x128xf32> to vector<16x16x128xf32>
    %22 = vector.shape_cast %21 : vector<16x16x128xf32> to vector<256x128xf32>
    %23 = vector.extract_strided_slice %14 {offsets = [1, 8, 0], sizes = [16, 16, 128], strides = [1, 1, 1]} : vector<18x32x128xf32> to vector<16x16x128xf32>
    %24 = vector.shape_cast %23 : vector<16x16x128xf32> to vector<256x128xf32>
    %25 = vector.extract_strided_slice %14 {offsets = [1, 9, 0], sizes = [16, 16, 128], strides = [1, 1, 1]} : vector<18x32x128xf32> to vector<16x16x128xf32>
    %26 = vector.shape_cast %25 : vector<16x16x128xf32> to vector<256x128xf32>
    %27 = vector.extract_strided_slice %14 {offsets = [2, 7, 0], sizes = [16, 16, 128], strides = [1, 1, 1]} : vector<18x32x128xf32> to vector<16x16x128xf32>
    %28 = vector.shape_cast %27 : vector<16x16x128xf32> to vector<256x128xf32>
    %29 = vector.extract_strided_slice %14 {offsets = [2, 8, 0], sizes = [16, 16, 128], strides = [1, 1, 1]} : vector<18x32x128xf32> to vector<16x16x128xf32>
    %30 = vector.shape_cast %29 : vector<16x16x128xf32> to vector<256x128xf32>
    %31 = vector.extract_strided_slice %14 {offsets = [2, 9, 0], sizes = [16, 16, 128], strides = [1, 1, 1]} : vector<18x32x128xf32> to vector<16x16x128xf32>
    %32 = vector.shape_cast %31 : vector<16x16x128xf32> to vector<256x128xf32>
    %33 = tpu.concatenate %16, %18, %20, %22, %24, %26, %28, %30, %32 in 1 : vector<256x128xf32>, vector<256x128xf32>, vector<256x128xf32>, vector<256x128xf32>, vector<256x128xf32>, vector<256x128xf32>, vector<256x128xf32>, vector<256x128xf32>, vector<256x128xf32> -> vector<256x1152xf32>
    %34 = arith.truncf %33 : vector<256x1152xf32> to vector<256x1152xbf16>
    %c0_9 = arith.constant 0 : index
    %c0_10 = arith.constant 0 : index
    %35 = vector.load %arg4[%c0_9, %c0_10] : memref<1152x128xbf16, #tpu.memory_space<vmem>>, vector<1152x128xbf16>
    %cst_11 = arith.constant dense<0.000000e+00> : vector<256x128xf32>
    %36 = tpu.matmul %34, %35, %cst_11 {dimension_numbers = #tpu.dot_dimension_numbers<[1], [0], [0], [1], [0, 0, 1, 1], [], []>} : vector<256x1152xbf16>, vector<1152x128xbf16>, vector<256x128xf32> -> vector<256x128xf32>
    %c0_12 = arith.constant 0 : index
    %c0_13 = arith.constant 0 : index
    %37 = vector.load %arg5[%c0_12, %c0_13] : memref<1x128xf32, #tpu.memory_space<vmem>>, vector<1x128xf32>
    %38 = vector.broadcast %37 : vector<1x128xf32> to vector<256x128xf32>
    %39 = arith.addf %36, %38 : vector<256x128xf32>
    %cst_14 = arith.constant 0.000000e+00 : f32
    %40 = vector.broadcast %cst_14 : f32 to vector<256x128xf32>
    %41 = arith.maximumf %39, %40 : vector<256x128xf32>
    %42 = vector.shape_cast %41 : vector<256x128xf32> to vector<16x16x128xf32>
    %cst_15 = arith.constant 0.000000e+00 : f32
    %43 = vector.broadcast %cst_15 : f32 to vector<16x8x128xf32>
    %44 = tpu.concatenate %43, %42, %43 in 1 : vector<16x8x128xf32>, vector<16x16x128xf32>, vector<16x8x128xf32> -> vector<16x32x128xf32>
    %cst_16 = arith.constant 0.000000e+00 : f32
    %45 = vector.broadcast %cst_16 : f32 to vector<1x32x128xf32>
    %46 = tpu.concatenate %45, %44, %45 in 0 : vector<1x32x128xf32>, vector<16x32x128xf32>, vector<1x32x128xf32> -> vector<18x32x128xf32>
    %47 = vector.extract_strided_slice %46 {offsets = [0, 7, 0], sizes = [16, 16, 128], strides = [1, 1, 1]} : vector<18x32x128xf32> to vector<16x16x128xf32>
    %48 = vector.shape_cast %47 : vector<16x16x128xf32> to vector<256x128xf32>
    %49 = vector.extract_strided_slice %46 {offsets = [0, 8, 0], sizes = [16, 16, 128], strides = [1, 1, 1]} : vector<18x32x128xf32> to vector<16x16x128xf32>
    %50 = vector.shape_cast %49 : vector<16x16x128xf32> to vector<256x128xf32>
    %51 = vector.extract_strided_slice %46 {offsets = [0, 9, 0], sizes = [16, 16, 128], strides = [1, 1, 1]} : vector<18x32x128xf32> to vector<16x16x128xf32>
    %52 = vector.shape_cast %51 : vector<16x16x128xf32> to vector<256x128xf32>
    %53 = vector.extract_strided_slice %46 {offsets = [1, 7, 0], sizes = [16, 16, 128], strides = [1, 1, 1]} : vector<18x32x128xf32> to vector<16x16x128xf32>
    %54 = vector.shape_cast %53 : vector<16x16x128xf32> to vector<256x128xf32>
    %55 = vector.extract_strided_slice %46 {offsets = [1, 8, 0], sizes = [16, 16, 128], strides = [1, 1, 1]} : vector<18x32x128xf32> to vector<16x16x128xf32>
    %56 = vector.shape_cast %55 : vector<16x16x128xf32> to vector<256x128xf32>
    %57 = vector.extract_strided_slice %46 {offsets = [1, 9, 0], sizes = [16, 16, 128], strides = [1, 1, 1]} : vector<18x32x128xf32> to vector<16x16x128xf32>
    %58 = vector.shape_cast %57 : vector<16x16x128xf32> to vector<256x128xf32>
    %59 = vector.extract_strided_slice %46 {offsets = [2, 7, 0], sizes = [16, 16, 128], strides = [1, 1, 1]} : vector<18x32x128xf32> to vector<16x16x128xf32>
    %60 = vector.shape_cast %59 : vector<16x16x128xf32> to vector<256x128xf32>
    %61 = vector.extract_strided_slice %46 {offsets = [2, 8, 0], sizes = [16, 16, 128], strides = [1, 1, 1]} : vector<18x32x128xf32> to vector<16x16x128xf32>
    %62 = vector.shape_cast %61 : vector<16x16x128xf32> to vector<256x128xf32>
    %63 = vector.extract_strided_slice %46 {offsets = [2, 9, 0], sizes = [16, 16, 128], strides = [1, 1, 1]} : vector<18x32x128xf32> to vector<16x16x128xf32>
    %64 = vector.shape_cast %63 : vector<16x16x128xf32> to vector<256x128xf32>
    %65 = tpu.concatenate %48, %50, %52, %54, %56, %58, %60, %62, %64 in 1 : vector<256x128xf32>, vector<256x128xf32>, vector<256x128xf32>, vector<256x128xf32>, vector<256x128xf32>, vector<256x128xf32>, vector<256x128xf32>, vector<256x128xf32>, vector<256x128xf32> -> vector<256x1152xf32>
    %66 = arith.truncf %65 : vector<256x1152xf32> to vector<256x1152xbf16>
    %c0_17 = arith.constant 0 : index
    %c0_18 = arith.constant 0 : index
    %67 = vector.load %arg6[%c0_17, %c0_18] : memref<1152x128xbf16, #tpu.memory_space<vmem>>, vector<1152x128xbf16>
    %cst_19 = arith.constant dense<0.000000e+00> : vector<256x128xf32>
    %68 = tpu.matmul %66, %67, %cst_19 {dimension_numbers = #tpu.dot_dimension_numbers<[1], [0], [0], [1], [0, 0, 1, 1], [], []>} : vector<256x1152xbf16>, vector<1152x128xbf16>, vector<256x128xf32> -> vector<256x128xf32>
    %c0_20 = arith.constant 0 : index
    %c0_21 = arith.constant 0 : index
    %69 = vector.load %arg7[%c0_20, %c0_21] : memref<1x128xf32, #tpu.memory_space<vmem>>, vector<1x128xf32>
    %70 = vector.broadcast %69 : vector<1x128xf32> to vector<256x128xf32>
    %71 = arith.addf %68, %70 : vector<256x128xf32>
    %cst_22 = arith.constant 0.000000e+00 : f32
    %72 = vector.broadcast %cst_22 : f32 to vector<256x128xf32>
    %73 = arith.maximumf %71, %72 : vector<256x128xf32>
    %74 = vector.shape_cast %73 : vector<256x128xf32> to vector<16x16x128xf32>
    %cst_23 = arith.constant 0.000000e+00 : f32
    %75 = vector.broadcast %cst_23 : f32 to vector<16x8x128xf32>
    %76 = tpu.concatenate %75, %74, %75 in 1 : vector<16x8x128xf32>, vector<16x16x128xf32>, vector<16x8x128xf32> -> vector<16x32x128xf32>
    %cst_24 = arith.constant 0.000000e+00 : f32
    %77 = vector.broadcast %cst_24 : f32 to vector<1x32x128xf32>
    %78 = tpu.concatenate %77, %76, %77 in 0 : vector<1x32x128xf32>, vector<16x32x128xf32>, vector<1x32x128xf32> -> vector<18x32x128xf32>
    %79 = vector.extract_strided_slice %78 {offsets = [0, 7, 0], sizes = [16, 16, 128], strides = [1, 1, 1]} : vector<18x32x128xf32> to vector<16x16x128xf32>
    %80 = vector.shape_cast %79 : vector<16x16x128xf32> to vector<256x128xf32>
    %81 = vector.extract_strided_slice %78 {offsets = [0, 8, 0], sizes = [16, 16, 128], strides = [1, 1, 1]} : vector<18x32x128xf32> to vector<16x16x128xf32>
    %82 = vector.shape_cast %81 : vector<16x16x128xf32> to vector<256x128xf32>
    %83 = vector.extract_strided_slice %78 {offsets = [0, 9, 0], sizes = [16, 16, 128], strides = [1, 1, 1]} : vector<18x32x128xf32> to vector<16x16x128xf32>
    %84 = vector.shape_cast %83 : vector<16x16x128xf32> to vector<256x128xf32>
    %85 = vector.extract_strided_slice %78 {offsets = [1, 7, 0], sizes = [16, 16, 128], strides = [1, 1, 1]} : vector<18x32x128xf32> to vector<16x16x128xf32>
    %86 = vector.shape_cast %85 : vector<16x16x128xf32> to vector<256x128xf32>
    %87 = vector.extract_strided_slice %78 {offsets = [1, 8, 0], sizes = [16, 16, 128], strides = [1, 1, 1]} : vector<18x32x128xf32> to vector<16x16x128xf32>
    %88 = vector.shape_cast %87 : vector<16x16x128xf32> to vector<256x128xf32>
    %89 = vector.extract_strided_slice %78 {offsets = [1, 9, 0], sizes = [16, 16, 128], strides = [1, 1, 1]} : vector<18x32x128xf32> to vector<16x16x128xf32>
    %90 = vector.shape_cast %89 : vector<16x16x128xf32> to vector<256x128xf32>
    %91 = vector.extract_strided_slice %78 {offsets = [2, 7, 0], sizes = [16, 16, 128], strides = [1, 1, 1]} : vector<18x32x128xf32> to vector<16x16x128xf32>
    %92 = vector.shape_cast %91 : vector<16x16x128xf32> to vector<256x128xf32>
    %93 = vector.extract_strided_slice %78 {offsets = [2, 8, 0], sizes = [16, 16, 128], strides = [1, 1, 1]} : vector<18x32x128xf32> to vector<16x16x128xf32>
    %94 = vector.shape_cast %93 : vector<16x16x128xf32> to vector<256x128xf32>
    %95 = vector.extract_strided_slice %78 {offsets = [2, 9, 0], sizes = [16, 16, 128], strides = [1, 1, 1]} : vector<18x32x128xf32> to vector<16x16x128xf32>
    %96 = vector.shape_cast %95 : vector<16x16x128xf32> to vector<256x128xf32>
    %97 = tpu.concatenate %80, %82, %84, %86, %88, %90, %92, %94, %96 in 1 : vector<256x128xf32>, vector<256x128xf32>, vector<256x128xf32>, vector<256x128xf32>, vector<256x128xf32>, vector<256x128xf32>, vector<256x128xf32>, vector<256x128xf32>, vector<256x128xf32> -> vector<256x1152xf32>
    %98 = arith.truncf %97 : vector<256x1152xf32> to vector<256x1152xbf16>
    %c0_25 = arith.constant 0 : index
    %c0_26 = arith.constant 0 : index
    %99 = vector.load %arg8[%c0_25, %c0_26] : memref<1152x1xbf16, #tpu.memory_space<vmem>>, vector<1152x1xbf16>
    %cst_27 = arith.constant dense<0.000000e+00> : vector<256x1xf32>
    %100 = tpu.matmul %98, %99, %cst_27 {dimension_numbers = #tpu.dot_dimension_numbers<[1], [0], [0], [1], [0, 0, 1, 1], [], []>} : vector<256x1152xbf16>, vector<1152x1xbf16>, vector<256x1xf32> -> vector<256x1xf32>
    %c0_28 = arith.constant 0 : index
    %c0_29 = arith.constant 0 : index
    %101 = vector.load %arg9[%c0_28, %c0_29] : memref<1x1xf32, #tpu.memory_space<vmem>>, vector<1x1xf32>
    %102 = vector.broadcast %101 : vector<1x1xf32> to vector<256x1xf32>
    %103 = arith.addf %100, %102 : vector<256x1xf32>
    %c0_30 = arith.constant 0 : index
    %c0_31 = arith.constant 0 : index
    %c0_32 = arith.constant 0 : index
    %104 = vector.load %arg10[%c0_30, %c0_31, %c0_32] : memref<1x256x1xf32, #tpu.memory_space<vmem>>, vector<1x256x1xf32>
    %105 = vector.shape_cast %104 : vector<1x256x1xf32> to vector<256x1xf32>
    %106 = vector.shape_cast %103 : vector<256x1xf32> to vector<1x256x1xf32>
    tpu.vector_store %arg10[%c0_30, %c0_31, %c0_32], %106 {strides = array<i32>} : memref<1x256x1xf32, #tpu.memory_space<vmem>>, vector<1x256x1xf32>,
    return
  }
  func.func @transform_0(%arg0: i32) -> (i32, i32, i32) {
    %c0_i32 = arith.constant 0 : i32
    %c0_i32_0 = arith.constant 0 : i32
    %c0_i32_1 = arith.constant 0 : i32
    return %arg0, %c0_i32, %c0_i32_0 : i32, i32, i32
  }
  func.func @transform_1(%arg0: i32) -> (i32, i32) {
    %c0_i32 = arith.constant 0 : i32
    %c0_i32_0 = arith.constant 0 : i32
    %c0_i32_1 = arith.constant 0 : i32
    return %c0_i32, %c0_i32_0 : i32, i32
  }
  func.func @transform_2(%arg0: i32) -> (i32, i32) {
    %c0_i32 = arith.constant 0 : i32
    %c0_i32_0 = arith.constant 0 : i32
    %c0_i32_1 = arith.constant 0 : i32
    return %c0_i32, %c0_i32_0 : i32, i32
  }
  func.func @transform_3(%arg0: i32) -> (i32, i32) {
    %c0_i32 = arith.constant 0 : i32
    %c0_i32_0 = arith.constant 0 : i32
    %c0_i32_1 = arith.constant 0 : i32
    return %c0_i32, %c0_i32_0 : i32, i32
  }
  func.func @transform_4(%arg0: i32) -> (i32, i32) {
    %c0_i32 = arith.constant 0 : i32
    %c0_i32_0 = arith.constant 0 : i32
    %c0_i32_1 = arith.constant 0 : i32
    return %c0_i32, %c0_i32_0 : i32, i32
  }
  func.func @transform_5(%arg0: i32) -> (i32, i32) {
    %c0_i32 = arith.constant 0 : i32
    %c0_i32_0 = arith.constant 0 : i32
    %c0_i32_1 = arith.constant 0 : i32
    return %c0_i32, %c0_i32_0 : i32, i32
  }
  func.func @transform_6(%arg0: i32) -> (i32, i32) {
    %c0_i32 = arith.constant 0 : i32
    %c0_i32_0 = arith.constant 0 : i32
    %c0_i32_1 = arith.constant 0 : i32
    return %c0_i32, %c0_i32_0 : i32, i32
  }
  func.func @transform_7(%arg0: i32) -> (i32, i32) {
    %c0_i32 = arith.constant 0 : i32
    %c0_i32_0 = arith.constant 0 : i32
    %c0_i32_1 = arith.constant 0 : i32
    return %c0_i32, %c0_i32_0 : i32, i32
  }
  func.func @transform_8(%arg0: i32) -> (i32, i32) {
    %c0_i32 = arith.constant 0 : i32
    %c0_i32_0 = arith.constant 0 : i32
    %c0_i32_1 = arith.constant 0 : i32
    return %c0_i32, %c0_i32_0 : i32, i32
  }
  func.func @transform_9(%arg0: i32) -> (i32, i32, i32) {
    %c0_i32 = arith.constant 0 : i32
    %c0_i32_0 = arith.constant 0 : i32
    %c0_i32_1 = arith.constant 0 : i32
    return %arg0, %c0_i32, %c0_i32_0 : i32, i32, i32
  }
}

module attributes {stable_mosaic.version = 11 : i64} {
  func.func @_head_kernel(%arg0: i32, %arg1: memref<1x16x16xf32, #tpu.memory_space<vmem>>, %arg2: memref<1x16x16xf32, #tpu.memory_space<vmem>>, %arg3: memref<1x16x16xf32, #tpu.memory_space<vmem>>, %arg4: memref<16x32xbf16, #tpu.memory_space<vmem>>, %arg5: memref<1x32xf32, #tpu.memory_space<vmem>>, %arg6: memref<1x16x16xf32, #tpu.memory_space<vmem>>, %arg7: memref<1x16x16xf32, #tpu.memory_space<vmem>>, %arg8: memref<1x16x32xf32, #tpu.memory_space<vmem>>, %arg9: memref<1x16x32xf32, #tpu.memory_space<vmem>>) attributes {dimension_semantics = [#tpu.dimension_semantics<parallel>], iteration_bounds = array<i64: 2>, scalar_prefetch = 0 : i64, scratch_operands = 0 : i64, tpu.core_type = #tpu.core_type<tc>, window_params = [{transform_indices = @transform_0, window_bounds = array<i64: 1, 16, 16>}, {transform_indices = @transform_1, window_bounds = array<i64: 1, 16, 16>}, {transform_indices = @transform_2, window_bounds = array<i64: 1, 16, 16>}, {pipeline_mode = #tpu.pipeline_mode<synchronous>, transform_indices = @transform_3, window_bounds = array<i64: 16, 32>}, {pipeline_mode = #tpu.pipeline_mode<synchronous>, transform_indices = @transform_4, window_bounds = array<i64: 1, 32>}, {transform_indices = @transform_5, window_bounds = array<i64: 1, 16, 16>}, {transform_indices = @transform_6, window_bounds = array<i64: 1, 16, 16>}, {transform_indices = @transform_7, window_bounds = array<i64: 1, 16, 32>}, {transform_indices = @transform_8, window_bounds = array<i64: 1, 16, 32>}]} {
    %c0 = arith.constant 0 : index
    %c0_0 = arith.constant 0 : index
    %c0_1 = arith.constant 0 : index
    %0 = vector.load %arg3[%c0, %c0_0, %c0_1] : memref<1x16x16xf32, #tpu.memory_space<vmem>>, vector<1x16x16xf32>
    %1 = vector.shape_cast %0 : vector<1x16x16xf32> to vector<16x16xf32>
    %c0_2 = arith.constant 0 : index
    %c0_3 = arith.constant 0 : index
    %c0_4 = arith.constant 0 : index
    %2 = vector.load %arg1[%c0_2, %c0_3, %c0_4] : memref<1x16x16xf32, #tpu.memory_space<vmem>>, vector<1x16x16xf32>
    %3 = vector.shape_cast %2 : vector<1x16x16xf32> to vector<16x16xf32>
    %4 = arith.mulf %3, %1 : vector<16x16xf32>
    %c0_5 = arith.constant 0 : index
    %c0_6 = arith.constant 0 : index
    %c0_7 = arith.constant 0 : index
    %5 = vector.load %arg2[%c0_5, %c0_6, %c0_7] : memref<1x16x16xf32, #tpu.memory_space<vmem>>, vector<1x16x16xf32>
    %6 = vector.shape_cast %5 : vector<1x16x16xf32> to vector<16x16xf32>
    %7 = arith.mulf %6, %1 : vector<16x16xf32>
    %8 = tpu.concatenate %4, %7 in 0 : vector<16x16xf32>, vector<16x16xf32> -> vector<32x16xf32>
    %9 = arith.truncf %8 : vector<32x16xf32> to vector<32x16xbf16>
    %c0_8 = arith.constant 0 : index
    %c0_9 = arith.constant 0 : index
    %10 = vector.load %arg4[%c0_8, %c0_9] : memref<16x32xbf16, #tpu.memory_space<vmem>>, vector<16x32xbf16>
    %cst = arith.constant dense<0.000000e+00> : vector<32x32xf32>
    %11 = tpu.matmul %9, %10, %cst {dimension_numbers = #tpu.dot_dimension_numbers<[1], [0], [0], [1], [0, 0, 1, 1], [], []>} : vector<32x16xbf16>, vector<16x32xbf16>, vector<32x32xf32> -> vector<32x32xf32>
    %c0_10 = arith.constant 0 : index
    %c0_11 = arith.constant 0 : index
    %12 = vector.load %arg5[%c0_10, %c0_11] : memref<1x32xf32, #tpu.memory_space<vmem>>, vector<1x32xf32>
    %13 = vector.broadcast %12 : vector<1x32xf32> to vector<32x32xf32>
    %14 = arith.addf %11, %13 : vector<32x32xf32>
    %15 = vector.extract_strided_slice %14 {offsets = [0, 0], sizes = [16, 32], strides = [1, 1]} : vector<32x32xf32> to vector<16x32xf32>
    %16 = vector.extract_strided_slice %14 {offsets = [16, 0], sizes = [16, 32], strides = [1, 1]} : vector<32x32xf32> to vector<16x32xf32>
    %cst_12 = arith.constant dense<0xFF800000> : vector<16xf32>
    %17 = vector.multi_reduction <maximumf>, %15, %cst_12 [1] : vector<16x32xf32> to vector<16xf32>
    %18 = vector.shape_cast %17 : vector<16xf32> to vector<16x1xf32>
    %19 = vector.broadcast %18 : vector<16x1xf32> to vector<16x32xf32>
    %20 = arith.subf %15, %19 : vector<16x32xf32>
    %21 = math.exp %20 : vector<16x32xf32>
    %cst_13 = arith.constant dense<0.000000e+00> : vector<16xf32>
    %22 = vector.multi_reduction <add>, %21, %cst_13 [1] : vector<16x32xf32> to vector<16xf32>
    %23 = vector.shape_cast %22 : vector<16xf32> to vector<16x1xf32>
    %24 = math.log %23 : vector<16x1xf32>
    %25 = vector.broadcast %24 : vector<16x1xf32> to vector<16x32xf32>
    %26 = arith.subf %20, %25 : vector<16x32xf32>
    %cst_14 = arith.constant dense<0xFF800000> : vector<16xf32>
    %27 = vector.multi_reduction <maximumf>, %16, %cst_14 [1] : vector<16x32xf32> to vector<16xf32>
    %28 = vector.shape_cast %27 : vector<16xf32> to vector<16x1xf32>
    %29 = vector.broadcast %28 : vector<16x1xf32> to vector<16x32xf32>
    %30 = arith.subf %16, %29 : vector<16x32xf32>
    %31 = math.exp %30 : vector<16x32xf32>
    %cst_15 = arith.constant dense<0.000000e+00> : vector<16xf32>
    %32 = vector.multi_reduction <add>, %31, %cst_15 [1] : vector<16x32xf32> to vector<16xf32>
    %33 = vector.shape_cast %32 : vector<16xf32> to vector<16x1xf32>
    %34 = tpu.reciprocal %33 {approx = true} : vector<16x1xf32> -> vector<16x1xf32>
    %35 = vector.broadcast %34 : vector<16x1xf32> to vector<16x32xf32>
    %36 = arith.mulf %31, %35 : vector<16x32xf32>
    %c0_16 = arith.constant 0 : index
    %c0_17 = arith.constant 0 : index
    %c0_18 = arith.constant 0 : index
    %37 = vector.load %arg6[%c0_16, %c0_17, %c0_18] : memref<1x16x16xf32, #tpu.memory_space<vmem>>, vector<1x16x16xf32>
    %38 = vector.shape_cast %37 : vector<1x16x16xf32> to vector<16x16xf32>
    %39 = vector.shape_cast %4 : vector<16x16xf32> to vector<1x16x16xf32>
    tpu.vector_store %arg6[%c0_16, %c0_17, %c0_18], %39 {strides = array<i32>} : memref<1x16x16xf32, #tpu.memory_space<vmem>>, vector<1x16x16xf32>,
    %c0_19 = arith.constant 0 : index
    %c0_20 = arith.constant 0 : index
    %c0_21 = arith.constant 0 : index
    %40 = vector.load %arg7[%c0_19, %c0_20, %c0_21] : memref<1x16x16xf32, #tpu.memory_space<vmem>>, vector<1x16x16xf32>
    %41 = vector.shape_cast %40 : vector<1x16x16xf32> to vector<16x16xf32>
    %42 = vector.shape_cast %7 : vector<16x16xf32> to vector<1x16x16xf32>
    tpu.vector_store %arg7[%c0_19, %c0_20, %c0_21], %42 {strides = array<i32>} : memref<1x16x16xf32, #tpu.memory_space<vmem>>, vector<1x16x16xf32>,
    %c0_22 = arith.constant 0 : index
    %c0_23 = arith.constant 0 : index
    %c0_24 = arith.constant 0 : index
    %43 = vector.load %arg8[%c0_22, %c0_23, %c0_24] : memref<1x16x32xf32, #tpu.memory_space<vmem>>, vector<1x16x32xf32>
    %44 = vector.shape_cast %43 : vector<1x16x32xf32> to vector<16x32xf32>
    %45 = vector.shape_cast %26 : vector<16x32xf32> to vector<1x16x32xf32>
    tpu.vector_store %arg8[%c0_22, %c0_23, %c0_24], %45 {strides = array<i32>} : memref<1x16x32xf32, #tpu.memory_space<vmem>>, vector<1x16x32xf32>,
    %c0_25 = arith.constant 0 : index
    %c0_26 = arith.constant 0 : index
    %c0_27 = arith.constant 0 : index
    %46 = vector.load %arg9[%c0_25, %c0_26, %c0_27] : memref<1x16x32xf32, #tpu.memory_space<vmem>>, vector<1x16x32xf32>
    %47 = vector.shape_cast %46 : vector<1x16x32xf32> to vector<16x32xf32>
    %48 = vector.shape_cast %36 : vector<16x32xf32> to vector<1x16x32xf32>
    tpu.vector_store %arg9[%c0_25, %c0_26, %c0_27], %48 {strides = array<i32>} : memref<1x16x32xf32, #tpu.memory_space<vmem>>, vector<1x16x32xf32>,
    return
  }
  func.func @transform_0(%arg0: i32) -> (i32, i32, i32) {
    %c0_i32 = arith.constant 0 : i32
    %c0_i32_0 = arith.constant 0 : i32
    %c0_i32_1 = arith.constant 0 : i32
    return %arg0, %c0_i32, %c0_i32_0 : i32, i32, i32
  }
  func.func @transform_1(%arg0: i32) -> (i32, i32, i32) {
    %c0_i32 = arith.constant 0 : i32
    %c0_i32_0 = arith.constant 0 : i32
    %c0_i32_1 = arith.constant 0 : i32
    return %arg0, %c0_i32, %c0_i32_0 : i32, i32, i32
  }
  func.func @transform_2(%arg0: i32) -> (i32, i32, i32) {
    %c0_i32 = arith.constant 0 : i32
    %c0_i32_0 = arith.constant 0 : i32
    %c0_i32_1 = arith.constant 0 : i32
    return %arg0, %c0_i32, %c0_i32_0 : i32, i32, i32
  }
  func.func @transform_3(%arg0: i32) -> (i32, i32) {
    %c0_i32 = arith.constant 0 : i32
    %c0_i32_0 = arith.constant 0 : i32
    %c0_i32_1 = arith.constant 0 : i32
    return %c0_i32, %c0_i32_0 : i32, i32
  }
  func.func @transform_4(%arg0: i32) -> (i32, i32) {
    %c0_i32 = arith.constant 0 : i32
    %c0_i32_0 = arith.constant 0 : i32
    %c0_i32_1 = arith.constant 0 : i32
    return %c0_i32, %c0_i32_0 : i32, i32
  }
  func.func @transform_5(%arg0: i32) -> (i32, i32, i32) {
    %c0_i32 = arith.constant 0 : i32
    %c0_i32_0 = arith.constant 0 : i32
    %c0_i32_1 = arith.constant 0 : i32
    return %arg0, %c0_i32, %c0_i32_0 : i32, i32, i32
  }
  func.func @transform_6(%arg0: i32) -> (i32, i32, i32) {
    %c0_i32 = arith.constant 0 : i32
    %c0_i32_0 = arith.constant 0 : i32
    %c0_i32_1 = arith.constant 0 : i32
    return %arg0, %c0_i32, %c0_i32_0 : i32, i32, i32
  }
  func.func @transform_7(%arg0: i32) -> (i32, i32, i32) {
    %c0_i32 = arith.constant 0 : i32
    %c0_i32_0 = arith.constant 0 : i32
    %c0_i32_1 = arith.constant 0 : i32
    return %arg0, %c0_i32, %c0_i32_0 : i32, i32, i32
  }
  func.func @transform_8(%arg0: i32) -> (i32, i32, i32) {
    %c0_i32 = arith.constant 0 : i32
    %c0_i32_0 = arith.constant 0 : i32
    %c0_i32_1 = arith.constant 0 : i32
    return %arg0, %c0_i32, %c0_i32_0 : i32, i32, i32
  }
}

</mosaic_0001>

<llo_original>
// kernel: model_forward.3
$region0: #{model_forward.3}
  #allocation0 [shape = 'u32[]', space=smem, size = 0x4, offset = 0x4, fixed_abs, tag = 'smem constant byte address 0x4 - core index']
  #allocation1 [shape = 'u32[144,128]{1,0:T(1,128)}', space=vmem, size = 0x12000, scoped, tag = 'internal scratch']
  %s0 = inlined_call_operand.vmem [shape: f32[2,16,16], index: 0, kind: input, shape index: {}]
  %s1 = inlined_call_operand.vmem [shape: f32[2,16,16], index: 1, kind: input, shape index: {}]
  %s2 = inlined_call_operand.vmem [shape: f32[2,16,16], index: 2, kind: input, shape index: {}]
  %s3 = inlined_call_operand.vmem [shape: bf16[16,32], index: 3, kind: input, shape index: {}]
  %s4 = inlined_call_operand.vmem [shape: f32[1,32], index: 4, kind: input, shape index: {}]
  %s5 = inlined_call_operand.hbm [shape: f32[2,16,16], index: 5, kind: output, shape index: {0}]
  %s6 = inlined_call_operand.hbm [shape: f32[2,16,16], index: 6, kind: output, shape index: {1}]
  %s7 = inlined_call_operand.hbm [shape: f32[2,16,32], index: 7, kind: output, shape index: {2}]
  %s8 = inlined_call_operand.hbm [shape: f32[2,16,32], index: 8, kind: output, shape index: {3}]
  %9 = xla_tuple %s5, %s6, %s7, %s8
  %s10 = sld [smem:[#allocation0]]
  $region77: #{model_forward.3} parent=0
    _
  %s12 = ssub.s32 1, %s10
  %s13 = scalar_select 0, %s12, %s10
  $region1: #{model_forward.3} parent=0
    #allocation2 [shape = 'u8[16384]{0}', space=vmem, size = 0x4000, scoped, tag = 'output window, operand 0']
    #allocation3 [shape = 's32[2]{0}', space=sflag, size = 0x8, scoped, tag = 'scoped memory for model_forward.3']
    #allocation4 [shape = 'u8[16384]{0}', space=vmem, size = 0x4000, scoped, tag = 'output window, operand 1']
    #allocation5 [shape = 's32[2]{0}', space=sflag, size = 0x8, scoped, tag = 'scoped memory for model_forward.3']
    #allocation6 [shape = 'u8[16384]{0}', space=vmem, size = 0x4000, scoped, tag = 'output window, operand 2']
    #allocation7 [shape = 'u8[16384]{0}', space=vmem, size = 0x4000, scoped, tag = 'output window, operand 3']
    #allocation8 [shape = 's32[2]{0}', space=sflag, size = 0x8, scoped, tag = 'scoped memory for model_forward.3']
    %14 = vsyncpa [#allocation3], 0
    %s15 = scalar_lea.sflag [#allocation3], 1
    %16 = vsyncpa %s15, 0
    %17 = vsyncpa [#allocation5], 0
    %s18 = scalar_lea.sflag [#allocation5], 1
    %19 = vsyncpa %s18, 0
    %20 = vsyncpa [#allocation8], 0
    %s21 = scalar_lea.sflag [#allocation8], 1
    %22 = vsyncpa %s21, 0
    loop: start=0, step=1, limit=4
    $region2: #{model_forward.3} parent=1 // loop_pre_header
      _
    $region3: #{model_forward.3} parent=1 // loop_header
      %s24 = sphi 0, %s28
      %p25 = scmp.ge.s32.totalorder %s24, 4
      %s34 = sphi 0, %s36
      %s37 = sphi 0, %s34
      %s38 = sphi 0, %s37
      %s54 = sphi 0, %s38
      %s60 = sphi 0, %s62
      %s63 = sphi 0, %s60
      %s64 = sphi 0, %s63
      %s80 = sphi 0, %s64
      %s86 = sphi 0, %s88
      %s89 = sphi 0, %s86
      %s90 = sphi 0, %s89
      %s106 = sphi 0, %s90
      %s110 = sphi 0, %s110
      %s112 = sphi 0, %s110
      %s113 = sphi 0, %s112
      %s127 = sphi 0, %s113
      %s131 = sphi 0, %s131
      %s133 = sphi 0, %s131
      %s134 = sphi 0, %s133
      %s148 = sphi 0, %s134
      %s154 = sphi 0, %s156
      %s157 = sphi 0, %s154
      %s158 = sphi 0, %s157
      %s174 = sphi 0, %s158
      %s180 = sphi 0, %s182
      %s183 = sphi 0, %s180
      %s184 = sphi 0, %s183
      %s200 = sphi 0, %s184
      %s206 = sphi 0, %s208
      %s209 = sphi 0, %s206
      %s210 = sphi 0, %s209
      %s226 = sphi 0, %s210
      %s232 = sphi 0, %s234
      %s235 = sphi 0, %s232
      %s236 = sphi 0, %s235
      %s252 = sphi 0, %s236
    $region4: #{model_forward.3} parent=1 // loop_header_branch
      %27 = sbr.rel (%p25) target = $region8
    $region5: #{model_forward.3} parent=1 // loop_body
      %s29 = ssub.s32 %s24, 1
      %s30 = ssub.s32 %s24, 2
      %s31 = sadd.s32 %s24, 1
      %s32 = ssub.s32 %s24, %s31
      %p33 = scmp.eq.s32.totalorder %s32, 0
      %s35 = sadd.s32 %s34, 1
      %s36 = scalar_select %p33, %s34, %s35
      %p39 = pneg %p33
      %p40 = scmp.eq.s32.totalorder %s24, 1
      %p41 = por %p39, %p40
      %p42 = scmp.ne.s32.totalorder %s34, %s37
      %p43 = scmp.eq.s32.totalorder %s24, 0
      %p44 = por %p42, %p43
      %p45 = scmp.ne.s32.totalorder %s34, %s37
      %p46 = scmp.eq.s32.totalorder %s29, 1
      %p47 = por %p45, %p46
      %p48 = scmp.ne.s32.totalorder %s37, %s38
      %p49 = scmp.eq.s32.totalorder %s29, 0
      %p50 = por %p48, %p49
      %p51 = scmp.ne.s32.totalorder %s37, %s38
      %p52 = scmp.eq.s32.totalorder %s30, 1
      %p53 = por %p51, %p52
      %p55 = scmp.ne.s32.totalorder %s38, %s54
      %p56 = scmp.eq.s32.totalorder %s30, 0
      %p57 = por %p55, %p56
      %s58 = ssub.s32 %s24, %s31
      %p59 = scmp.eq.s32.totalorder %s58, 0
      %s61 = sadd.s32 %s60, 1
      %s62 = scalar_select %p59, %s60, %s61
      %p65 = pneg %p59
      %p66 = scmp.eq.s32.totalorder %s24, 1
      %p67 = por %p65, %p66
      %p68 = scmp.ne.s32.totalorder %s60, %s63
      %p69 = scmp.eq.s32.totalorder %s24, 0
      %p70 = por %p68, %p69
      %p71 = scmp.ne.s32.totalorder %s60, %s63
      %p72 = scmp.eq.s32.totalorder %s29, 1
      %p73 = por %p71, %p72
      %p74 = scmp.ne.s32.totalorder %s63, %s64
      %p75 = scmp.eq.s32.totalorder %s29, 0
      %p76 = por %p74, %p75
      %p77 = scmp.ne.s32.totalorder %s63, %s64
      %p78 = scmp.eq.s32.totalorder %s30, 1
      %p79 = por %p77, %p78
      %p81 = scmp.ne.s32.totalorder %s64, %s80
      %p82 = scmp.eq.s32.totalorder %s30, 0
      %p83 = por %p81, %p82
      %s84 = ssub.s32 %s24, %s31
      %p85 = scmp.eq.s32.totalorder %s84, 0
      %s87 = sadd.s32 %s86, 1
      %s88 = scalar_select %p85, %s86, %s87
      %p91 = pneg %p85
      %p92 = scmp.eq.s32.totalorder %s24, 1
      %p93 = por %p91, %p92
      %p94 = scmp.ne.s32.totalorder %s86, %s89
      %p95 = scmp.eq.s32.totalorder %s24, 0
      %p96 = por %p94, %p95
      %p97 = scmp.ne.s32.totalorder %s86, %s89
      %p98 = scmp.eq.s32.totalorder %s29, 1
      %p99 = por %p97, %p98
      %p100 = scmp.ne.s32.totalorder %s89, %s90
      %p101 = scmp.eq.s32.totalorder %s29, 0
      %p102 = por %p100, %p101
      %p103 = scmp.ne.s32.totalorder %s89, %s90
      %p104 = scmp.eq.s32.totalorder %s30, 1
      %p105 = por %p103, %p104
      %p107 = scmp.ne.s32.totalorder %s90, %s106
      %p108 = scmp.eq.s32.totalorder %s30, 0
      %p109 = por %p107, %p108
      %s111 = sadd.s32 %s110, 1
      %p114 = scmp.eq.s32.totalorder %s24, 1
      %p115 = scmp.ne.s32.totalorder %s110, %s112
      %p116 = scmp.eq.s32.totalorder %s24, 0
      %p117 = por %p115, %p116
      %p118 = scmp.ne.s32.totalorder %s110, %s112
      %p119 = scmp.eq.s32.totalorder %s29, 1
      %p120 = por %p118, %p119
      %p121 = scmp.ne.s32.totalorder %s112, %s113
      %p122 = scmp.eq.s32.totalorder %s29, 0
      %p123 = por %p121, %p122
      %p124 = scmp.ne.s32.totalorder %s112, %s113
      %p125 = scmp.eq.s32.totalorder %s30, 1
      %p126 = por %p124, %p125
      %p128 = scmp.ne.s32.totalorder %s113, %s127
      %p129 = scmp.eq.s32.totalorder %s30, 0
      %p130 = por %p128, %p129
      %s132 = sadd.s32 %s131, 1
      %p135 = scmp.eq.s32.totalorder %s24, 1
      %p136 = scmp.ne.s32.totalorder %s131, %s133
      %p137 = scmp.eq.s32.totalorder %s24, 0
      %p138 = por %p136, %p137
      %p139 = scmp.ne.s32.totalorder %s131, %s133
      %p140 = scmp.eq.s32.totalorder %s29, 1
      %p141 = por %p139, %p140
      %p142 = scmp.ne.s32.totalorder %s133, %s134
      %p143 = scmp.eq.s32.totalorder %s29, 0
      %p144 = por %p142, %p143
      %p145 = scmp.ne.s32.totalorder %s133, %s134
      %p146 = scmp.eq.s32.totalorder %s30, 1
      %p147 = por %p145, %p146
      %p149 = scmp.ne.s32.totalorder %s134, %s148
      %p150 = scmp.eq.s32.totalorder %s30, 0
      %p151 = por %p149, %p150
      %s152 = ssub.s32 %s24, %s31
      %p153 = scmp.eq.s32.totalorder %s152, 0
      %s155 = sadd.s32 %s154, 1
      %s156 = scalar_select %p153, %s154, %s155
      %p159 = pneg %p153
      %p160 = scmp.eq.s32.totalorder %s24, 1
      %p161 = por %p159, %p160
      %p162 = scmp.ne.s32.totalorder %s154, %s157
      %p163 = scmp.eq.s32.totalorder %s24, 0
      %p164 = por %p162, %p163
      %p165 = scmp.ne.s32.totalorder %s154, %s157
      %p166 = scmp.eq.s32.totalorder %s29, 1
      %p167 = por %p165, %p166
      %p168 = scmp.ne.s32.totalorder %s157, %s158
      %p169 = scmp.eq.s32.totalorder %s29, 0
      %p170 = por %p168, %p169
      %p171 = scmp.ne.s32.totalorder %s157, %s158
      %p172 = scmp.eq.s32.totalorder %s30, 1
      %p173 = por %p171, %p172
      %p175 = scmp.ne.s32.totalorder %s158, %s174
      %p176 = scmp.eq.s32.totalorder %s30, 0
      %p177 = por %p175, %p176
      %s178 = ssub.s32 %s24, %s31
      %p179 = scmp.eq.s32.totalorder %s178, 0
      %s181 = sadd.s32 %s180, 1
      %s182 = scalar_select %p179, %s180, %s181
      %p185 = pneg %p179
      %p186 = scmp.eq.s32.totalorder %s24, 1
      %p187 = por %p185, %p186
      %p188 = scmp.ne.s32.totalorder %s180, %s183
      %p189 = scmp.eq.s32.totalorder %s24, 0
      %p190 = por %p188, %p189
      %p191 = scmp.ne.s32.totalorder %s180, %s183
      %p192 = scmp.eq.s32.totalorder %s29, 1
      %p193 = por %p191, %p192
      %p194 = scmp.ne.s32.totalorder %s183, %s184
      %p195 = scmp.eq.s32.totalorder %s29, 0
      %p196 = por %p194, %p195
      %p197 = scmp.ne.s32.totalorder %s183, %s184
      %p198 = scmp.eq.s32.totalorder %s30, 1
      %p199 = por %p197, %p198
      %p201 = scmp.ne.s32.totalorder %s184, %s200
      %p202 = scmp.eq.s32.totalorder %s30, 0
      %p203 = por %p201, %p202
      %s204 = ssub.s32 %s24, %s31
      %p205 = scmp.eq.s32.totalorder %s204, 0
      %s207 = sadd.s32 %s206, 1
      %s208 = scalar_select %p205, %s206, %s207
      %p211 = pneg %p205
      %p212 = scmp.eq.s32.totalorder %s24, 1
      %p213 = por %p211, %p212
      %p214 = scmp.ne.s32.totalorder %s206, %s209
      %p215 = scmp.eq.s32.totalorder %s24, 0
      %p216 = por %p214, %p215
      %p217 = scmp.ne.s32.totalorder %s206, %s209
      %p218 = scmp.eq.s32.totalorder %s29, 1
      %p219 = por %p217, %p218
      %p220 = scmp.ne.s32.totalorder %s209, %s210
      %p221 = scmp.eq.s32.totalorder %s29, 0
      %p222 = por %p220, %p221
      %p223 = scmp.ne.s32.totalorder %s209, %s210
      %p224 = scmp.eq.s32.totalorder %s30, 1
      %p225 = por %p223, %p224
      %p227 = scmp.ne.s32.totalorder %s210, %s226
      %p228 = scmp.eq.s32.totalorder %s30, 0
      %p229 = por %p227, %p228
      %s230 = ssub.s32 %s24, %s31
      %p231 = scmp.eq.s32.totalorder %s230, 0
      %s233 = sadd.s32 %s232, 1
      %s234 = scalar_select %p231, %s232, %s233
      %p237 = pneg %p231
      %p238 = scmp.eq.s32.totalorder %s24, 1
      %p239 = por %p237, %p238
      %p240 = scmp.ne.s32.totalorder %s232, %s235
      %p241 = scmp.eq.s32.totalorder %s24, 0
      %p242 = por %p240, %p241
      %p243 = scmp.ne.s32.totalorder %s232, %s235
      %p244 = scmp.eq.s32.totalorder %s29, 1
      %p245 = por %p243, %p244
      %p246 = scmp.ne.s32.totalorder %s235, %s236
      %p247 = scmp.eq.s32.totalorder %s29, 0
      %p248 = por %p246, %p247
      %p249 = scmp.ne.s32.totalorder %s235, %s236
      %p250 = scmp.eq.s32.totalorder %s30, 1
      %p251 = por %p249, %p250
      %p253 = scmp.ne.s32.totalorder %s236, %s252
      %p254 = scmp.eq.s32.totalorder %s30, 0
      %p255 = por %p253, %p254
      %p256 = scmp.le.s32.totalorder 1, %s24
      %p257 = scmp.lt.s32.totalorder %s24, 3
      %p258 = pnand %p256, %p257
      %p259 = pneg %p258
      // Predicated region
      $region9: #{model_forward.3} parent=5 // pred_check
        _
      $region10: #{model_forward.3} parent=5 // pred_check_branch
        %261 = sbr.rel (%p258) target = $region12
      $region11: #{model_forward.3} parent=5 // pred_region
        %s262 = ssub.s32 %s24, 1
        // Predicated region
        $region13: #{model_forward.3} parent=11 // pred_check
          %p263 = pneg %p123
        $region14: #{model_forward.3} parent=11 // pred_check_branch
          %265 = sbr.rel (%p263) target = $region16
        $region15: #{model_forward.3} parent=11 // pred_region
          _
        $region16: #{model_forward.3} parent=11 // pred_fallthru
          _
        // Predicated region
        $region17: #{model_forward.3} parent=11 // pred_check
          %p266 = pneg %p144
        $region18: #{model_forward.3} parent=11 // pred_check_branch
          %268 = sbr.rel (%p266) target = $region20
        $region19: #{model_forward.3} parent=11 // pred_region
          _
        $region20: #{model_forward.3} parent=11 // pred_fallthru
          _
      $region12: #{model_forward.3} parent=5 // pred_fallthru
        _
      %p269 = scmp.lt.s32.totalorder %s24, 2
      // Predicated region
      $region21: #{model_forward.3} parent=5 // pred_check
        %p270 = pneg %p269
      $region22: #{model_forward.3} parent=5 // pred_check_branch
        %272 = sbr.rel (%p270) target = $region24
      $region23: #{model_forward.3} parent=5 // pred_region
        // Predicated region
        $region25: #{model_forward.3} parent=23 // pred_check
          %p273 = pneg %p44
        $region26: #{model_forward.3} parent=23 // pred_check_branch
          %275 = sbr.rel (%p273) target = $region28
        $region27: #{model_forward.3} parent=23 // pred_region
          %p276 = scmp.lt.s32.totalorder %s24, 1
          %s277 = scalar_select %p276, %s24, 1
          %s278 = smul.addr %s277, 2
          %s279 = smul.addr %s278, 8
          %s280 = scalar_lea.vmem %s0, %s279
        $region28: #{model_forward.3} parent=23 // pred_fallthru
          _
        // Predicated region
        $region29: #{model_forward.3} parent=23 // pred_check
          %p281 = pneg %p70
        $region30: #{model_forward.3} parent=23 // pred_check_branch
          %283 = sbr.rel (%p281) target = $region32
        $region31: #{model_forward.3} parent=23 // pred_region
          %p284 = scmp.lt.s32.totalorder %s24, 1
          %s285 = scalar_select %p284, %s24, 1
          %s286 = smul.addr %s285, 2
          %s287 = smul.addr %s286, 8
          %s288 = scalar_lea.vmem %s1, %s287
        $region32: #{model_forward.3} parent=23 // pred_fallthru
          _
        // Predicated region
        $region33: #{model_forward.3} parent=23 // pred_check
          %p289 = pneg %p96
        $region34: #{model_forward.3} parent=23 // pred_check_branch
          %291 = sbr.rel (%p289) target = $region36
        $region35: #{model_forward.3} parent=23 // pred_region
          %p292 = scmp.lt.s32.totalorder %s24, 1
          %s293 = scalar_select %p292, %s24, 1
          %s294 = smul.addr %s293, 2
          %s295 = smul.addr %s294, 8
          %s296 = scalar_lea.vmem %s2, %s295
        $region36: #{model_forward.3} parent=23 // pred_fallthru
          _
      $region24: #{model_forward.3} parent=5 // pred_fallthru
        _
      %p297 = scmp.le.s32.totalorder 1, %s24
      %p298 = scmp.lt.s32.totalorder %s24, 3
      %p299 = pnand %p297, %p298
      %p300 = pneg %p299
      // Predicated region
      $region37: #{model_forward.3} parent=5 // pred_check
        _
      $region38: #{model_forward.3} parent=5 // pred_check_branch
        %302 = sbr.rel (%p299) target = $region40
      $region39: #{model_forward.3} parent=5 // pred_region
        %s303 = ssub.s32 %s24, 1
        %p304 = scmp.lt.s32.totalorder %s29, 1
        %s305 = scalar_select %p304, %s29, 1
        %s306 = smul.addr %s305, 2
        %s307 = smul.addr %s306, 8
        %s308 = scalar_lea.vmem %s0, %s307
        %p309 = pneg %p50
        %p310 = pneg %p47
        %p311 = scmp.lt.s32.totalorder %s29, 1
        %s312 = scalar_select %p311, %s29, 1
        %s313 = smul.addr %s312, 2
        %s314 = smul.addr %s313, 8
        %s315 = scalar_lea.vmem %s1, %s314
        %p316 = pneg %p76
        %p317 = pneg %p73
        %p318 = scmp.lt.s32.totalorder %s29, 1
        %s319 = scalar_select %p318, %s29, 1
        %s320 = smul.addr %s319, 2
        %s321 = smul.addr %s320, 8
        %s322 = scalar_lea.vmem %s2, %s321
        %p323 = pneg %p102
        %p324 = pneg %p99
        %p325 = pneg %p123
        %p326 = pneg %p120
        %p327 = pneg %p144
        %p328 = pneg %p141
        %p329 = pneg %p170
        %p330 = pneg %p167
        %s331 = sand.u32 %s157, 1
        %s332 = scalar_lea.sflag [#allocation3], %s331
        %s333 = sand.u32 %s157, 1
        %s334 = smul.addr %s333, 16
        %s335 = scalar_lea.vmem [#allocation2], %s334
        %p336 = pneg %p196
        %p337 = pneg %p193
        %s338 = sand.u32 %s29, 1
        %s339 = scalar_lea.sflag [#allocation5], %s338
        %s340 = sand.u32 %s183, 1
        %s341 = smul.addr %s340, 16
        %s342 = scalar_lea.vmem [#allocation4], %s341
        %p343 = pneg %p222
        %p344 = pneg %p219
        %s345 = sand.u32 %s29, 1
        %s346 = scalar_lea.sflag [#allocation5], %s345
        %s347 = sand.u32 %s209, 1
        %s348 = smul.addr %s347, 16
        %s349 = scalar_lea.vmem [#allocation6], %s348
        %p350 = pneg %p248
        %p351 = pneg %p245
        %s352 = sand.u32 %s235, 1
        %s353 = scalar_lea.sflag [#allocation8], %s352
        %s354 = sand.u32 %s235, 1
        %s355 = smul.addr %s354, 16
        %s356 = scalar_lea.vmem [#allocation7], %s355
        %p357 = scmp.lt.s32.totalorder %s29, 1
        %s358 = scalar_select %p357, %s29, 1
        %s359 = smul.addr %s358, 2
        %s360 = smul.addr %s359, 8
        %s361 = scalar_lea.vmem %s0, %s360
        %p362 = scmp.lt.s32.totalorder %s29, 1
        %s363 = scalar_select %p362, %s29, 1
        %s364 = smul.addr %s363, 2
        %s365 = smul.addr %s364, 8
        %s366 = scalar_lea.vmem %s1, %s365
        %p367 = scmp.lt.s32.totalorder %s29, 1
        %s368 = scalar_select %p367, %s29, 1
        %s369 = smul.addr %s368, 2
        %s370 = smul.addr %s369, 8
        %s371 = scalar_lea.vmem %s2, %s370
        %v373 = vld [vmem:[%s371] sm:$0xff]
        %v374 = vld [vmem:[%s371 + $0x8] sm:$0xff]
        %v375 = vld [vmem:[%s361] sm:$0xff]
        %v376 = vld [vmem:[%s361 + $0x8] sm:$0xff]
        %v377 = vmul.f32 %v375, %v373
        %v378 = vmul.f32 %v376, %v374
        %v379 = vld [vmem:[%s366] sm:$0xff]
        %v380 = vld [vmem:[%s366 + $0x8] sm:$0xff]
        %v381 = vmul.f32 %v379, %v373
        %v382 = vmul.f32 %v380, %v374
        %v383 = vpack.c.bf16 %v378, %v377
        %v384 = vpack.c.bf16 %v382, %v381
        %v385 = vld [vmem:[%s3] sm:$0xf]
        %v386 = vld [vmem:[%s3 + $0x4] sm:$0xf]
        %v387 = vld [vmem:[%s4] sm:$0x1]
        %v389 = vlaneseq
        %v390 = vshrl.u32 %v389, 7
        %v391 = vsub.s32 0, %v390
        %v392 = vrot.slane %v387, %v391
        %v396 = vunpack.c.l.b16 %v385
        %v397 = vunpack.c.l.b16 %v386
        %v398 = vpack.c.b16 %v397, %v396
        %vm400 = vcmask 130048
        %v402 = vsel %vm400, %v383, 0
        %v405 = vsel %vm400, %v384, 0
        %407 = vmatprep.subr.bf16.mxu0 0
        %408 = vmatpush1.bf16.msra.mxu0 0
        %409 = vmatprep.subr.bf16.mxu0 0
        %410 = vmatpush1.bf16.msra.mxu0 0
        %411 = vmatprep.subr.bf16.mxu0 0
        %412 = vmatpush1.bf16.msra.mxu0 0
        %413 = vmatprep.subr.bf16.mxu0 0
        %414 = vmatpush1.bf16.msra.mxu0 0
        %415 = vmatprep.subr.bf16.mxu0 0
        %416 = vmatpush1.bf16.msra.mxu0 0
        %417 = vmatprep.subr.bf16.mxu0 0
        %418 = vmatpush1.bf16.msra.mxu0 0
        %419 = vmatprep.subr.bf16.mxu0 0
        %420 = vmatpush1.bf16.msra.mxu0 0
        %421 = vmatprep.subr.bf16.mxu0 0
        %422 = vmatpush1.bf16.msra.mxu0 %v398
        %423 = vmatprep.subr.bf16.mxu0 0
        %424 = vmatpush2.bf16.msra.mxu0 0
        %425 = vmatprep.subr.bf16.mxu0 0
        %426 = vmatpush2.bf16.msra.mxu0 0
        %427 = vmatprep.subr.bf16.mxu0 0
        %428 = vmatpush2.bf16.msra.mxu0 0
        %429 = vmatprep.subr.bf16.mxu0 0
        %430 = vmatpush2.bf16.msra.mxu0 0
        %431 = vmatprep.subr.bf16.mxu0 0
        %432 = vmatpush2.bf16.msra.mxu0 0
        %433 = vmatprep.subr.bf16.mxu0 0
        %434 = vmatpush2.bf16.msra.mxu0 0
        %435 = vmatprep.subr.bf16.mxu0 0
        %436 = vmatpush2.bf16.msra.mxu0 0
        %437 = vmatprep.subr.bf16.mxu0 0
        %438 = vmatpush2.bf16.msra.mxu0 0
        %439 = vmatprep.mubr.bf16.mxu0 0
        %440 = vmatmul.mubr.bf16.gmra.mxu0 %v402
        %v441 = vpop.f32.mrf.mxu0
        %v442 = vadd.f32 %v392, %v441
        %v443 = vpop.f32.mrf.mxu0
        %v444 = vpop.f32.mrf.mxu0
        %v445 = vadd.f32 %v392, %v444
        %v446 = vpop.f32.mrf.mxu0
        %447 = vmatprep.mubr.bf16.mxu0 0
        %448 = vmatmul.mubr.bf16.gmra.mxu0 %v405
        %v449 = vpop.f32.mrf.mxu0
        %v450 = vadd.f32 %v392, %v449
        %v451 = vpop.f32.mrf.mxu0
        %v452 = vpop.f32.mrf.mxu0
        %v453 = vadd.f32 %v392, %v452
        %v454 = vpop.f32.mrf.mxu0
        %455 = vdwg.mxu0
        %vm456 = vcmask 261120
        %v457 = vsel %vm456, %v442, -inf
        %458 = vmax.xlane.f32.xlu0 %v457
        %v459 = vpop.xlane.xlu0 %458
        %v460 = vsel %vm456, %v445, -inf
        %461 = vmax.xlane.f32.xlu0 %v460
        %v462 = vpop.xlane.xlu0 %461
        %v463 = vsub.f32 %v442, %v459
        %v464 = vsub.f32 %v445, %v462
        %v465 = vmul.f32 %v463, 1.442695
        %v466 = vpow.pop %v465
        %v467 = vmul.f32 %v464, 1.442695
        %v468 = vpow.pop %v467
        %v469 = vsel %vm456, %v466, 0.0
        %470 = vadd.xlane.f32.xlu0 %v469
        %v471 = vpop.xlane.xlu0 %470
        %v472 = vsel %vm456, %v468, 0.0
        %473 = vadd.xlane.f32.xlu0 %v472
        %v474 = vpop.xlane.xlu0 %473
        %v475 = vlog2.pop %v471
        %v476 = vmul.f32 %v475, 0.6931472
        %v477 = vlog2.pop %v474
        %v478 = vmul.f32 %v477, 0.6931472
        %v479 = vsub.f32 %v463, %v476
        %v480 = vsub.f32 %v464, %v478
        %v481 = vsel %vm456, %v450, -inf
        %482 = vmax.xlane.f32.xlu0 %v481
        %v483 = vpop.xlane.xlu0 %482
        %v484 = vsel %vm456, %v453, -inf
        %485 = vmax.xlane.f32.xlu0 %v484
        %v486 = vpop.xlane.xlu0 %485
        %v487 = vsub.f32 %v450, %v483
        %v488 = vsub.f32 %v453, %v486
        %v489 = vmul.f32 %v487, 1.442695
        %v490 = vpow.pop %v489
        %v491 = vmul.f32 %v488, 1.442695
        %v492 = vpow.pop %v491
        %v493 = vsel %vm456, %v490, 0.0
        %494 = vadd.xlane.f32.xlu0 %v493
        %v495 = vpop.xlane.xlu0 %494
        %v496 = vsel %vm456, %v492, 0.0
        %497 = vadd.xlane.f32.xlu0 %v496
        %v498 = vpop.xlane.xlu0 %497
        %v499 = vrcp.pop %v495
        %v500 = vrcp.pop %v498
        %v501 = vmul.f32 %v490, %v499
        %v502 = vmul.f32 %v492, %v500
        %503 = vst.msk [vmem:[%s335] sm:$0xff] %vm400, %v377
        %504 = vst.msk [vmem:[%s335 + $0x8] sm:$0xff] %vm400, %v378
        %505 = vst.msk [vmem:[%s342] sm:$0xff] %vm400, %v381
        %506 = vst.msk [vmem:[%s342 + $0x8] sm:$0xff] %vm400, %v382
        %507 = vst.msk [vmem:[%s349] sm:$0xff] %vm456, %v479
        %508 = vst.msk [vmem:[%s349 + $0x8] sm:$0xff] %vm456, %v480
        %509 = vst.msk [vmem:[%s356] sm:$0xff] %vm456, %v501
        %510 = vst.msk [vmem:[%s356 + $0x8] sm:$0xff] %vm456, %v502
        %s511 = sand.u32 %s157, 1
        %s512 = scalar_lea.sflag [#allocation3], %s511
        %s513 = sand.u32 %s157, 1
        %s514 = smul.addr %s513, 16
        %s515 = scalar_lea.vmem [#allocation2], %s514
        %s516 = sand.u32 %s29, 1
        %s517 = scalar_lea.sflag [#allocation5], %s516
        %s518 = sand.u32 %s183, 1
        %s519 = smul.addr %s518, 16
        %s520 = scalar_lea.vmem [#allocation4], %s519
        %s521 = sand.u32 %s29, 1
        %s522 = scalar_lea.sflag [#allocation5], %s521
        %s523 = sand.u32 %s209, 1
        %s524 = smul.addr %s523, 16
        %s525 = scalar_lea.vmem [#allocation6], %s524
        %s526 = sand.u32 %s235, 1
        %s527 = scalar_lea.sflag [#allocation8], %s526
        %s528 = sand.u32 %s235, 1
        %s529 = smul.addr %s528, 16
        %s530 = scalar_lea.vmem [#allocation7], %s529
        // Predicated region
        $region41: #{model_forward.3} parent=39 // pred_check
          %p531 = pneg %p167
        $region42: #{model_forward.3} parent=39 // pred_check_branch
          %533 = sbr.rel (%p531) target = $region44
        $region43: #{model_forward.3} parent=39 // pred_region
          %s535 = ssub.s32 256, 256
          %536 = vsyncadd %s512, %s535
          %s537 = smul.addr %s29, 2
          %s538 = smul.addr %s537, 128
          %s539 = scalar_lea.hbm %s5, %s538
          %s540 = sshll.u32 %s515, 4
          %s541 = int_to_ptr.vmem [resolvable:$true] %s540
          %546 = dma.vmem_to_hbm [thread:$0]  %s541, 256, %s539, %s512, 128, 128, 8
        $region44: #{model_forward.3} parent=39 // pred_fallthru
          _
        // Predicated region
        $region45: #{model_forward.3} parent=39 // pred_check
          %p547 = pneg %p193
        $region46: #{model_forward.3} parent=39 // pred_check_branch
          %549 = sbr.rel (%p547) target = $region48
        $region47: #{model_forward.3} parent=39 // pred_region
          %s551 = ssub.s32 256, 256
          %552 = vsyncadd %s517, %s551
          %s553 = smul.addr %s29, 2
          %s554 = smul.addr %s553, 128
          %s555 = scalar_lea.hbm %s6, %s554
          %s556 = sshll.u32 %s520, 4
          %s557 = int_to_ptr.vmem [resolvable:$true] %s556
          %562 = dma.vmem_to_hbm [thread:$0]  %s557, 256, %s555, %s517, 128, 128, 8
        $region48: #{model_forward.3} parent=39 // pred_fallthru
          _
        // Predicated region
        $region49: #{model_forward.3} parent=39 // pred_check
          %p563 = pneg %p219
        $region50: #{model_forward.3} parent=39 // pred_check_branch
          %565 = sbr.rel (%p563) target = $region52
        $region51: #{model_forward.3} parent=39 // pred_region
          %s567 = ssub.s32 256, 256
          %568 = vsyncadd %s522, %s567
          %s569 = smul.addr %s29, 2
          %s570 = smul.addr %s569, 128
          %s571 = scalar_lea.hbm %s7, %s570
          %s572 = sshll.u32 %s525, 4
          %s573 = int_to_ptr.vmem [resolvable:$true] %s572
          %578 = dma.vmem_to_hbm [thread:$0]  %s573, 256, %s571, %s522, 128, 128, 8
        $region52: #{model_forward.3} parent=39 // pred_fallthru
          _
        // Predicated region
        $region53: #{model_forward.3} parent=39 // pred_check
          %p579 = pneg %p245
        $region54: #{model_forward.3} parent=39 // pred_check_branch
          %581 = sbr.rel (%p579) target = $region56
        $region55: #{model_forward.3} parent=39 // pred_region
          %s583 = ssub.s32 256, 256
          %584 = vsyncadd %s527, %s583
          %s585 = smul.addr %s29, 2
          %s586 = smul.addr %s585, 128
          %s587 = scalar_lea.hbm %s8, %s586
          %s588 = sshll.u32 %s530, 4
          %s589 = int_to_ptr.vmem [resolvable:$true] %s588
          %594 = dma.vmem_to_hbm [thread:$0]  %s589, 256, %s587, %s527, 128, 128, 8
        $region56: #{model_forward.3} parent=39 // pred_fallthru
          _
      $region40: #{model_forward.3} parent=5 // pred_fallthru
        _
      %p595 = scmp.le.s32.totalorder 2, %s24
      // Predicated region
      $region57: #{model_forward.3} parent=5 // pred_check
        %p596 = pneg %p595
      $region58: #{model_forward.3} parent=5 // pred_check_branch
        %598 = sbr.rel (%p596) target = $region60
      $region59: #{model_forward.3} parent=5 // pred_region
        %s599 = ssub.s32 %s24, 2
        // Predicated region
        $region61: #{model_forward.3} parent=59 // pred_check
          %p600 = pneg %p173
        $region62: #{model_forward.3} parent=59 // pred_check_branch
          %602 = sbr.rel (%p600) target = $region64
        $region63: #{model_forward.3} parent=59 // pred_region
          %s603 = sand.u32 %s158, 1
          %s604 = scalar_lea.sflag [#allocation3], %s603
          %s605 = sand.u32 %s158, 1
          %s606 = smul.addr %s605, 16
          %s607 = scalar_lea.vmem [#allocation2], %s606
          %608 = dma.done %s604, 256
        $region64: #{model_forward.3} parent=59 // pred_fallthru
          _
        // Predicated region
        $region65: #{model_forward.3} parent=59 // pred_check
          %p609 = pneg %p199
        $region66: #{model_forward.3} parent=59 // pred_check_branch
          %611 = sbr.rel (%p609) target = $region68
        $region67: #{model_forward.3} parent=59 // pred_region
          %s612 = sand.u32 %s30, 1
          %s613 = scalar_lea.sflag [#allocation5], %s612
          %s614 = sand.u32 %s184, 1
          %s615 = smul.addr %s614, 16
          %s616 = scalar_lea.vmem [#allocation4], %s615
          %617 = dma.done %s613, 256
        $region68: #{model_forward.3} parent=59 // pred_fallthru
          _
        // Predicated region
        $region69: #{model_forward.3} parent=59 // pred_check
          %p618 = pneg %p225
        $region70: #{model_forward.3} parent=59 // pred_check_branch
          %620 = sbr.rel (%p618) target = $region72
        $region71: #{model_forward.3} parent=59 // pred_region
          %s621 = sand.u32 %s30, 1
          %s622 = scalar_lea.sflag [#allocation5], %s621
          %s623 = sand.u32 %s210, 1
          %s624 = smul.addr %s623, 16
          %s625 = scalar_lea.vmem [#allocation6], %s624
          %626 = dma.done %s622, 256
        $region72: #{model_forward.3} parent=59 // pred_fallthru
          _
        // Predicated region
        $region73: #{model_forward.3} parent=59 // pred_check
          %p627 = pneg %p251
        $region74: #{model_forward.3} parent=59 // pred_check_branch
          %629 = sbr.rel (%p627) target = $region76
        $region75: #{model_forward.3} parent=59 // pred_region
          %s630 = sand.u32 %s236, 1
          %s631 = scalar_lea.sflag [#allocation8], %s630
          %s632 = sand.u32 %s236, 1
          %s633 = smul.addr %s632, 16
          %s634 = scalar_lea.vmem [#allocation7], %s633
          %635 = dma.done %s631, 256
        $region76: #{model_forward.3} parent=59 // pred_fallthru
          _
      $region60: #{model_forward.3} parent=5 // pred_fallthru
        _
    $region6: #{model_forward.3} parent=1 // loop_footer
      %s28 = sadd.s32 1, %s24
    $region7: #{model_forward.3} parent=1 // loop_footer_branch
      %23 = sbr.rel target = $region3
    $region8: #{model_forward.3} parent=1 // loop_exit
      _
    %636 = vsyncpa [#allocation3], 1
    %s637 = scalar_lea.sflag [#allocation3], 1
    %638 = vsyncpa %s637, 1
    %639 = vsyncpa [#allocation5], 1
    %s640 = scalar_lea.sflag [#allocation5], 1
    %641 = vsyncpa %s640, 1
    %642 = vsyncpa [#allocation8], 1
    %s643 = scalar_lea.sflag [#allocation8], 1
    %644 = vsyncpa %s643, 1

// kernel: model_forward.2
$region0: #{model_forward.2}
  #allocation0 [shape = 'u32[]', space=smem, size = 0x4, offset = 0x4, fixed_abs, tag = 'smem constant byte address 0x4 - core index']
  #allocation1 [shape = 'u32[144,128]{1,0:T(1,128)}', space=vmem, size = 0x12000, scoped, tag = 'internal scratch']
  #allocation2 [shape = 'f32[1,1]{1,0:T(1,128)S(1)}', space=vmem, size = 0x200, scoped, tag = 'scoped memory for model_forward.2']
  %s0 = inlined_call_operand.vmem [shape: f32[2,256,9], index: 0, kind: input, shape index: {}]
  %s1 = inlined_call_operand.vmem [shape: bf16[9,128], index: 1, kind: input, shape index: {}]
  %s2 = inlined_call_operand.vmem [shape: f32[1,128], index: 2, kind: input, shape index: {}]
  %s3 = inlined_call_operand.vmem [shape: bf16[1152,128], index: 3, kind: input, shape index: {}]
  %s4 = inlined_call_operand.vmem [shape: f32[1,128], index: 4, kind: input, shape index: {}]
  %s5 = inlined_call_operand.vmem [shape: bf16[1152,128], index: 5, kind: input, shape index: {}]
  %s6 = inlined_call_operand.vmem [shape: f32[1,128], index: 6, kind: input, shape index: {}]
  %s7 = inlined_call_operand.vmem [shape: bf16[1152,1], index: 7, kind: input, shape index: {}]
  %s8 = inlined_call_operand.<no memory space> [shape: f32[1,1], index: 8, kind: input, shape index: {}]
  %s9 = inlined_call_operand.vmem [shape: f32[2,256,1], index: 9, kind: output, shape index: {}]
  %s10 = sld [smem:[#allocation0]]
  $region69: #{model_forward.2} parent=0
    _
  %s12 = ssub.s32 1, %s10
  %s13 = scalar_select 0, %s12, %s10
  %v14 = vstv %s8
  %15 = vst [vmem:[#allocation2] sm:$0x1] %v14
  loop: start=0, step=1, limit=4
  $region2: #{model_forward.2} parent=0 // loop_pre_header
    _
  $region3: #{model_forward.2} parent=0 // loop_header
    %s17 = sphi 0, %s21
    %p18 = scmp.ge.s32.totalorder %s17, 4
    %s27 = sphi 0, %s29
    %s30 = sphi 0, %s27
    %s31 = sphi 0, %s30
    %s47 = sphi 0, %s31
    %s51 = sphi 0, %s51
    %s53 = sphi 0, %s51
    %s54 = sphi 0, %s53
    %s68 = sphi 0, %s54
    %s72 = sphi 0, %s72
    %s74 = sphi 0, %s72
    %s75 = sphi 0, %s74
    %s89 = sphi 0, %s75
    %s93 = sphi 0, %s93
    %s95 = sphi 0, %s93
    %s96 = sphi 0, %s95
    %s110 = sphi 0, %s96
    %s114 = sphi 0, %s114
    %s116 = sphi 0, %s114
    %s117 = sphi 0, %s116
    %s131 = sphi 0, %s117
    %s135 = sphi 0, %s135
    %s137 = sphi 0, %s135
    %s138 = sphi 0, %s137
    %s152 = sphi 0, %s138
    %s156 = sphi 0, %s156
    %s158 = sphi 0, %s156
    %s159 = sphi 0, %s158
    %s173 = sphi 0, %s159
    %s177 = sphi 0, %s177
    %s179 = sphi 0, %s177
    %s180 = sphi 0, %s179
    %s194 = sphi 0, %s180
    %s198 = sphi 0, %s198
    %s200 = sphi 0, %s198
    %s201 = sphi 0, %s200
    %s215 = sphi 0, %s201
    %s221 = sphi 0, %s223
    %s224 = sphi 0, %s221
    %s225 = sphi 0, %s224
    %s241 = sphi 0, %s225
  $region4: #{model_forward.2} parent=0 // loop_header_branch
    %20 = sbr.rel (%p18) target = $region8
  $region5: #{model_forward.2} parent=0 // loop_body
    %s22 = ssub.s32 %s17, 1
    %s23 = ssub.s32 %s17, 2
    %s24 = sadd.s32 %s17, 1
    %s25 = ssub.s32 %s17, %s24
    %p26 = scmp.eq.s32.totalorder %s25, 0
    %s28 = sadd.s32 %s27, 1
    %s29 = scalar_select %p26, %s27, %s28
    %p32 = pneg %p26
    %p33 = scmp.eq.s32.totalorder %s17, 1
    %p34 = por %p32, %p33
    %p35 = scmp.ne.s32.totalorder %s27, %s30
    %p36 = scmp.eq.s32.totalorder %s17, 0
    %p37 = por %p35, %p36
    %p38 = scmp.ne.s32.totalorder %s27, %s30
    %p39 = scmp.eq.s32.totalorder %s22, 1
    %p40 = por %p38, %p39
    %p41 = scmp.ne.s32.totalorder %s30, %s31
    %p42 = scmp.eq.s32.totalorder %s22, 0
    %p43 = por %p41, %p42
    %p44 = scmp.ne.s32.totalorder %s30, %s31
    %p45 = scmp.eq.s32.totalorder %s23, 1
    %p46 = por %p44, %p45
    %p48 = scmp.ne.s32.totalorder %s31, %s47
    %p49 = scmp.eq.s32.totalorder %s23, 0
    %p50 = por %p48, %p49
    %s52 = sadd.s32 %s51, 1
    %p55 = scmp.eq.s32.totalorder %s17, 1
    %p56 = scmp.ne.s32.totalorder %s51, %s53
    %p57 = scmp.eq.s32.totalorder %s17, 0
    %p58 = por %p56, %p57
    %p59 = scmp.ne.s32.totalorder %s51, %s53
    %p60 = scmp.eq.s32.totalorder %s22, 1
    %p61 = por %p59, %p60
    %p62 = scmp.ne.s32.totalorder %s53, %s54
    %p63 = scmp.eq.s32.totalorder %s22, 0
    %p64 = por %p62, %p63
    %p65 = scmp.ne.s32.totalorder %s53, %s54
    %p66 = scmp.eq.s32.totalorder %s23, 1
    %p67 = por %p65, %p66
    %p69 = scmp.ne.s32.totalorder %s54, %s68
    %p70 = scmp.eq.s32.totalorder %s23, 0
    %p71 = por %p69, %p70
    %s73 = sadd.s32 %s72, 1
    %p76 = scmp.eq.s32.totalorder %s17, 1
    %p77 = scmp.ne.s32.totalorder %s72, %s74
    %p78 = scmp.eq.s32.totalorder %s17, 0
    %p79 = por %p77, %p78
    %p80 = scmp.ne.s32.totalorder %s72, %s74
    %p81 = scmp.eq.s32.totalorder %s22, 1
    %p82 = por %p80, %p81
    %p83 = scmp.ne.s32.totalorder %s74, %s75
    %p84 = scmp.eq.s32.totalorder %s22, 0
    %p85 = por %p83, %p84
    %p86 = scmp.ne.s32.totalorder %s74, %s75
    %p87 = scmp.eq.s32.totalorder %s23, 1
    %p88 = por %p86, %p87
    %p90 = scmp.ne.s32.totalorder %s75, %s89
    %p91 = scmp.eq.s32.totalorder %s23, 0
    %p92 = por %p90, %p91
    %s94 = sadd.s32 %s93, 1
    %p97 = scmp.eq.s32.totalorder %s17, 1
    %p98 = scmp.ne.s32.totalorder %s93, %s95
    %p99 = scmp.eq.s32.totalorder %s17, 0
    %p100 = por %p98, %p99
    %p101 = scmp.ne.s32.totalorder %s93, %s95
    %p102 = scmp.eq.s32.totalorder %s22, 1
    %p103 = por %p101, %p102
    %p104 = scmp.ne.s32.totalorder %s95, %s96
    %p105 = scmp.eq.s32.totalorder %s22, 0
    %p106 = por %p104, %p105
    %p107 = scmp.ne.s32.totalorder %s95, %s96
    %p108 = scmp.eq.s32.totalorder %s23, 1
    %p109 = por %p107, %p108
    %p111 = scmp.ne.s32.totalorder %s96, %s110
    %p112 = scmp.eq.s32.totalorder %s23, 0
    %p113 = por %p111, %p112
    %s115 = sadd.s32 %s114, 1
    %p118 = scmp.eq.s32.totalorder %s17, 1
    %p119 = scmp.ne.s32.totalorder %s114, %s116
    %p120 = scmp.eq.s32.totalorder %s17, 0
    %p121 = por %p119, %p120
    %p122 = scmp.ne.s32.totalorder %s114, %s116
    %p123 = scmp.eq.s32.totalorder %s22, 1
    %p124 = por %p122, %p123
    %p125 = scmp.ne.s32.totalorder %s116, %s117
    %p126 = scmp.eq.s32.totalorder %s22, 0
    %p127 = por %p125, %p126
    %p128 = scmp.ne.s32.totalorder %s116, %s117
    %p129 = scmp.eq.s32.totalorder %s23, 1
    %p130 = por %p128, %p129
    %p132 = scmp.ne.s32.totalorder %s117, %s131
    %p133 = scmp.eq.s32.totalorder %s23, 0
    %p134 = por %p132, %p133
    %s136 = sadd.s32 %s135, 1
    %p139 = scmp.eq.s32.totalorder %s17, 1
    %p140 = scmp.ne.s32.totalorder %s135, %s137
    %p141 = scmp.eq.s32.totalorder %s17, 0
    %p142 = por %p140, %p141
    %p143 = scmp.ne.s32.totalorder %s135, %s137
    %p144 = scmp.eq.s32.totalorder %s22, 1
    %p145 = por %p143, %p144
    %p146 = scmp.ne.s32.totalorder %s137, %s138
    %p147 = scmp.eq.s32.totalorder %s22, 0
    %p148 = por %p146, %p147
    %p149 = scmp.ne.s32.totalorder %s137, %s138
    %p150 = scmp.eq.s32.totalorder %s23, 1
    %p151 = por %p149, %p150
    %p153 = scmp.ne.s32.totalorder %s138, %s152
    %p154 = scmp.eq.s32.totalorder %s23, 0
    %p155 = por %p153, %p154
    %s157 = sadd.s32 %s156, 1
    %p160 = scmp.eq.s32.totalorder %s17, 1
    %p161 = scmp.ne.s32.totalorder %s156, %s158
    %p162 = scmp.eq.s32.totalorder %s17, 0
    %p163 = por %p161, %p162
    %p164 = scmp.ne.s32.totalorder %s156, %s158
    %p165 = scmp.eq.s32.totalorder %s22, 1
    %p166 = por %p164, %p165
    %p167 = scmp.ne.s32.totalorder %s158, %s159
    %p168 = scmp.eq.s32.totalorder %s22, 0
    %p169 = por %p167, %p168
    %p170 = scmp.ne.s32.totalorder %s158, %s159
    %p171 = scmp.eq.s32.totalorder %s23, 1
    %p172 = por %p170, %p171
    %p174 = scmp.ne.s32.totalorder %s159, %s173
    %p175 = scmp.eq.s32.totalorder %s23, 0
    %p176 = por %p174, %p175
    %s178 = sadd.s32 %s177, 1
    %p181 = scmp.eq.s32.totalorder %s17, 1
    %p182 = scmp.ne.s32.totalorder %s177, %s179
    %p183 = scmp.eq.s32.totalorder %s17, 0
    %p184 = por %p182, %p183
    %p185 = scmp.ne.s32.totalorder %s177, %s179
    %p186 = scmp.eq.s32.totalorder %s22, 1
    %p187 = por %p185, %p186
    %p188 = scmp.ne.s32.totalorder %s179, %s180
    %p189 = scmp.eq.s32.totalorder %s22, 0
    %p190 = por %p188, %p189
    %p191 = scmp.ne.s32.totalorder %s179, %s180
    %p192 = scmp.eq.s32.totalorder %s23, 1
    %p193 = por %p191, %p192
    %p195 = scmp.ne.s32.totalorder %s180, %s194
    %p196 = scmp.eq.s32.totalorder %s23, 0
    %p197 = por %p195, %p196
    %s199 = sadd.s32 %s198, 1
    %p202 = scmp.eq.s32.totalorder %s17, 1
    %p203 = scmp.ne.s32.totalorder %s198, %s200
    %p204 = scmp.eq.s32.totalorder %s17, 0
    %p205 = por %p203, %p204
    %p206 = scmp.ne.s32.totalorder %s198, %s200
    %p207 = scmp.eq.s32.totalorder %s22, 1
    %p208 = por %p206, %p207
    %p209 = scmp.ne.s32.totalorder %s200, %s201
    %p210 = scmp.eq.s32.totalorder %s22, 0
    %p211 = por %p209, %p210
    %p212 = scmp.ne.s32.totalorder %s200, %s201
    %p213 = scmp.eq.s32.totalorder %s23, 1
    %p214 = por %p212, %p213
    %p216 = scmp.ne.s32.totalorder %s201, %s215
    %p217 = scmp.eq.s32.totalorder %s23, 0
    %p218 = por %p216, %p217
    %s219 = ssub.s32 %s17, %s24
    %p220 = scmp.eq.s32.totalorder %s219, 0
    %s222 = sadd.s32 %s221, 1
    %s223 = scalar_select %p220, %s221, %s222
    %p226 = pneg %p220
    %p227 = scmp.eq.s32.totalorder %s17, 1
    %p228 = por %p226, %p227
    %p229 = scmp.ne.s32.totalorder %s221, %s224
    %p230 = scmp.eq.s32.totalorder %s17, 0
    %p231 = por %p229, %p230
    %p232 = scmp.ne.s32.totalorder %s221, %s224
    %p233 = scmp.eq.s32.totalorder %s22, 1
    %p234 = por %p232, %p233
    %p235 = scmp.ne.s32.totalorder %s224, %s225
    %p236 = scmp.eq.s32.totalorder %s22, 0
    %p237 = por %p235, %p236
    %p238 = scmp.ne.s32.totalorder %s224, %s225
    %p239 = scmp.eq.s32.totalorder %s23, 1
    %p240 = por %p238, %p239
    %p242 = scmp.ne.s32.totalorder %s225, %s241
    %p243 = scmp.eq.s32.totalorder %s23, 0
    %p244 = por %p242, %p243
    %p245 = scmp.le.s32.totalorder 1, %s17
    %p246 = scmp.lt.s32.totalorder %s17, 3
    %p247 = pnand %p245, %p246
    %p248 = pneg %p247
    // Predicated region
    $region9: #{model_forward.2} parent=5 // pred_check
      _
    $region10: #{model_forward.2} parent=5 // pred_check_branch
      %250 = sbr.rel (%p247) target = $region12
    $region11: #{model_forward.2} parent=5 // pred_region
      %s251 = ssub.s32 %s17, 1
      // Predicated region
      $region13: #{model_forward.2} parent=11 // pred_check
        %p252 = pneg %p64
      $region14: #{model_forward.2} parent=11 // pred_check_branch
        %254 = sbr.rel (%p252) target = $region16
      $region15: #{model_forward.2} parent=11 // pred_region
        _
      $region16: #{model_forward.2} parent=11 // pred_fallthru
        _
      // Predicated region
      $region17: #{model_forward.2} parent=11 // pred_check
        %p255 = pneg %p85
      $region18: #{model_forward.2} parent=11 // pred_check_branch
        %257 = sbr.rel (%p255) target = $region20
      $region19: #{model_forward.2} parent=11 // pred_region
        _
      $region20: #{model_forward.2} parent=11 // pred_fallthru
        _
      // Predicated region
      $region21: #{model_forward.2} parent=11 // pred_check
        %p258 = pneg %p106
      $region22: #{model_forward.2} parent=11 // pred_check_branch
        %260 = sbr.rel (%p258) target = $region24
      $region23: #{model_forward.2} parent=11 // pred_region
        _
      $region24: #{model_forward.2} parent=11 // pred_fallthru
        _
      // Predicated region
      $region25: #{model_forward.2} parent=11 // pred_check
        %p261 = pneg %p127
      $region26: #{model_forward.2} parent=11 // pred_check_branch
        %263 = sbr.rel (%p261) target = $region28
      $region27: #{model_forward.2} parent=11 // pred_region
        _
      $region28: #{model_forward.2} parent=11 // pred_fallthru
        _
      // Predicated region
      $region29: #{model_forward.2} parent=11 // pred_check
        %p264 = pneg %p148
      $region30: #{model_forward.2} parent=11 // pred_check_branch
        %266 = sbr.rel (%p264) target = $region32
      $region31: #{model_forward.2} parent=11 // pred_region
        _
      $region32: #{model_forward.2} parent=11 // pred_fallthru
        _
      // Predicated region
      $region33: #{model_forward.2} parent=11 // pred_check
        %p267 = pneg %p169
      $region34: #{model_forward.2} parent=11 // pred_check_branch
        %269 = sbr.rel (%p267) target = $region36
      $region35: #{model_forward.2} parent=11 // pred_region
        _
      $region36: #{model_forward.2} parent=11 // pred_fallthru
        _
      // Predicated region
      $region37: #{model_forward.2} parent=11 // pred_check
        %p270 = pneg %p190
      $region38: #{model_forward.2} parent=11 // pred_check_branch
        %272 = sbr.rel (%p270) target = $region40
      $region39: #{model_forward.2} parent=11 // pred_region
        _
      $region40: #{model_forward.2} parent=11 // pred_fallthru
        _
      // Predicated region
      $region41: #{model_forward.2} parent=11 // pred_check
        %p273 = pneg %p211
      $region42: #{model_forward.2} parent=11 // pred_check_branch
        %275 = sbr.rel (%p273) target = $region44
      $region43: #{model_forward.2} parent=11 // pred_region
        _
      $region44: #{model_forward.2} parent=11 // pred_fallthru
        _
    $region12: #{model_forward.2} parent=5 // pred_fallthru
      _
    %p276 = scmp.lt.s32.totalorder %s17, 2
    // Predicated region
    $region45: #{model_forward.2} parent=5 // pred_check
      %p277 = pneg %p276
    $region46: #{model_forward.2} parent=5 // pred_check_branch
      %279 = sbr.rel (%p277) target = $region48
    $region47: #{model_forward.2} parent=5 // pred_region
      // Predicated region
      $region49: #{model_forward.2} parent=47 // pred_check
        %p280 = pneg %p37
      $region50: #{model_forward.2} parent=47 // pred_check_branch
        %282 = sbr.rel (%p280) target = $region52
      $region51: #{model_forward.2} parent=47 // pred_region
        %p283 = scmp.lt.s32.totalorder %s17, 1
        %s284 = scalar_select %p283, %s17, 1
        %s285 = smul.addr %s284, 32
        %s286 = smul.addr %s285, 8
        %s287 = scalar_lea.vmem %s0, %s286
      $region52: #{model_forward.2} parent=47 // pred_fallthru
        _
    $region48: #{model_forward.2} parent=5 // pred_fallthru
      _
    %p288 = scmp.le.s32.totalorder 1, %s17
    %p289 = scmp.lt.s32.totalorder %s17, 3
    %p290 = pnand %p288, %p289
    %p291 = pneg %p290
    // Predicated region
    $region53: #{model_forward.2} parent=5 // pred_check
      _
    $region54: #{model_forward.2} parent=5 // pred_check_branch
      %293 = sbr.rel (%p290) target = $region56
    $region55: #{model_forward.2} parent=5 // pred_region
      %s294 = ssub.s32 %s17, 1
      %p295 = scmp.lt.s32.totalorder %s22, 1
      %s296 = scalar_select %p295, %s22, 1
      %s297 = smul.addr %s296, 32
      %s298 = smul.addr %s297, 8
      %s299 = scalar_lea.vmem %s0, %s298
      %p300 = pneg %p43
      %p301 = pneg %p40
      %p302 = pneg %p64
      %p303 = pneg %p61
      %p304 = pneg %p85
      %p305 = pneg %p82
      %p306 = pneg %p106
      %p307 = pneg %p103
      %p308 = pneg %p127
      %p309 = pneg %p124
      %p310 = pneg %p148
      %p311 = pneg %p145
      %p312 = pneg %p169
      %p313 = pneg %p166
      %p314 = pneg %p190
      %p315 = pneg %p187
      %p316 = pneg %p211
      %p317 = pneg %p208
      %p318 = pneg %p237
      %p319 = pneg %p234
      %p320 = scmp.lt.s32.totalorder %s22, 1
      %s321 = scalar_select %p320, %s22, 1
      %s322 = smul.addr %s321, 32
      %s323 = smul.addr %s322, 8
      %s324 = scalar_lea.vmem %s9, %s323
      %p325 = scmp.lt.s32.totalorder %s22, 1
      %s326 = scalar_select %p325, %s22, 1
      %s327 = smul.addr %s326, 32
      %s328 = smul.addr %s327, 8
      %s329 = scalar_lea.vmem %s0, %s328
      %p330 = scmp.lt.s32.totalorder %s22, 1
      %s331 = scalar_select %p330, %s22, 1
      %s332 = smul.addr %s331, 32
      %s333 = smul.addr %s332, 8
      %s334 = scalar_lea.vmem %s9, %s333
      %v336 = vld [vmem:[%s329] sm:$0xff]
      %v337 = vld [vmem:[%s329 + $0x8] sm:$0xff]
      %v338 = vld [vmem:[%s329 + $0x10] sm:$0xff]
      %v339 = vld [vmem:[%s329 + $0x18] sm:$0xff]
      %v340 = vld [vmem:[%s329 + $0x20] sm:$0xff]
      %v341 = vld [vmem:[%s329 + $0x28] sm:$0xff]
      %v342 = vld [vmem:[%s329 + $0x30] sm:$0xff]
      %v343 = vld [vmem:[%s329 + $0x38] sm:$0xff]
      %v344 = vld [vmem:[%s329 + $0x40] sm:$0xff]
      %v345 = vld [vmem:[%s329 + $0x48] sm:$0xff]
      %v346 = vld [vmem:[%s329 + $0x50] sm:$0xff]
      %v347 = vld [vmem:[%s329 + $0x58] sm:$0xff]
      %v348 = vld [vmem:[%s329 + $0x60] sm:$0xff]
      %v349 = vld [vmem:[%s329 + $0x68] sm:$0xff]
      %v350 = vld [vmem:[%s329 + $0x70] sm:$0xff]
      %v351 = vld [vmem:[%s329 + $0x78] sm:$0xff]
      %v352 = vld [vmem:[%s329 + $0x80] sm:$0xff]
      %v353 = vld [vmem:[%s329 + $0x88] sm:$0xff]
      %v354 = vld [vmem:[%s329 + $0x90] sm:$0xff]
      %v355 = vld [vmem:[%s329 + $0x98] sm:$0xff]
      %v356 = vld [vmem:[%s329 + $0xa0] sm:$0xff]
      %v357 = vld [vmem:[%s329 + $0xa8] sm:$0xff]
      %v358 = vld [vmem:[%s329 + $0xb0] sm:$0xff]
      %v359 = vld [vmem:[%s329 + $0xb8] sm:$0xff]
      %v360 = vld [vmem:[%s329 + $0xc0] sm:$0xff]
      %v361 = vld [vmem:[%s329 + $0xc8] sm:$0xff]
      %v362 = vld [vmem:[%s329 + $0xd0] sm:$0xff]
      %v363 = vld [vmem:[%s329 + $0xd8] sm:$0xff]
      %v364 = vld [vmem:[%s329 + $0xe0] sm:$0xff]
      %v365 = vld [vmem:[%s329 + $0xe8] sm:$0xff]
      %v366 = vld [vmem:[%s329 + $0xf0] sm:$0xff]
      %v367 = vld [vmem:[%s329 + $0xf8] sm:$0xff]
      %v368 = vpack.c.bf16 %v337, %v336
      %v369 = vpack.c.bf16 %v339, %v338
      %v370 = vpack.c.bf16 %v341, %v340
      %v371 = vpack.c.bf16 %v343, %v342
      %v372 = vpack.c.bf16 %v345, %v344
      %v373 = vpack.c.bf16 %v347, %v346
      %v374 = vpack.c.bf16 %v349, %v348
      %v375 = vpack.c.bf16 %v351, %v350
      %v376 = vpack.c.bf16 %v353, %v352
      %v377 = vpack.c.bf16 %v355, %v354
      %v378 = vpack.c.bf16 %v357, %v356
      %v379 = vpack.c.bf16 %v359, %v358
      %v380 = vpack.c.bf16 %v361, %v360
      %v381 = vpack.c.bf16 %v363, %v362
      %v382 = vpack.c.bf16 %v365, %v364
      %v383 = vpack.c.bf16 %v367, %v366
      %v384 = vld [vmem:[%s1] sm:$0xf]
      %v385 = vld [vmem:[%s1 + $0x4] sm:$0x1]
      %v386 = vld [vmem:[%s2] sm:$0x1]
      %v388 = vlaneseq
      %v389 = vshrl.u32 %v388, 7
      %v390 = vsub.s32 0, %v389
      %v391 = vrot.slane %v386, %v390
      %v395 = vunpack.c.l.b16 %v384
      %v396 = vunpack.c.l.b16 %v385
      %v397 = vpack.c.b16 %v396, %v395
      %vm398 = vcmask 72704
      %v400 = vsel %vm398, %v368, 0
      %v403 = vsel %vm398, %v369, 0
      %v406 = vsel %vm398, %v370, 0
      %v409 = vsel %vm398, %v371, 0
      %v412 = vsel %vm398, %v372, 0
      %v415 = vsel %vm398, %v373, 0
      %v418 = vsel %vm398, %v374, 0
      %v421 = vsel %vm398, %v375, 0
      %v424 = vsel %vm398, %v376, 0
      %v427 = vsel %vm398, %v377, 0
      %v430 = vsel %vm398, %v378, 0
      %v433 = vsel %vm398, %v379, 0
      %v436 = vsel %vm398, %v380, 0
      %v439 = vsel %vm398, %v381, 0
      %v442 = vsel %vm398, %v382, 0
      %v445 = vsel %vm398, %v383, 0
      %vm447 = vcmask 1043456
      %vm448 = vcmask 1044480
      %v449 = vsel %vm447, 4294967295, 65535
      %v450 = vsel %vm448, %v449, 0
      %v452 = vand.u32 %v397, %v450
      %454 = vmatprep.subr.bf16.mxu0 0
      %455 = vmatpush1.bf16.msra.mxu0 0
      %456 = vmatprep.subr.bf16.mxu0 0
      %457 = vmatpush1.bf16.msra.mxu0 0
      %458 = vmatprep.subr.bf16.mxu0 0
      %459 = vmatpush1.bf16.msra.mxu0 0
      %460 = vmatprep.subr.bf16.mxu0 0
      %461 = vmatpush1.bf16.msra.mxu0 0
      %462 = vmatprep.subr.bf16.mxu0 0
      %463 = vmatpush1.bf16.msra.mxu0 0
      %464 = vmatprep.subr.bf16.mxu0 0
      %465 = vmatpush1.bf16.msra.mxu0 0
      %466 = vmatprep.subr.bf16.mxu0 0
      %467 = vmatpush1.bf16.msra.mxu0 0
      %468 = vmatprep.subr.bf16.mxu0 0
      %469 = vmatpush1.bf16.msra.mxu0 %v452
      %470 = vmatprep.subr.bf16.mxu0 0
      %471 = vmatpush2.bf16.msra.mxu0 0
      %472 = vmatprep.subr.bf16.mxu0 0
      %473 = vmatpush2.bf16.msra.mxu0 0
      %474 = vmatprep.subr.bf16.mxu0 0
      %475 = vmatpush2.bf16.msra.mxu0 0
      %476 = vmatprep.subr.bf16.mxu0 0
      %477 = vmatpush2.bf16.msra.mxu0 0
      %478 = vmatprep.subr.bf16.mxu0 0
      %479 = vmatpush2.bf16.msra.mxu0 0
      %480 = vmatprep.subr.bf16.mxu0 0
      %481 = vmatpush2.bf16.msra.mxu0 0
      %482 = vmatprep.subr.bf16.mxu0 0
      %483 = vmatpush2.bf16.msra.mxu0 0
      %484 = vmatprep.subr.bf16.mxu0 0
      %485 = vmatpush2.bf16.msra.mxu0 0
      %486 = vmatprep.mubr.bf16.mxu0 0
      %487 = vmatmul.mubr.bf16.gmra.mxu0 %v400
      %v488 = vpop.f32.mrf.mxu0
      %v489 = vadd.f32 %v391, %v488
      %v490 = vpop.f32.mrf.mxu0
      %v491 = vpop.f32.mrf.mxu0
      %v492 = vadd.f32 %v391, %v491
      %v493 = vpop.f32.mrf.mxu0
      %494 = vmatprep.mubr.bf16.mxu0 0
      %495 = vmatmul.mubr.bf16.gmra.mxu0 %v403
      %v496 = vpop.f32.mrf.mxu0
      %v497 = vadd.f32 %v391, %v496
      %v498 = vpop.f32.mrf.mxu0
      %v499 = vpop.f32.mrf.mxu0
      %v500 = vadd.f32 %v391, %v499
      %v501 = vpop.f32.mrf.mxu0
      %502 = vmatprep.mubr.bf16.mxu0 0
      %503 = vmatmul.mubr.bf16.gmra.mxu0 %v406
      %v504 = vpop.f32.mrf.mxu0
      %v505 = vadd.f32 %v391, %v504
      %v506 = vpop.f32.mrf.mxu0
      %v507 = vpop.f32.mrf.mxu0
      %v508 = vadd.f32 %v391, %v507
      %v509 = vpop.f32.mrf.mxu0
      %510 = vmatprep.mubr.bf16.mxu0 0
      %511 = vmatmul.mubr.bf16.gmra.mxu0 %v409
      %v512 = vpop.f32.mrf.mxu0
      %v513 = vadd.f32 %v391, %v512
      %v514 = vpop.f32.mrf.mxu0
      %v515 = vpop.f32.mrf.mxu0
      %v516 = vadd.f32 %v391, %v515
      %v517 = vpop.f32.mrf.mxu0
      %518 = vmatprep.mubr.bf16.mxu0 0
      %519 = vmatmul.mubr.bf16.gmra.mxu0 %v412
      %v520 = vpop.f32.mrf.mxu0
      %v521 = vadd.f32 %v391, %v520
      %v522 = vpop.f32.mrf.mxu0
      %v523 = vpop.f32.mrf.mxu0
      %v524 = vadd.f32 %v391, %v523
      %v525 = vpop.f32.mrf.mxu0
      %526 = vmatprep.mubr.bf16.mxu0 0
      %527 = vmatmul.mubr.bf16.gmra.mxu0 %v415
      %v528 = vpop.f32.mrf.mxu0
      %v529 = vadd.f32 %v391, %v528
      %v530 = vpop.f32.mrf.mxu0
      %v531 = vpop.f32.mrf.mxu0
      %v532 = vadd.f32 %v391, %v531
      %v533 = vpop.f32.mrf.mxu0
      %534 = vmatprep.mubr.bf16.mxu0 0
      %535 = vmatmul.mubr.bf16.gmra.mxu0 %v418
      %v536 = vpop.f32.mrf.mxu0
      %v537 = vadd.f32 %v391, %v536
      %v538 = vpop.f32.mrf.mxu0
      %v539 = vpop.f32.mrf.mxu0
      %v540 = vadd.f32 %v391, %v539
      %v541 = vpop.f32.mrf.mxu0
      %542 = vmatprep.mubr.bf16.mxu0 0
      %543 = vmatmul.mubr.bf16.gmra.mxu0 %v421
      %v544 = vpop.f32.mrf.mxu0
      %v545 = vadd.f32 %v391, %v544
      %v546 = vpop.f32.mrf.mxu0
      %v547 = vpop.f32.mrf.mxu0
      %v548 = vadd.f32 %v391, %v547
      %v549 = vpop.f32.mrf.mxu0
      %550 = vmatprep.mubr.bf16.mxu0 0
      %551 = vmatmul.mubr.bf16.gmra.mxu0 %v424
      %v552 = vpop.f32.mrf.mxu0
      %v553 = vadd.f32 %v391, %v552
      %v554 = vpop.f32.mrf.mxu0
      %v555 = vpop.f32.mrf.mxu0
      %v556 = vadd.f32 %v391, %v555
      %v557 = vpop.f32.mrf.mxu0
      %558 = vmatprep.mubr.bf16.mxu0 0
      %559 = vmatmul.mubr.bf16.gmra.mxu0 %v427
      %v560 = vpop.f32.mrf.mxu0
      %v561 = vadd.f32 %v391, %v560
      %v562 = vpop.f32.mrf.mxu0
      %v563 = vpop.f32.mrf.mxu0
      %v564 = vadd.f32 %v391, %v563
      %v565 = vpop.f32.mrf.mxu0
      %566 = vmatprep.mubr.bf16.mxu0 0
      %567 = vmatmul.mubr.bf16.gmra.mxu0 %v430
      %v568 = vpop.f32.mrf.mxu0
      %v569 = vadd.f32 %v391, %v568
      %v570 = vpop.f32.mrf.mxu0
      %v571 = vpop.f32.mrf.mxu0
      %v572 = vadd.f32 %v391, %v571
      %v573 = vpop.f32.mrf.mxu0
      %574 = vmatprep.mubr.bf16.mxu0 0
      %575 = vmatmul.mubr.bf16.gmra.mxu0 %v433
      %v576 = vpop.f32.mrf.mxu0
      %v577 = vadd.f32 %v391, %v576
      %v578 = vpop.f32.mrf.mxu0
      %v579 = vpop.f32.mrf.mxu0
      %v580 = vadd.f32 %v391, %v579
      %v581 = vpop.f32.mrf.mxu0
      %582 = vmatprep.mubr.bf16.mxu0 0
      %583 = vmatmul.mubr.bf16.gmra.mxu0 %v436
      %v584 = vpop.f32.mrf.mxu0
      %v585 = vadd.f32 %v391, %v584
      %v586 = vpop.f32.mrf.mxu0
      %v587 = vpop.f32.mrf.mxu0
      %v588 = vadd.f32 %v391, %v587
      %v589 = vpop.f32.mrf.mxu0
      %590 = vmatprep.mubr.bf16.mxu0 0
      %591 = vmatmul.mubr.bf16.gmra.mxu0 %v439
      %v592 = vpop.f32.mrf.mxu0
      %v593 = vadd.f32 %v391, %v592
      %v594 = vpop.f32.mrf.mxu0
      %v595 = vpop.f32.mrf.mxu0
      %v596 = vadd.f32 %v391, %v595
      %v597 = vpop.f32.mrf.mxu0
      %598 = vmatprep.mubr.bf16.mxu0 0
      %599 = vmatmul.mubr.bf16.gmra.mxu0 %v442
      %v600 = vpop.f32.mrf.mxu0
      %v601 = vadd.f32 %v391, %v600
      %v602 = vpop.f32.mrf.mxu0
      %v603 = vpop.f32.mrf.mxu0
      %v604 = vadd.f32 %v391, %v603
      %v605 = vpop.f32.mrf.mxu0
      %606 = vmatprep.mubr.bf16.mxu0 0
      %607 = vmatmul.mubr.bf16.gmra.mxu0 %v445
      %v608 = vpop.f32.mrf.mxu0
      %v609 = vadd.f32 %v391, %v608
      %v610 = vpop.f32.mrf.mxu0
      %v611 = vpop.f32.mrf.mxu0
      %v612 = vadd.f32 %v391, %v611
      %v613 = vpop.f32.mrf.mxu0
      %614 = vdwg.mxu0
      %v615 = vmax.f32 %v489, 0.0
      %v616 = vmax.f32 %v492, 0.0
      %v617 = vmax.f32 %v497, 0.0
      %v618 = vmax.f32 %v500, 0.0
      %v619 = vmax.f32 %v505, 0.0
      %v620 = vmax.f32 %v508, 0.0
      %v621 = vmax.f32 %v513, 0.0
      %v622 = vmax.f32 %v516, 0.0
      %v623 = vmax.f32 %v521, 0.0
      %v624 = vmax.f32 %v524, 0.0
      %v625 = vmax.f32 %v529, 0.0
      %v626 = vmax.f32 %v532, 0.0
      %v627 = vmax.f32 %v537, 0.0
      %v628 = vmax.f32 %v540, 0.0
      %v629 = vmax.f32 %v545, 0.0
      %v630 = vmax.f32 %v548, 0.0
      %v631 = vmax.f32 %v553, 0.0
      %v632 = vmax.f32 %v556, 0.0
      %v633 = vmax.f32 %v561, 0.0
      %v634 = vmax.f32 %v564, 0.0
      %v635 = vmax.f32 %v569, 0.0
      %v636 = vmax.f32 %v572, 0.0
      %v637 = vmax.f32 %v577, 0.0
      %v638 = vmax.f32 %v580, 0.0
      %v639 = vmax.f32 %v585, 0.0
      %v640 = vmax.f32 %v588, 0.0
      %v641 = vmax.f32 %v593, 0.0
      %v642 = vmax.f32 %v596, 0.0
      %v643 = vmax.f32 %v601, 0.0
      %v644 = vmax.f32 %v604, 0.0
      %v645 = vmax.f32 %v609, 0.0
      %v646 = vmax.f32 %v612, 0.0
      %vm678 = vcmask 1040384
      %v679 = vrot.slane 0.0, 7
      %v680 = vsel %vm678, %v679, %v679
      %v681 = vrot.slane %v615, 7
      %v682 = vsel %vm678, %v679, %v681
      %v683 = vrot.slane %v616, 7
      %v684 = vsel %vm678, %v681, %v683
      %v685 = vrot.slane %v617, 7
      %v686 = vsel %vm678, %v679, %v685
      %v687 = vrot.slane %v618, 7
      %v688 = vsel %vm678, %v685, %v687
      %v689 = vrot.slane %v619, 7
      %v690 = vsel %vm678, %v679, %v689
      %v691 = vrot.slane %v620, 7
      %v692 = vsel %vm678, %v689, %v691
      %v693 = vrot.slane %v621, 7
      %v694 = vsel %vm678, %v679, %v693
      %v695 = vrot.slane %v622, 7
      %v696 = vsel %vm678, %v693, %v695
      %v697 = vrot.slane %v623, 7
      %v698 = vsel %vm678, %v679, %v697
      %v699 = vrot.slane %v624, 7
      %v700 = vsel %vm678, %v697, %v699
      %v701 = vrot.slane %v625, 7
      %v702 = vsel %vm678, %v679, %v701
      %v703 = vrot.slane %v626, 7
      %v704 = vsel %vm678, %v701, %v703
      %v705 = vrot.slane %v627, 7
      %v706 = vsel %vm678, %v679, %v705
      %v707 = vrot.slane %v628, 7
      %v708 = vsel %vm678, %v705, %v707
      %v709 = vrot.slane %v629, 7
      %v710 = vsel %vm678, %v679, %v709
      %v711 = vrot.slane %v630, 7
      %v712 = vsel %vm678, %v709, %v711
      %v713 = vrot.slane %v631, 7
      %v714 = vsel %vm678, %v679, %v713
      %v715 = vrot.slane %v632, 7
      %v716 = vsel %vm678, %v713, %v715
      %v717 = vrot.slane %v633, 7
      %v718 = vsel %vm678, %v679, %v717
      %v719 = vrot.slane %v634, 7
      %v720 = vsel %vm678, %v717, %v719
      %v721 = vrot.slane %v635, 7
      %v722 = vsel %vm678, %v679, %v721
      %v723 = vrot.slane %v636, 7
      %v724 = vsel %vm678, %v721, %v723
      %v725 = vrot.slane %v637, 7
      %v726 = vsel %vm678, %v679, %v725
      %v727 = vrot.slane %v638, 7
      %v728 = vsel %vm678, %v725, %v727
      %v729 = vrot.slane %v639, 7
      %v730 = vsel %vm678, %v679, %v729
      %v731 = vrot.slane %v640, 7
      %v732 = vsel %vm678, %v729, %v731
      %v733 = vrot.slane %v641, 7
      %v734 = vsel %vm678, %v679, %v733
      %v735 = vrot.slane %v642, 7
      %v736 = vsel %vm678, %v733, %v735
      %v737 = vrot.slane %v643, 7
      %v738 = vsel %vm678, %v679, %v737
      %v739 = vrot.slane %v644, 7
      %v740 = vsel %vm678, %v737, %v739
      %vm772 = vcmask 1046528
      %v773 = vrot.slane 0.0, 1
      %v774 = vsel %vm772, %v773, %v773
      %v775 = vrot.slane %v615, 1
      %v776 = vrot.slane %v616, 1
      %v777 = vsel %vm772, %v775, %v776
      %v778 = vsel %vm772, %v776, %v773
      %v779 = vrot.slane %v617, 1
      %v780 = vrot.slane %v618, 1
      %v781 = vsel %vm772, %v779, %v780
      %v782 = vsel %vm772, %v780, %v773
      %v783 = vrot.slane %v619, 1
      %v784 = vrot.slane %v620, 1
      %v785 = vsel %vm772, %v783, %v784
      %v786 = vsel %vm772, %v784, %v773
      %v787 = vrot.slane %v621, 1
      %v788 = vrot.slane %v622, 1
      %v789 = vsel %vm772, %v787, %v788
      %v790 = vsel %vm772, %v788, %v773
      %v791 = vrot.slane %v623, 1
      %v792 = vrot.slane %v624, 1
      %v793 = vsel %vm772, %v791, %v792
      %v794 = vsel %vm772, %v792, %v773
      %v795 = vrot.slane %v625, 1
      %v796 = vrot.slane %v626, 1
      %v797 = vsel %vm772, %v795, %v796
      %v798 = vsel %vm772, %v796, %v773
      %v799 = vrot.slane %v627, 1
      %v800 = vrot.slane %v628, 1
      %v801 = vsel %vm772, %v799, %v800
      %v802 = vsel %vm772, %v800, %v773
      %v803 = vrot.slane %v629, 1
      %v804 = vrot.slane %v630, 1
      %v805 = vsel %vm772, %v803, %v804
      %v806 = vsel %vm772, %v804, %v773
      %v807 = vrot.slane %v631, 1
      %v808 = vrot.slane %v632, 1
      %v809 = vsel %vm772, %v807, %v808
      %v810 = vsel %vm772, %v808, %v773
      %v811 = vrot.slane %v633, 1
      %v812 = vrot.slane %v634, 1
      %v813 = vsel %vm772, %v811, %v812
      %v814 = vsel %vm772, %v812, %v773
      %v815 = vrot.slane %v635, 1
      %v816 = vrot.slane %v636, 1
      %v817 = vsel %vm772, %v815, %v816
      %v818 = vsel %vm772, %v816, %v773
      %v819 = vrot.slane %v637, 1
      %v820 = vrot.slane %v638, 1
      %v821 = vsel %vm772, %v819, %v820
      %v822 = vsel %vm772, %v820, %v773
      %v823 = vrot.slane %v639, 1
      %v824 = vrot.slane %v640, 1
      %v825 = vsel %vm772, %v823, %v824
      %v826 = vsel %vm772, %v824, %v773
      %v827 = vrot.slane %v641, 1
      %v828 = vrot.slane %v642, 1
      %v829 = vsel %vm772, %v827, %v828
      %v830 = vsel %vm772, %v828, %v773
      %v831 = vrot.slane %v643, 1
      %v832 = vrot.slane %v644, 1
      %v833 = vsel %vm772, %v831, %v832
      %v834 = vsel %vm772, %v832, %v773
      %v868 = vrot.slane %v645, 7
      %v869 = vsel %vm678, %v679, %v868
      %v870 = vrot.slane %v646, 7
      %v871 = vsel %vm678, %v868, %v870
      %v874 = vrot.slane %v645, 1
      %v875 = vrot.slane %v646, 1
      %v876 = vsel %vm772, %v874, %v875
      %v877 = vsel %vm772, %v875, %v773
      %v880 = vpack.c.bf16 %v680, %v680
      %v881 = vpack.c.bf16 0.0, 0.0
      %v882 = vpack.c.bf16 %v774, %v774
      %v883 = vpack.c.bf16 %v684, %v682
      %v884 = vpack.c.bf16 %v616, %v615
      %v885 = vpack.c.bf16 %v778, %v777
      %v886 = vpack.c.bf16 %v688, %v686
      %v887 = vpack.c.bf16 %v618, %v617
      %v888 = vpack.c.bf16 %v782, %v781
      %v889 = vpack.c.bf16 %v692, %v690
      %v890 = vpack.c.bf16 %v620, %v619
      %v891 = vpack.c.bf16 %v786, %v785
      %v892 = vpack.c.bf16 %v696, %v694
      %v893 = vpack.c.bf16 %v622, %v621
      %v894 = vpack.c.bf16 %v790, %v789
      %v895 = vpack.c.bf16 %v700, %v698
      %v896 = vpack.c.bf16 %v624, %v623
      %v897 = vpack.c.bf16 %v794, %v793
      %v898 = vpack.c.bf16 %v704, %v702
      %v899 = vpack.c.bf16 %v626, %v625
      %v900 = vpack.c.bf16 %v798, %v797
      %v901 = vpack.c.bf16 %v708, %v706
      %v902 = vpack.c.bf16 %v628, %v627
      %v903 = vpack.c.bf16 %v802, %v801
      %v904 = vpack.c.bf16 %v712, %v710
      %v905 = vpack.c.bf16 %v630, %v629
      %v906 = vpack.c.bf16 %v806, %v805
      %v907 = vpack.c.bf16 %v716, %v714
      %v908 = vpack.c.bf16 %v632, %v631
      %v909 = vpack.c.bf16 %v810, %v809
      %v910 = vpack.c.bf16 %v720, %v718
      %v911 = vpack.c.bf16 %v634, %v633
      %v912 = vpack.c.bf16 %v814, %v813
      %v913 = vpack.c.bf16 %v724, %v722
      %v914 = vpack.c.bf16 %v636, %v635
      %v915 = vpack.c.bf16 %v818, %v817
      %v916 = vpack.c.bf16 %v728, %v726
      %v917 = vpack.c.bf16 %v638, %v637
      %v918 = vpack.c.bf16 %v822, %v821
      %v919 = vpack.c.bf16 %v732, %v730
      %v920 = vpack.c.bf16 %v640, %v639
      %v921 = vpack.c.bf16 %v826, %v825
      %v922 = vpack.c.bf16 %v736, %v734
      %v923 = vpack.c.bf16 %v642, %v641
      %v924 = vpack.c.bf16 %v830, %v829
      %v925 = vpack.c.bf16 %v740, %v738
      %v926 = vpack.c.bf16 %v644, %v643
      %v927 = vpack.c.bf16 %v834, %v833
      %v928 = vpack.c.bf16 %v871, %v869
      %v929 = vpack.c.bf16 %v646, %v645
      %v930 = vpack.c.bf16 %v877, %v876
      %v931 = vld [vmem:[%s3] sm:$0xf]
      %v932 = vld [vmem:[%s3 + $0x4] sm:$0xf]
      %v933 = vld [vmem:[%s3 + $0x8] sm:$0xf]
      %v934 = vld [vmem:[%s3 + $0xc] sm:$0xf]
      %v935 = vld [vmem:[%s3 + $0x10] sm:$0xf]
      %v936 = vld [vmem:[%s3 + $0x14] sm:$0xf]
      %v937 = vld [vmem:[%s3 + $0x18] sm:$0xf]
      %v938 = vld [vmem:[%s3 + $0x1c] sm:$0xf]
      %v939 = vld [vmem:[%s3 + $0x20] sm:$0xf]
      %v940 = vld [vmem:[%s3 + $0x24] sm:$0xf]
      %v941 = vld [vmem:[%s3 + $0x28] sm:$0xf]
      %v942 = vld [vmem:[%s3 + $0x2c] sm:$0xf]
      %v943 = vld [vmem:[%s3 + $0x30] sm:$0xf]
      %v944 = vld [vmem:[%s3 + $0x34] sm:$0xf]
      %v945 = vld [vmem:[%s3 + $0x38] sm:$0xf]
      %v946 = vld [vmem:[%s3 + $0x3c] sm:$0xf]
      %v947 = vld [vmem:[%s3 + $0x40] sm:$0xf]
      %v948 = vld [vmem:[%s3 + $0x44] sm:$0xf]
      %v949 = vld [vmem:[%s3 + $0x48] sm:$0xf]
      %v950 = vld [vmem:[%s3 + $0x4c] sm:$0xf]
      %v951 = vld [vmem:[%s3 + $0x50] sm:$0xf]
      %v952 = vld [vmem:[%s3 + $0x54] sm:$0xf]
      %v953 = vld [vmem:[%s3 + $0x58] sm:$0xf]
      %v954 = vld [vmem:[%s3 + $0x5c] sm:$0xf]
      %v955 = vld [vmem:[%s3 + $0x60] sm:$0xf]
      %v956 = vld [vmem:[%s3 + $0x64] sm:$0xf]
      %v957 = vld [vmem:[%s3 + $0x68] sm:$0xf]
      %v958 = vld [vmem:[%s3 + $0x6c] sm:$0xf]
      %v959 = vld [vmem:[%s3 + $0x70] sm:$0xf]
      %v960 = vld [vmem:[%s3 + $0x74] sm:$0xf]
      %v961 = vld [vmem:[%s3 + $0x78] sm:$0xf]
      %v962 = vld [vmem:[%s3 + $0x7c] sm:$0xf]
      %v963 = vld [vmem:[%s3 + $0x80] sm:$0xf]
      %v964 = vld [vmem:[%s3 + $0x84] sm:$0xf]
      %v965 = vld [vmem:[%s3 + $0x88] sm:$0xf]
      %v966 = vld [vmem:[%s3 + $0x8c] sm:$0xf]
      %v967 = vld [vmem:[%s3 + $0x90] sm:$0xf]
      %v968 = vld [vmem:[%s3 + $0x94] sm:$0xf]
      %v969 = vld [vmem:[%s3 + $0x98] sm:$0xf]
      %v970 = vld [vmem:[%s3 + $0x9c] sm:$0xf]
      %v971 = vld [vmem:[%s3 + $0xa0] sm:$0xf]
      %v972 = vld [vmem:[%s3 + $0xa4] sm:$0xf]
      %v973 = vld [vmem:[%s3 + $0xa8] sm:$0xf]
      %v974 = vld [vmem:[%s3 + $0xac] sm:$0xf]
      %v975 = vld [vmem:[%s3 + $0xb0] sm:$0xf]
      %v976 = vld [vmem:[%s3 + $0xb4] sm:$0xf]
      %v977 = vld [vmem:[%s3 + $0xb8] sm:$0xf]
      %v978 = vld [vmem:[%s3 + $0xbc] sm:$0xf]
      %v979 = vld [vmem:[%s3 + $0xc0] sm:$0xf]
      %v980 = vld [vmem:[%s3 + $0xc4] sm:$0xf]
      %v981 = vld [vmem:[%s3 + $0xc8] sm:$0xf]
      %v982 = vld [vmem:[%s3 + $0xcc] sm:$0xf]
      %v983 = vld [vmem:[%s3 + $0xd0] sm:$0xf]
      %v984 = vld [vmem:[%s3 + $0xd4] sm:$0xf]
      %v985 = vld [vmem:[%s3 + $0xd8] sm:$0xf]
      %v986 = vld [vmem:[%s3 + $0xdc] sm:$0xf]
      %v987 = vld [vmem:[%s3 + $0xe0] sm:$0xf]
      %v988 = vld [vmem:[%s3 + $0xe4] sm:$0xf]
      %v989 = vld [vmem:[%s3 + $0xe8] sm:$0xf]
      %v990 = vld [vmem:[%s3 + $0xec] sm:$0xf]
      %v991 = vld [vmem:[%s3 + $0xf0] sm:$0xf]
      %v992 = vld [vmem:[%s3 + $0xf4] sm:$0xf]
      %v993 = vld [vmem:[%s3 + $0xf8] sm:$0xf]
      %v994 = vld [vmem:[%s3 + $0xfc] sm:$0xf]
      %v995 = vld [vmem:[%s3 + $0x100] sm:$0xf]
      %v996 = vld [vmem:[%s3 + $0x104] sm:$0xf]
      %v997 = vld [vmem:[%s3 + $0x108] sm:$0xf]
      %v998 = vld [vmem:[%s3 + $0x10c] sm:$0xf]
      %v999 = vld [vmem:[%s3 + $0x110] sm:$0xf]
      %v1000 = vld [vmem:[%s3 + $0x114] sm:$0xf]
      %v1001 = vld [vmem:[%s3 + $0x118] sm:$0xf]
      %v1002 = vld [vmem:[%s3 + $0x11c] sm:$0xf]
      %v1003 = vld [vmem:[%s3 + $0x120] sm:$0xf]
      %v1004 = vld [vmem:[%s3 + $0x124] sm:$0xf]
      %v1005 = vld [vmem:[%s3 + $0x128] sm:$0xf]
      %v1006 = vld [vmem:[%s3 + $0x12c] sm:$0xf]
      %v1007 = vld [vmem:[%s3 + $0x130] sm:$0xf]
      %v1008 = vld [vmem:[%s3 + $0x134] sm:$0xf]
      %v1009 = vld [vmem:[%s3 + $0x138] sm:$0xf]
      %v1010 = vld [vmem:[%s3 + $0x13c] sm:$0xf]
      %v1011 = vld [vmem:[%s3 + $0x140] sm:$0xf]
      %v1012 = vld [vmem:[%s3 + $0x144] sm:$0xf]
      %v1013 = vld [vmem:[%s3 + $0x148] sm:$0xf]
      %v1014 = vld [vmem:[%s3 + $0x14c] sm:$0xf]
      %v1015 = vld [vmem:[%s3 + $0x150] sm:$0xf]
      %v1016 = vld [vmem:[%s3 + $0x154] sm:$0xf]
      %v1017 = vld [vmem:[%s3 + $0x158] sm:$0xf]
      %v1018 = vld [vmem:[%s3 + $0x15c] sm:$0xf]
      %v1019 = vld [vmem:[%s3 + $0x160] sm:$0xf]
      %v1020 = vld [vmem:[%s3 + $0x164] sm:$0xf]
      %v1021 = vld [vmem:[%s3 + $0x168] sm:$0xf]
      %v1022 = vld [vmem:[%s3 + $0x16c] sm:$0xf]
      %v1023 = vld [vmem:[%s3 + $0x170] sm:$0xf]
      %v1024 = vld [vmem:[%s3 + $0x174] sm:$0xf]
      %v1025 = vld [vmem:[%s3 + $0x178] sm:$0xf]
      %v1026 = vld [vmem:[%s3 + $0x17c] sm:$0xf]
      %v1027 = vld [vmem:[%s3 + $0x180] sm:$0xf]
      %v1028 = vld [vmem:[%s3 + $0x184] sm:$0xf]
      %v1029 = vld [vmem:[%s3 + $0x188] sm:$0xf]
      %v1030 = vld [vmem:[%s3 + $0x18c] sm:$0xf]
      %v1031 = vld [vmem:[%s3 + $0x190] sm:$0xf]
      %v1032 = vld [vmem:[%s3 + $0x194] sm:$0xf]
      %v1033 = vld [vmem:[%s3 + $0x198] sm:$0xf]
      %v1034 = vld [vmem:[%s3 + $0x19c] sm:$0xf]
      %v1035 = vld [vmem:[%s3 + $0x1a0] sm:$0xf]
      %v1036 = vld [vmem:[%s3 + $0x1a4] sm:$0xf]
      %v1037 = vld [vmem:[%s3 + $0x1a8] sm:$0xf]
      %v1038 = vld [vmem:[%s3 + $0x1ac] sm:$0xf]
      %v1039 = vld [vmem:[%s3 + $0x1b0] sm:$0xf]
      %v1040 = vld [vmem:[%s3 + $0x1b4] sm:$0xf]
      %v1041 = vld [vmem:[%s3 + $0x1b8] sm:$0xf]
      %v1042 = vld [vmem:[%s3 + $0x1bc] sm:$0xf]
      %v1043 = vld [vmem:[%s3 + $0x1c0] sm:$0xf]
      %v1044 = vld [vmem:[%s3 + $0x1c4] sm:$0xf]
      %v1045 = vld [vmem:[%s3 + $0x1c8] sm:$0xf]
      %v1046 = vld [vmem:[%s3 + $0x1cc] sm:$0xf]
      %v1047 = vld [vmem:[%s3 + $0x1d0] sm:$0xf]
      %v1048 = vld [vmem:[%s3 + $0x1d4] sm:$0xf]
      %v1049 = vld [vmem:[%s3 + $0x1d8] sm:$0xf]
      %v1050 = vld [vmem:[%s3 + $0x1dc] sm:$0xf]
      %v1051 = vld [vmem:[%s3 + $0x1e0] sm:$0xf]
      %v1052 = vld [vmem:[%s3 + $0x1e4] sm:$0xf]
      %v1053 = vld [vmem:[%s3 + $0x1e8] sm:$0xf]
      %v1054 = vld [vmem:[%s3 + $0x1ec] sm:$0xf]
      %v1055 = vld [vmem:[%s3 + $0x1f0] sm:$0xf]
      %v1056 = vld [vmem:[%s3 + $0x1f4] sm:$0xf]
      %v1057 = vld [vmem:[%s3 + $0x1f8] sm:$0xf]
      %v1058 = vld [vmem:[%s3 + $0x1fc] sm:$0xf]
      %v1059 = vld [vmem:[%s3 + $0x200] sm:$0xf]
      %v1060 = vld [vmem:[%s3 + $0x204] sm:$0xf]
      %v1061 = vld [vmem:[%s3 + $0x208] sm:$0xf]
      %v1062 = vld [vmem:[%s3 + $0x20c] sm:$0xf]
      %v1063 = vld [vmem:[%s3 + $0x210] sm:$0xf]
      %v1064 = vld [vmem:[%s3 + $0x214] sm:$0xf]
      %v1065 = vld [vmem:[%s3 + $0x218] sm:$0xf]
      %v1066 = vld [vmem:[%s3 + $0x21c] sm:$0xf]
      %v1067 = vld [vmem:[%s3 + $0x220] sm:$0xf]
      %v1068 = vld [vmem:[%s3 + $0x224] sm:$0xf]
      %v1069 = vld [vmem:[%s3 + $0x228] sm:$0xf]
      %v1070 = vld [vmem:[%s3 + $0x22c] sm:$0xf]
      %v1071 = vld [vmem:[%s3 + $0x230] sm:$0xf]
      %v1072 = vld [vmem:[%s3 + $0x234] sm:$0xf]
      %v1073 = vld [vmem:[%s3 + $0x238] sm:$0xf]
      %v1074 = vld [vmem:[%s3 + $0x23c] sm:$0xf]
      %v1075 = vld [vmem:[%s4] sm:$0x1]
      %v1077 = vlaneseq
      %v1078 = vshrl.u32 %v1077, 7
      %v1079 = vsub.s32 0, %v1078
      %v1080 = vrot.slane %v1075, %v1079
      %v1226 = vunpack.c.l.b16 %v931
      %v1227 = vunpack.c.l.b16 %v932
      %v1228 = vunpack.c.l.b16 %v933
      %v1229 = vunpack.c.l.b16 %v934
      %v1230 = vunpack.c.l.b16 %v935
      %v1231 = vunpack.c.l.b16 %v936
      %v1232 = vunpack.c.l.b16 %v937
      %v1233 = vunpack.c.l.b16 %v938
      %v1234 = vunpack.c.l.b16 %v939
      %v1235 = vunpack.c.l.b16 %v940
      %v1236 = vunpack.c.l.b16 %v941
      %v1237 = vunpack.c.l.b16 %v942
      %v1238 = vunpack.c.l.b16 %v943
      %v1239 = vunpack.c.l.b16 %v944
      %v1240 = vunpack.c.l.b16 %v945
      %v1241 = vunpack.c.l.b16 %v946
      %v1242 = vunpack.c.l.b16 %v947
      %v1243 = vunpack.c.l.b16 %v948
      %v1244 = vunpack.c.l.b16 %v949
      %v1245 = vunpack.c.l.b16 %v950
      %v1246 = vunpack.c.l.b16 %v951
      %v1247 = vunpack.c.l.b16 %v952
      %v1248 = vunpack.c.l.b16 %v953
      %v1249 = vunpack.c.l.b16 %v954
      %v1250 = vunpack.c.l.b16 %v955
      %v1251 = vunpack.c.l.b16 %v956
      %v1252 = vunpack.c.l.b16 %v957
      %v1253 = vunpack.c.l.b16 %v958
      %v1254 = vunpack.c.l.b16 %v959
      %v1255 = vunpack.c.l.b16 %v960
      %v1256 = vunpack.c.l.b16 %v961
      %v1257 = vunpack.c.l.b16 %v962
      %v1258 = vunpack.c.l.b16 %v963
      %v1259 = vunpack.c.l.b16 %v964
      %v1260 = vunpack.c.l.b16 %v965
      %v1261 = vunpack.c.l.b16 %v966
      %v1262 = vunpack.c.l.b16 %v967
      %v1263 = vunpack.c.l.b16 %v968
      %v1264 = vunpack.c.l.b16 %v969
      %v1265 = vunpack.c.l.b16 %v970
      %v1266 = vunpack.c.l.b16 %v971
      %v1267 = vunpack.c.l.b16 %v972
      %v1268 = vunpack.c.l.b16 %v973
      %v1269 = vunpack.c.l.b16 %v974
      %v1270 = vunpack.c.l.b16 %v975
      %v1271 = vunpack.c.l.b16 %v976
      %v1272 = vunpack.c.l.b16 %v977
      %v1273 = vunpack.c.l.b16 %v978
      %v1274 = vunpack.c.l.b16 %v979
      %v1275 = vunpack.c.l.b16 %v980
      %v1276 = vunpack.c.l.b16 %v981
      %v1277 = vunpack.c.l.b16 %v982
      %v1278 = vunpack.c.l.b16 %v983
      %v1279 = vunpack.c.l.b16 %v984
      %v1280 = vunpack.c.l.b16 %v985
      %v1281 = vunpack.c.l.b16 %v986
      %v1282 = vunpack.c.l.b16 %v987
      %v1283 = vunpack.c.l.b16 %v988
      %v1284 = vunpack.c.l.b16 %v989
      %v1285 = vunpack.c.l.b16 %v990
      %v1286 = vunpack.c.l.b16 %v991
      %v1287 = vunpack.c.l.b16 %v992
      %v1288 = vunpack.c.l.b16 %v993
      %v1289 = vunpack.c.l.b16 %v994
      %v1290 = vunpack.c.l.b16 %v995
      %v1291 = vunpack.c.l.b16 %v996
      %v1292 = vunpack.c.l.b16 %v997
      %v1293 = vunpack.c.l.b16 %v998
      %v1294 = vunpack.c.l.b16 %v999
      %v1295 = vunpack.c.l.b16 %v1000
      %v1296 = vunpack.c.l.b16 %v1001
      %v1297 = vunpack.c.l.b16 %v1002
      %v1298 = vunpack.c.l.b16 %v1003
      %v1299 = vunpack.c.l.b16 %v1004
      %v1300 = vunpack.c.l.b16 %v1005
      %v1301 = vunpack.c.l.b16 %v1006
      %v1302 = vunpack.c.l.b16 %v1007
      %v1303 = vunpack.c.l.b16 %v1008
      %v1304 = vunpack.c.l.b16 %v1009
      %v1305 = vunpack.c.l.b16 %v1010
      %v1306 = vunpack.c.l.b16 %v1011
      %v1307 = vunpack.c.l.b16 %v1012
      %v1308 = vunpack.c.l.b16 %v1013
      %v1309 = vunpack.c.l.b16 %v1014
      %v1310 = vunpack.c.l.b16 %v1015
      %v1311 = vunpack.c.l.b16 %v1016
      %v1312 = vunpack.c.l.b16 %v1017
      %v1313 = vunpack.c.l.b16 %v1018
      %v1314 = vunpack.c.l.b16 %v1019
      %v1315 = vunpack.c.l.b16 %v1020
      %v1316 = vunpack.c.l.b16 %v1021
      %v1317 = vunpack.c.l.b16 %v1022
      %v1318 = vunpack.c.l.b16 %v1023
      %v1319 = vunpack.c.l.b16 %v1024
      %v1320 = vunpack.c.l.b16 %v1025
      %v1321 = vunpack.c.l.b16 %v1026
      %v1322 = vunpack.c.l.b16 %v1027
      %v1323 = vunpack.c.l.b16 %v1028
      %v1324 = vunpack.c.l.b16 %v1029
      %v1325 = vunpack.c.l.b16 %v1030
      %v1326 = vunpack.c.l.b16 %v1031
      %v1327 = vunpack.c.l.b16 %v1032
      %v1328 = vunpack.c.l.b16 %v1033
      %v1329 = vunpack.c.l.b16 %v1034
      %v1330 = vunpack.c.l.b16 %v1035
      %v1331 = vunpack.c.l.b16 %v1036
      %v1332 = vunpack.c.l.b16 %v1037
      %v1333 = vunpack.c.l.b16 %v1038
      %v1334 = vunpack.c.l.b16 %v1039
      %v1335 = vunpack.c.l.b16 %v1040
      %v1336 = vunpack.c.l.b16 %v1041
      %v1337 = vunpack.c.l.b16 %v1042
      %v1338 = vunpack.c.l.b16 %v1043
      %v1339 = vunpack.c.l.b16 %v1044
      %v1340 = vunpack.c.l.b16 %v1045
      %v1341 = vunpack.c.l.b16 %v1046
      %v1342 = vunpack.c.l.b16 %v1047
      %v1343 = vunpack.c.l.b16 %v1048
      %v1344 = vunpack.c.l.b16 %v1049
      %v1345 = vunpack.c.l.b16 %v1050
      %v1346 = vunpack.c.l.b16 %v1051
      %v1347 = vunpack.c.l.b16 %v1052
      %v1348 = vunpack.c.l.b16 %v1053
      %v1349 = vunpack.c.l.b16 %v1054
      %v1350 = vunpack.c.l.b16 %v1055
      %v1351 = vunpack.c.l.b16 %v1056
      %v1352 = vunpack.c.l.b16 %v1057
      %v1353 = vunpack.c.l.b16 %v1058
      %v1354 = vunpack.c.l.b16 %v1059
      %v1355 = vunpack.c.l.b16 %v1060
      %v1356 = vunpack.c.l.b16 %v1061
      %v1357 = vunpack.c.l.b16 %v1062
      %v1358 = vunpack.c.l.b16 %v1063
      %v1359 = vunpack.c.l.b16 %v1064
      %v1360 = vunpack.c.l.b16 %v1065
      %v1361 = vunpack.c.l.b16 %v1066
      %v1362 = vunpack.c.l.b16 %v1067
      %v1363 = vunpack.c.l.b16 %v1068
      %v1364 = vunpack.c.l.b16 %v1069
      %v1365 = vunpack.c.l.b16 %v1070
      %v1366 = vunpack.c.l.b16 %v1071
      %v1367 = vunpack.c.l.b16 %v1072
      %v1368 = vunpack.c.l.b16 %v1073
      %v1369 = vunpack.c.l.b16 %v1074
      %v1370 = vpack.c.b16 %v1227, %v1226
      %v1371 = vpack.c.b16 %v1229, %v1228
      %v1372 = vpack.c.b16 %v1231, %v1230
      %v1373 = vpack.c.b16 %v1233, %v1232
      %v1374 = vpack.c.b16 %v1235, %v1234
      %v1375 = vpack.c.b16 %v1237, %v1236
      %v1376 = vpack.c.b16 %v1239, %v1238
      %v1377 = vpack.c.b16 %v1241, %v1240
      %v1378 = vpack.c.b16 %v1243, %v1242
      %v1379 = vpack.c.b16 %v1245, %v1244
      %v1380 = vpack.c.b16 %v1247, %v1246
      %v1381 = vpack.c.b16 %v1249, %v1248
      %v1382 = vpack.c.b16 %v1251, %v1250
      %v1383 = vpack.c.b16 %v1253, %v1252
      %v1384 = vpack.c.b16 %v1255, %v1254
      %v1385 = vpack.c.b16 %v1257, %v1256
      %v1386 = vpack.c.b16 %v1259, %v1258
      %v1387 = vpack.c.b16 %v1261, %v1260
      %v1388 = vpack.c.b16 %v1263, %v1262
      %v1389 = vpack.c.b16 %v1265, %v1264
      %v1390 = vpack.c.b16 %v1267, %v1266
      %v1391 = vpack.c.b16 %v1269, %v1268
      %v1392 = vpack.c.b16 %v1271, %v1270
      %v1393 = vpack.c.b16 %v1273, %v1272
      %v1394 = vpack.c.b16 %v1275, %v1274
      %v1395 = vpack.c.b16 %v1277, %v1276
      %v1396 = vpack.c.b16 %v1279, %v1278
      %v1397 = vpack.c.b16 %v1281, %v1280
      %v1398 = vpack.c.b16 %v1283, %v1282
      %v1399 = vpack.c.b16 %v1285, %v1284
      %v1400 = vpack.c.b16 %v1287, %v1286
      %v1401 = vpack.c.b16 %v1289, %v1288
      %v1402 = vpack.c.b16 %v1291, %v1290
      %v1403 = vpack.c.b16 %v1293, %v1292
      %v1404 = vpack.c.b16 %v1295, %v1294
      %v1405 = vpack.c.b16 %v1297, %v1296
      %v1406 = vpack.c.b16 %v1299, %v1298
      %v1407 = vpack.c.b16 %v1301, %v1300
      %v1408 = vpack.c.b16 %v1303, %v1302
      %v1409 = vpack.c.b16 %v1305, %v1304
      %v1410 = vpack.c.b16 %v1307, %v1306
      %v1411 = vpack.c.b16 %v1309, %v1308
      %v1412 = vpack.c.b16 %v1311, %v1310
      %v1413 = vpack.c.b16 %v1313, %v1312
      %v1414 = vpack.c.b16 %v1315, %v1314
      %v1415 = vpack.c.b16 %v1317, %v1316
      %v1416 = vpack.c.b16 %v1319, %v1318
      %v1417 = vpack.c.b16 %v1321, %v1320
      %v1418 = vpack.c.b16 %v1323, %v1322
      %v1419 = vpack.c.b16 %v1325, %v1324
      %v1420 = vpack.c.b16 %v1327, %v1326
      %v1421 = vpack.c.b16 %v1329, %v1328
      %v1422 = vpack.c.b16 %v1331, %v1330
      %v1423 = vpack.c.b16 %v1333, %v1332
      %v1424 = vpack.c.b16 %v1335, %v1334
      %v1425 = vpack.c.b16 %v1337, %v1336
      %v1426 = vpack.c.b16 %v1339, %v1338
      %v1427 = vpack.c.b16 %v1341, %v1340
      %v1428 = vpack.c.b16 %v1343, %v1342
      %v1429 = vpack.c.b16 %v1345, %v1344
      %v1430 = vpack.c.b16 %v1347, %v1346
      %v1431 = vpack.c.b16 %v1349, %v1348
      %v1432 = vpack.c.b16 %v1351, %v1350
      %v1433 = vpack.c.b16 %v1353, %v1352
      %v1434 = vpack.c.b16 %v1355, %v1354
      %v1435 = vpack.c.b16 %v1357, %v1356
      %v1436 = vpack.c.b16 %v1359, %v1358
      %v1437 = vpack.c.b16 %v1361, %v1360
      %v1438 = vpack.c.b16 %v1363, %v1362
      %v1439 = vpack.c.b16 %v1365, %v1364
      %v1440 = vpack.c.b16 %v1367, %v1366
      %v1441 = vpack.c.b16 %v1369, %v1368
      %1514 = vmatprep.subr.bf16.mxu0 0
      %1515 = vmatpush1.bf16.msra.mxu0 %v1377
      %1516 = vmatprep.subr.bf16.mxu0 0
      %1517 = vmatpush1.bf16.msra.mxu0 %v1376
      %1518 = vmatprep.subr.bf16.mxu0 0
      %1519 = vmatpush1.bf16.msra.mxu0 %v1375
      %1520 = vmatprep.subr.bf16.mxu0 0
      %1521 = vmatpush1.bf16.msra.mxu0 %v1374
      %1522 = vmatprep.subr.bf16.mxu0 0
      %1523 = vmatpush1.bf16.msra.mxu0 %v1373
      %1524 = vmatprep.subr.bf16.mxu0 0
      %1525 = vmatpush1.bf16.msra.mxu0 %v1372
      %1526 = vmatprep.subr.bf16.mxu0 0
      %1527 = vmatpush1.bf16.msra.mxu0 %v1371
      %1528 = vmatprep.subr.bf16.mxu0 0
      %1529 = vmatpush1.bf16.msra.mxu0 %v1370
      %1530 = vmatprep.subr.bf16.mxu0 0
      %1531 = vmatpush2.bf16.msra.mxu0 %v1385
      %1532 = vmatprep.subr.bf16.mxu0 0
      %1533 = vmatpush2.bf16.msra.mxu0 %v1384
      %1534 = vmatprep.subr.bf16.mxu0 0
      %1535 = vmatpush2.bf16.msra.mxu0 %v1383
      %1536 = vmatprep.subr.bf16.mxu0 0
      %1537 = vmatpush2.bf16.msra.mxu0 %v1382
      %1538 = vmatprep.subr.bf16.mxu0 0
      %1539 = vmatpush2.bf16.msra.mxu0 %v1381
      %1540 = vmatprep.subr.bf16.mxu0 0
      %1541 = vmatpush2.bf16.msra.mxu0 %v1380
      %1542 = vmatprep.subr.bf16.mxu0 0
      %1543 = vmatpush2.bf16.msra.mxu0 %v1379
      %1544 = vmatprep.subr.bf16.mxu0 0
      %1545 = vmatpush2.bf16.msra.mxu0 %v1378
      %1546 = vmatprep.mubr.bf16.mxu0 %v881
      %1547 = vmatmul.mubr.bf16.gmra.mxu0 %v880
      %v1548 = vpop.f32.mrf.mxu0
      %v1549 = vadd.f32 %v1080, %v1548
      %v1550 = vpop.f32.mrf.mxu0
      %v1551 = vpop.f32.mrf.mxu0
      %v1552 = vadd.f32 %v1080, %v1551
      %v1553 = vpop.f32.mrf.mxu0
      %1554 = vmatprep.mubr.bf16.mxu0 %v884
      %1555 = vmatmul.mubr.bf16.gmra.mxu0 %v883
      %v1556 = vpop.f32.mrf.mxu0
      %v1557 = vadd.f32 %v1080, %v1556
      %v1558 = vpop.f32.mrf.mxu0
      %v1559 = vpop.f32.mrf.mxu0
      %v1560 = vadd.f32 %v1080, %v1559
      %v1561 = vpop.f32.mrf.mxu0
      %1562 = vmatprep.mubr.bf16.mxu0 %v887
      %1563 = vmatmul.mubr.bf16.gmra.mxu0 %v886
      %v1564 = vpop.f32.mrf.mxu0
      %v1565 = vadd.f32 %v1080, %v1564
      %v1566 = vpop.f32.mrf.mxu0
      %v1567 = vpop.f32.mrf.mxu0
      %v1568 = vadd.f32 %v1080, %v1567
      %v1569 = vpop.f32.mrf.mxu0
      %1570 = vmatprep.mubr.bf16.mxu0 %v890
      %1571 = vmatmul.mubr.bf16.gmra.mxu0 %v889
      %v1572 = vpop.f32.mrf.mxu0
      %v1573 = vadd.f32 %v1080, %v1572
      %v1574 = vpop.f32.mrf.mxu0
      %v1575 = vpop.f32.mrf.mxu0
      %v1576 = vadd.f32 %v1080, %v1575
      %v1577 = vpop.f32.mrf.mxu0
      %1578 = vmatprep.mubr.bf16.mxu0 %v893
      %1579 = vmatmul.mubr.bf16.gmra.mxu0 %v892
      %v1580 = vpop.f32.mrf.mxu0
      %v1581 = vadd.f32 %v1080, %v1580
      %v1582 = vpop.f32.mrf.mxu0
      %v1583 = vpop.f32.mrf.mxu0
      %v1584 = vadd.f32 %v1080, %v1583
      %v1585 = vpop.f32.mrf.mxu0
      %1586 = vmatprep.mubr.bf16.mxu0 %v896
      %1587 = vmatmul.mubr.bf16.gmra.mxu0 %v895
      %v1588 = vpop.f32.mrf.mxu0
      %v1589 = vadd.f32 %v1080, %v1588
      %v1590 = vpop.f32.mrf.mxu0
      %v1591 = vpop.f32.mrf.mxu0
      %v1592 = vadd.f32 %v1080, %v1591
      %v1593 = vpop.f32.mrf.mxu0
      %1594 = vmatprep.mubr.bf16.mxu0 %v899
      %1595 = vmatmul.mubr.bf16.gmra.mxu0 %v898
      %v1596 = vpop.f32.mrf.mxu0
      %v1597 = vadd.f32 %v1080, %v1596
      %v1598 = vpop.f32.mrf.mxu0
      %v1599 = vpop.f32.mrf.mxu0
      %v1600 = vadd.f32 %v1080, %v1599
      %v1601 = vpop.f32.mrf.mxu0
      %1602 = vmatprep.mubr.bf16.mxu0 %v902
      %1603 = vmatmul.mubr.bf16.gmra.mxu0 %v901
      %v1604 = vpop.f32.mrf.mxu0
      %v1605 = vadd.f32 %v1080, %v1604
      %v1606 = vpop.f32.mrf.mxu0
      %v1607 = vpop.f32.mrf.mxu0
      %v1608 = vadd.f32 %v1080, %v1607
      %v1609 = vpop.f32.mrf.mxu0
      %1610 = vmatprep.mubr.bf16.mxu0 %v905
      %1611 = vmatmul.mubr.bf16.gmra.mxu0 %v904
      %v1612 = vpop.f32.mrf.mxu0
      %v1613 = vadd.f32 %v1080, %v1612
      %v1614 = vpop.f32.mrf.mxu0
      %v1615 = vpop.f32.mrf.mxu0
      %v1616 = vadd.f32 %v1080, %v1615
      %v1617 = vpop.f32.mrf.mxu0
      %1618 = vmatprep.mubr.bf16.mxu0 %v908
      %1619 = vmatmul.mubr.bf16.gmra.mxu0 %v907
      %v1620 = vpop.f32.mrf.mxu0
      %v1621 = vadd.f32 %v1080, %v1620
      %v1622 = vpop.f32.mrf.mxu0
      %v1623 = vpop.f32.mrf.mxu0
      %v1624 = vadd.f32 %v1080, %v1623
      %v1625 = vpop.f32.mrf.mxu0
      %1626 = vmatprep.mubr.bf16.mxu0 %v911
      %1627 = vmatmul.mubr.bf16.gmra.mxu0 %v910
      %v1628 = vpop.f32.mrf.mxu0
      %v1629 = vadd.f32 %v1080, %v1628
      %v1630 = vpop.f32.mrf.mxu0
      %v1631 = vpop.f32.mrf.mxu0
      %v1632 = vadd.f32 %v1080, %v1631
      %v1633 = vpop.f32.mrf.mxu0
      %1634 = vmatprep.mubr.bf16.mxu0 %v914
      %1635 = vmatmul.mubr.bf16.gmra.mxu0 %v913
      %v1636 = vpop.f32.mrf.mxu0
      %v1637 = vadd.f32 %v1080, %v1636
      %v1638 = vpop.f32.mrf.mxu0
      %v1639 = vpop.f32.mrf.mxu0
      %v1640 = vadd.f32 %v1080, %v1639
      %v1641 = vpop.f32.mrf.mxu0
      %1642 = vmatprep.mubr.bf16.mxu0 %v917
      %1643 = vmatmul.mubr.bf16.gmra.mxu0 %v916
      %v1644 = vpop.f32.mrf.mxu0
      %v1645 = vadd.f32 %v1080, %v1644
      %v1646 = vpop.f32.mrf.mxu0
      %v1647 = vpop.f32.mrf.mxu0
      %v1648 = vadd.f32 %v1080, %v1647
      %v1649 = vpop.f32.mrf.mxu0
      %1650 = vmatprep.mubr.bf16.mxu0 %v920
      %1651 = vmatmul.mubr.bf16.gmra.mxu0 %v919
      %v1652 = vpop.f32.mrf.mxu0
      %v1653 = vadd.f32 %v1080, %v1652
      %v1654 = vpop.f32.mrf.mxu0
      %v1655 = vpop.f32.mrf.mxu0
      %v1656 = vadd.f32 %v1080, %v1655
      %v1657 = vpop.f32.mrf.mxu0
      %1658 = vmatprep.mubr.bf16.mxu0 %v923
      %1659 = vmatmul.mubr.bf16.gmra.mxu0 %v922
      %v1660 = vpop.f32.mrf.mxu0
      %v1661 = vadd.f32 %v1080, %v1660
      %v1662 = vpop.f32.mrf.mxu0
      %v1663 = vpop.f32.mrf.mxu0
      %v1664 = vadd.f32 %v1080, %v1663
      %v1665 = vpop.f32.mrf.mxu0
      %1666 = vmatprep.mubr.bf16.mxu0 %v926
      %1667 = vmatmul.mubr.bf16.gmra.mxu0 %v925
      %v1668 = vpop.f32.mrf.mxu0
      %v1669 = vadd.f32 %v1080, %v1668
      %v1670 = vpop.f32.mrf.mxu0
      %v1671 = vpop.f32.mrf.mxu0
      %v1672 = vadd.f32 %v1080, %v1671
      %v1673 = vpop.f32.mrf.mxu0
      %1674 = vdwg.mxu0
      %1675 = vmatprep.subr.bf16.mxu0 0
      %1676 = vmatpush1.bf16.msra.mxu0 %v1393
      %1677 = vmatprep.subr.bf16.mxu0 0
      %1678 = vmatpush1.bf16.msra.mxu0 %v1392
      %1679 = vmatprep.subr.bf16.mxu0 0
      %1680 = vmatpush1.bf16.msra.mxu0 %v1391
      %1681 = vmatprep.subr.bf16.mxu0 0
      %1682 = vmatpush1.bf16.msra.mxu0 %v1390
      %1683 = vmatprep.subr.bf16.mxu0 0
      %1684 = vmatpush1.bf16.msra.mxu0 %v1389
      %1685 = vmatprep.subr.bf16.mxu0 0
      %1686 = vmatpush1.bf16.msra.mxu0 %v1388
      %1687 = vmatprep.subr.bf16.mxu0 0
      %1688 = vmatpush1.bf16.msra.mxu0 %v1387
      %1689 = vmatprep.subr.bf16.mxu0 0
      %1690 = vmatpush1.bf16.msra.mxu0 %v1386
      %1691 = vmatprep.subr.bf16.mxu0 0
      %1692 = vmatpush2.bf16.msra.mxu0 %v1401
      %1693 = vmatprep.subr.bf16.mxu0 0
      %1694 = vmatpush2.bf16.msra.mxu0 %v1400
      %1695 = vmatprep.subr.bf16.mxu0 0
      %1696 = vmatpush2.bf16.msra.mxu0 %v1399
      %1697 = vmatprep.subr.bf16.mxu0 0
      %1698 = vmatpush2.bf16.msra.mxu0 %v1398
      %1699 = vmatprep.subr.bf16.mxu0 0
      %1700 = vmatpush2.bf16.msra.mxu0 %v1397
      %1701 = vmatprep.subr.bf16.mxu0 0
      %1702 = vmatpush2.bf16.msra.mxu0 %v1396
      %1703 = vmatprep.subr.bf16.mxu0 0
      %1704 = vmatpush2.bf16.msra.mxu0 %v1395
      %1705 = vmatprep.subr.bf16.mxu0 0
      %1706 = vmatpush2.bf16.msra.mxu0 %v1394
      %1707 = vmatprep.mubr.bf16.mxu0 %v883
      %1708 = vmatmul.mubr.bf16.gmra.mxu0 %v882
      %v1709 = vpop.f32.mrf.mxu0
      %v1710 = vadd.f32 %v1549, %v1709
      %v1711 = vpop.f32.mrf.mxu0
      %v1712 = vpop.f32.mrf.mxu0
      %v1713 = vadd.f32 %v1552, %v1712
      %v1714 = vpop.f32.mrf.mxu0
      %1715 = vmatprep.mubr.bf16.mxu0 %v886
      %1716 = vmatmul.mubr.bf16.gmra.mxu0 %v885
      %v1717 = vpop.f32.mrf.mxu0
      %v1718 = vadd.f32 %v1557, %v1717
      %v1719 = vpop.f32.mrf.mxu0
      %v1720 = vpop.f32.mrf.mxu0
      %v1721 = vadd.f32 %v1560, %v1720
      %v1722 = vpop.f32.mrf.mxu0
      %1723 = vmatprep.mubr.bf16.mxu0 %v889
      %1724 = vmatmul.mubr.bf16.gmra.mxu0 %v888
      %v1725 = vpop.f32.mrf.mxu0
      %v1726 = vadd.f32 %v1565, %v1725
      %v1727 = vpop.f32.mrf.mxu0
      %v1728 = vpop.f32.mrf.mxu0
      %v1729 = vadd.f32 %v1568, %v1728
      %v1730 = vpop.f32.mrf.mxu0
      %1731 = vmatprep.mubr.bf16.mxu0 %v892
      %1732 = vmatmul.mubr.bf16.gmra.mxu0 %v891
      %v1733 = vpop.f32.mrf.mxu0
      %v1734 = vadd.f32 %v1573, %v1733
      %v1735 = vpop.f32.mrf.mxu0
      %v1736 = vpop.f32.mrf.mxu0
      %v1737 = vadd.f32 %v1576, %v1736
      %v1738 = vpop.f32.mrf.mxu0
      %1739 = vmatprep.mubr.bf16.mxu0 %v895
      %1740 = vmatmul.mubr.bf16.gmra.mxu0 %v894
      %v1741 = vpop.f32.mrf.mxu0
      %v1742 = vadd.f32 %v1581, %v1741
      %v1743 = vpop.f32.mrf.mxu0
      %v1744 = vpop.f32.mrf.mxu0
      %v1745 = vadd.f32 %v1584, %v1744
      %v1746 = vpop.f32.mrf.mxu0
      %1747 = vmatprep.mubr.bf16.mxu0 %v898
      %1748 = vmatmul.mubr.bf16.gmra.mxu0 %v897
      %v1749 = vpop.f32.mrf.mxu0
      %v1750 = vadd.f32 %v1589, %v1749
      %v1751 = vpop.f32.mrf.mxu0
      %v1752 = vpop.f32.mrf.mxu0
      %v1753 = vadd.f32 %v1592, %v1752
      %v1754 = vpop.f32.mrf.mxu0
      %1755 = vmatprep.mubr.bf16.mxu0 %v901
      %1756 = vmatmul.mubr.bf16.gmra.mxu0 %v900
      %v1757 = vpop.f32.mrf.mxu0
      %v1758 = vadd.f32 %v1597, %v1757
      %v1759 = vpop.f32.mrf.mxu0
      %v1760 = vpop.f32.mrf.mxu0
      %v1761 = vadd.f32 %v1600, %v1760
      %v1762 = vpop.f32.mrf.mxu0
      %1763 = vmatprep.mubr.bf16.mxu0 %v904
      %1764 = vmatmul.mubr.bf16.gmra.mxu0 %v903
      %v1765 = vpop.f32.mrf.mxu0
      %v1766 = vadd.f32 %v1605, %v1765
      %v1767 = vpop.f32.mrf.mxu0
      %v1768 = vpop.f32.mrf.mxu0
      %v1769 = vadd.f32 %v1608, %v1768
      %v1770 = vpop.f32.mrf.mxu0
      %1771 = vmatprep.mubr.bf16.mxu0 %v907
      %1772 = vmatmul.mubr.bf16.gmra.mxu0 %v906
      %v1773 = vpop.f32.mrf.mxu0
      %v1774 = vadd.f32 %v1613, %v1773
      %v1775 = vpop.f32.mrf.mxu0
      %v1776 = vpop.f32.mrf.mxu0
      %v1777 = vadd.f32 %v1616, %v1776
      %v1778 = vpop.f32.mrf.mxu0
      %1779 = vmatprep.mubr.bf16.mxu0 %v910
      %1780 = vmatmul.mubr.bf16.gmra.mxu0 %v909
      %v1781 = vpop.f32.mrf.mxu0
      %v1782 = vadd.f32 %v1621, %v1781
      %v1783 = vpop.f32.mrf.mxu0
      %v1784 = vpop.f32.mrf.mxu0
      %v1785 = vadd.f32 %v1624, %v1784
      %v1786 = vpop.f32.mrf.mxu0
      %1787 = vmatprep.mubr.bf16.mxu0 %v913
      %1788 = vmatmul.mubr.bf16.gmra.mxu0 %v912
      %v1789 = vpop.f32.mrf.mxu0
      %v1790 = vadd.f32 %v1629, %v1789
      %v1791 = vpop.f32.mrf.mxu0
      %v1792 = vpop.f32.mrf.mxu0
      %v1793 = vadd.f32 %v1632, %v1792
      %v1794 = vpop.f32.mrf.mxu0
      %1795 = vmatprep.mubr.bf16.mxu0 %v916
      %1796 = vmatmul.mubr.bf16.gmra.mxu0 %v915
      %v1797 = vpop.f32.mrf.mxu0
      %v1798 = vadd.f32 %v1637, %v1797
      %v1799 = vpop.f32.mrf.mxu0
      %v1800 = vpop.f32.mrf.mxu0
      %v1801 = vadd.f32 %v1640, %v1800
      %v1802 = vpop.f32.mrf.mxu0
      %1803 = vmatprep.mubr.bf16.mxu0 %v919
      %1804 = vmatmul.mubr.bf16.gmra.mxu0 %v918
      %v1805 = vpop.f32.mrf.mxu0
      %v1806 = vadd.f32 %v1645, %v1805
      %v1807 = vpop.f32.mrf.mxu0
      %v1808 = vpop.f32.mrf.mxu0
      %v1809 = vadd.f32 %v1648, %v1808
      %v1810 = vpop.f32.mrf.mxu0
      %1811 = vmatprep.mubr.bf16.mxu0 %v922
      %1812 = vmatmul.mubr.bf16.gmra.mxu0 %v921
      %v1813 = vpop.f32.mrf.mxu0
      %v1814 = vadd.f32 %v1653, %v1813
      %v1815 = vpop.f32.mrf.mxu0
      %v1816 = vpop.f32.mrf.mxu0
      %v1817 = vadd.f32 %v1656, %v1816
      %v1818 = vpop.f32.mrf.mxu0
      %1819 = vmatprep.mubr.bf16.mxu0 %v925
      %1820 = vmatmul.mubr.bf16.gmra.mxu0 %v924
      %v1821 = vpop.f32.mrf.mxu0
      %v1822 = vadd.f32 %v1661, %v1821
      %v1823 = vpop.f32.mrf.mxu0
      %v1824 = vpop.f32.mrf.mxu0
      %v1825 = vadd.f32 %v1664, %v1824
      %v1826 = vpop.f32.mrf.mxu0
      %1827 = vmatprep.mubr.bf16.mxu0 %v928
      %1828 = vmatmul.mubr.bf16.gmra.mxu0 %v927
      %v1829 = vpop.f32.mrf.mxu0
      %v1830 = vadd.f32 %v1669, %v1829
      %v1831 = vpop.f32.mrf.mxu0
      %v1832 = vpop.f32.mrf.mxu0
      %v1833 = vadd.f32 %v1672, %v1832
      %v1834 = vpop.f32.mrf.mxu0
      %1835 = vdwg.mxu0
      %1836 = vmatprep.subr.bf16.mxu0 0
      %1837 = vmatpush1.bf16.msra.mxu0 %v1409
      %1838 = vmatprep.subr.bf16.mxu0 0
      %1839 = vmatpush1.bf16.msra.mxu0 %v1408
      %1840 = vmatprep.subr.bf16.mxu0 0
      %1841 = vmatpush1.bf16.msra.mxu0 %v1407
      %1842 = vmatprep.subr.bf16.mxu0 0
      %1843 = vmatpush1.bf16.msra.mxu0 %v1406
      %1844 = vmatprep.subr.bf16.mxu0 0
      %1845 = vmatpush1.bf16.msra.mxu0 %v1405
      %1846 = vmatprep.subr.bf16.mxu0 0
      %1847 = vmatpush1.bf16.msra.mxu0 %v1404
      %1848 = vmatprep.subr.bf16.mxu0 0
      %1849 = vmatpush1.bf16.msra.mxu0 %v1403
      %1850 = vmatprep.subr.bf16.mxu0 0
      %1851 = vmatpush1.bf16.msra.mxu0 %v1402
      %1852 = vmatprep.subr.bf16.mxu0 0
      %1853 = vmatpush2.bf16.msra.mxu0 %v1417
      %1854 = vmatprep.subr.bf16.mxu0 0
      %1855 = vmatpush2.bf16.msra.mxu0 %v1416
      %1856 = vmatprep.subr.bf16.mxu0 0
      %1857 = vmatpush2.bf16.msra.mxu0 %v1415
      %1858 = vmatprep.subr.bf16.mxu0 0
      %1859 = vmatpush2.bf16.msra.mxu0 %v1414
      %1860 = vmatprep.subr.bf16.mxu0 0
      %1861 = vmatpush2.bf16.msra.mxu0 %v1413
      %1862 = vmatprep.subr.bf16.mxu0 0
      %1863 = vmatpush2.bf16.msra.mxu0 %v1412
      %1864 = vmatprep.subr.bf16.mxu0 0
      %1865 = vmatpush2.bf16.msra.mxu0 %v1411
      %1866 = vmatprep.subr.bf16.mxu0 0
      %1867 = vmatpush2.bf16.msra.mxu0 %v1410
      %1868 = vmatprep.mubr.bf16.mxu0 %v885
      %1869 = vmatmul.mubr.bf16.gmra.mxu0 %v884
      %v1870 = vpop.f32.mrf.mxu0
      %v1871 = vadd.f32 %v1710, %v1870
      %v1872 = vpop.f32.mrf.mxu0
      %v1873 = vpop.f32.mrf.mxu0
      %v1874 = vadd.f32 %v1713, %v1873
      %v1875 = vpop.f32.mrf.mxu0
      %1876 = vmatprep.mubr.bf16.mxu0 %v888
      %1877 = vmatmul.mubr.bf16.gmra.mxu0 %v887
      %v1878 = vpop.f32.mrf.mxu0
      %v1879 = vadd.f32 %v1718, %v1878
      %v1880 = vpop.f32.mrf.mxu0
      %v1881 = vpop.f32.mrf.mxu0
      %v1882 = vadd.f32 %v1721, %v1881
      %v1883 = vpop.f32.mrf.mxu0
      %1884 = vmatprep.mubr.bf16.mxu0 %v891
      %1885 = vmatmul.mubr.bf16.gmra.mxu0 %v890
      %v1886 = vpop.f32.mrf.mxu0
      %v1887 = vadd.f32 %v1726, %v1886
      %v1888 = vpop.f32.mrf.mxu0
      %v1889 = vpop.f32.mrf.mxu0
      %v1890 = vadd.f32 %v1729, %v1889
      %v1891 = vpop.f32.mrf.mxu0
      %1892 = vmatprep.mubr.bf16.mxu0 %v894
      %1893 = vmatmul.mubr.bf16.gmra.mxu0 %v893
      %v1894 = vpop.f32.mrf.mxu0
      %v1895 = vadd.f32 %v1734, %v1894
      %v1896 = vpop.f32.mrf.mxu0
      %v1897 = vpop.f32.mrf.mxu0
      %v1898 = vadd.f32 %v1737, %v1897
      %v1899 = vpop.f32.mrf.mxu0
      %1900 = vmatprep.mubr.bf16.mxu0 %v897
      %1901 = vmatmul.mubr.bf16.gmra.mxu0 %v896
      %v1902 = vpop.f32.mrf.mxu0
      %v1903 = vadd.f32 %v1742, %v1902
      %v1904 = vpop.f32.mrf.mxu0
      %v1905 = vpop.f32.mrf.mxu0
      %v1906 = vadd.f32 %v1745, %v1905
      %v1907 = vpop.f32.mrf.mxu0
      %1908 = vmatprep.mubr.bf16.mxu0 %v900
      %1909 = vmatmul.mubr.bf16.gmra.mxu0 %v899
      %v1910 = vpop.f32.mrf.mxu0
      %v1911 = vadd.f32 %v1750, %v1910
      %v1912 = vpop.f32.mrf.mxu0
      %v1913 = vpop.f32.mrf.mxu0
      %v1914 = vadd.f32 %v1753, %v1913
      %v1915 = vpop.f32.mrf.mxu0
      %1916 = vmatprep.mubr.bf16.mxu0 %v903
      %1917 = vmatmul.mubr.bf16.gmra.mxu0 %v902
      %v1918 = vpop.f32.mrf.mxu0
      %v1919 = vadd.f32 %v1758, %v1918
      %v1920 = vpop.f32.mrf.mxu0
      %v1921 = vpop.f32.mrf.mxu0
      %v1922 = vadd.f32 %v1761, %v1921
      %v1923 = vpop.f32.mrf.mxu0
      %1924 = vmatprep.mubr.bf16.mxu0 %v906
      %1925 = vmatmul.mubr.bf16.gmra.mxu0 %v905
      %v1926 = vpop.f32.mrf.mxu0
      %v1927 = vadd.f32 %v1766, %v1926
      %v1928 = vpop.f32.mrf.mxu0
      %v1929 = vpop.f32.mrf.mxu0
      %v1930 = vadd.f32 %v1769, %v1929
      %v1931 = vpop.f32.mrf.mxu0
      %1932 = vmatprep.mubr.bf16.mxu0 %v909
      %1933 = vmatmul.mubr.bf16.gmra.mxu0 %v908
      %v1934 = vpop.f32.mrf.mxu0
      %v1935 = vadd.f32 %v1774, %v1934
      %v1936 = vpop.f32.mrf.mxu0
      %v1937 = vpop.f32.mrf.mxu0
      %v1938 = vadd.f32 %v1777, %v1937
      %v1939 = vpop.f32.mrf.mxu0
      %1940 = vmatprep.mubr.bf16.mxu0 %v912
      %1941 = vmatmul.mubr.bf16.gmra.mxu0 %v911
      %v1942 = vpop.f32.mrf.mxu0
      %v1943 = vadd.f32 %v1782, %v1942
      %v1944 = vpop.f32.mrf.mxu0
      %v1945 = vpop.f32.mrf.mxu0
      %v1946 = vadd.f32 %v1785, %v1945
      %v1947 = vpop.f32.mrf.mxu0
      %1948 = vmatprep.mubr.bf16.mxu0 %v915
      %1949 = vmatmul.mubr.bf16.gmra.mxu0 %v914
      %v1950 = vpop.f32.mrf.mxu0
      %v1951 = vadd.f32 %v1790, %v1950
      %v1952 = vpop.f32.mrf.mxu0
      %v1953 = vpop.f32.mrf.mxu0
      %v1954 = vadd.f32 %v1793, %v1953
      %v1955 = vpop.f32.mrf.mxu0
      %1956 = vmatprep.mubr.bf16.mxu0 %v918
      %1957 = vmatmul.mubr.bf16.gmra.mxu0 %v917
      %v1958 = vpop.f32.mrf.mxu0
      %v1959 = vadd.f32 %v1798, %v1958
      %v1960 = vpop.f32.mrf.mxu0
      %v1961 = vpop.f32.mrf.mxu0
      %v1962 = vadd.f32 %v1801, %v1961
      %v1963 = vpop.f32.mrf.mxu0
      %1964 = vmatprep.mubr.bf16.mxu0 %v921
      %1965 = vmatmul.mubr.bf16.gmra.mxu0 %v920
      %v1966 = vpop.f32.mrf.mxu0
      %v1967 = vadd.f32 %v1806, %v1966
      %v1968 = vpop.f32.mrf.mxu0
      %v1969 = vpop.f32.mrf.mxu0
      %v1970 = vadd.f32 %v1809, %v1969
      %v1971 = vpop.f32.mrf.mxu0
      %1972 = vmatprep.mubr.bf16.mxu0 %v924
      %1973 = vmatmul.mubr.bf16.gmra.mxu0 %v923
      %v1974 = vpop.f32.mrf.mxu0
      %v1975 = vadd.f32 %v1814, %v1974
      %v1976 = vpop.f32.mrf.mxu0
      %v1977 = vpop.f32.mrf.mxu0
      %v1978 = vadd.f32 %v1817, %v1977
      %v1979 = vpop.f32.mrf.mxu0
      %1980 = vmatprep.mubr.bf16.mxu0 %v927
      %1981 = vmatmul.mubr.bf16.gmra.mxu0 %v926
      %v1982 = vpop.f32.mrf.mxu0
      %v1983 = vadd.f32 %v1822, %v1982
      %v1984 = vpop.f32.mrf.mxu0
      %v1985 = vpop.f32.mrf.mxu0
      %v1986 = vadd.f32 %v1825, %v1985
      %v1987 = vpop.f32.mrf.mxu0
      %1988 = vmatprep.mubr.bf16.mxu0 %v930
      %1989 = vmatmul.mubr.bf16.gmra.mxu0 %v929
      %v1990 = vpop.f32.mrf.mxu0
      %v1991 = vadd.f32 %v1830, %v1990
      %v1992 = vpop.f32.mrf.mxu0
      %v1993 = vpop.f32.mrf.mxu0
      %v1994 = vadd.f32 %v1833, %v1993
      %v1995 = vpop.f32.mrf.mxu0
      %1996 = vdwg.mxu0
      %1997 = vmatprep.subr.bf16.mxu0 0
      %1998 = vmatpush1.bf16.msra.mxu0 %v1425
      %1999 = vmatprep.subr.bf16.mxu0 0
      %2000 = vmatpush1.bf16.msra.mxu0 %v1424
      %2001 = vmatprep.subr.bf16.mxu0 0
      %2002 = vmatpush1.bf16.msra.mxu0 %v1423
      %2003 = vmatprep.subr.bf16.mxu0 0
      %2004 = vmatpush1.bf16.msra.mxu0 %v1422
      %2005 = vmatprep.subr.bf16.mxu0 0
      %2006 = vmatpush1.bf16.msra.mxu0 %v1421
      %2007 = vmatprep.subr.bf16.mxu0 0
      %2008 = vmatpush1.bf16.msra.mxu0 %v1420
      %2009 = vmatprep.subr.bf16.mxu0 0
      %2010 = vmatpush1.bf16.msra.mxu0 %v1419
      %2011 = vmatprep.subr.bf16.mxu0 0
      %2012 = vmatpush1.bf16.msra.mxu0 %v1418
      %2013 = vmatprep.subr.bf16.mxu0 0
      %2014 = vmatpush2.bf16.msra.mxu0 %v1433
      %2015 = vmatprep.subr.bf16.mxu0 0
      %2016 = vmatpush2.bf16.msra.mxu0 %v1432
      %2017 = vmatprep.subr.bf16.mxu0 0
      %2018 = vmatpush2.bf16.msra.mxu0 %v1431
      %2019 = vmatprep.subr.bf16.mxu0 0
      %2020 = vmatpush2.bf16.msra.mxu0 %v1430
      %2021 = vmatprep.subr.bf16.mxu0 0
      %2022 = vmatpush2.bf16.msra.mxu0 %v1429
      %2023 = vmatprep.subr.bf16.mxu0 0
      %2024 = vmatpush2.bf16.msra.mxu0 %v1428
      %2025 = vmatprep.subr.bf16.mxu0 0
      %2026 = vmatpush2.bf16.msra.mxu0 %v1427
      %2027 = vmatprep.subr.bf16.mxu0 0
      %2028 = vmatpush2.bf16.msra.mxu0 %v1426
      %2029 = vmatprep.mubr.bf16.mxu0 %v887
      %2030 = vmatmul.mubr.bf16.gmra.mxu0 %v886
      %v2031 = vpop.f32.mrf.mxu0
      %v2032 = vadd.f32 %v1871, %v2031
      %v2033 = vpop.f32.mrf.mxu0
      %v2034 = vpop.f32.mrf.mxu0
      %v2035 = vadd.f32 %v1874, %v2034
      %v2036 = vpop.f32.mrf.mxu0
      %2037 = vmatprep.mubr.bf16.mxu0 %v890
      %2038 = vmatmul.mubr.bf16.gmra.mxu0 %v889
      %v2039 = vpop.f32.mrf.mxu0
      %v2040 = vadd.f32 %v1879, %v2039
      %v2041 = vpop.f32.mrf.mxu0
      %v2042 = vpop.f32.mrf.mxu0
      %v2043 = vadd.f32 %v1882, %v2042
      %v2044 = vpop.f32.mrf.mxu0
      %2045 = vmatprep.mubr.bf16.mxu0 %v893
      %2046 = vmatmul.mubr.bf16.gmra.mxu0 %v892
      %v2047 = vpop.f32.mrf.mxu0
      %v2048 = vadd.f32 %v1887, %v2047
      %v2049 = vpop.f32.mrf.mxu0
      %v2050 = vpop.f32.mrf.mxu0
      %v2051 = vadd.f32 %v1890, %v2050
      %v2052 = vpop.f32.mrf.mxu0
      %2053 = vmatprep.mubr.bf16.mxu0 %v896
      %2054 = vmatmul.mubr.bf16.gmra.mxu0 %v895
      %v2055 = vpop.f32.mrf.mxu0
      %v2056 = vadd.f32 %v1895, %v2055
      %v2057 = vpop.f32.mrf.mxu0
      %v2058 = vpop.f32.mrf.mxu0
      %v2059 = vadd.f32 %v1898, %v2058
      %v2060 = vpop.f32.mrf.mxu0
      %2061 = vmatprep.mubr.bf16.mxu0 %v899
      %2062 = vmatmul.mubr.bf16.gmra.mxu0 %v898
      %v2063 = vpop.f32.mrf.mxu0
      %v2064 = vadd.f32 %v1903, %v2063
      %v2065 = vpop.f32.mrf.mxu0
      %v2066 = vpop.f32.mrf.mxu0
      %v2067 = vadd.f32 %v1906, %v2066
      %v2068 = vpop.f32.mrf.mxu0
      %2069 = vmatprep.mubr.bf16.mxu0 %v902
      %2070 = vmatmul.mubr.bf16.gmra.mxu0 %v901
      %v2071 = vpop.f32.mrf.mxu0
      %v2072 = vadd.f32 %v1911, %v2071
      %v2073 = vpop.f32.mrf.mxu0
      %v2074 = vpop.f32.mrf.mxu0
      %v2075 = vadd.f32 %v1914, %v2074
      %v2076 = vpop.f32.mrf.mxu0
      %2077 = vmatprep.mubr.bf16.mxu0 %v905
      %2078 = vmatmul.mubr.bf16.gmra.mxu0 %v904
      %v2079 = vpop.f32.mrf.mxu0
      %v2080 = vadd.f32 %v1919, %v2079
      %v2081 = vpop.f32.mrf.mxu0
      %v2082 = vpop.f32.mrf.mxu0
      %v2083 = vadd.f32 %v1922, %v2082
      %v2084 = vpop.f32.mrf.mxu0
      %2085 = vmatprep.mubr.bf16.mxu0 %v908
      %2086 = vmatmul.mubr.bf16.gmra.mxu0 %v907
      %v2087 = vpop.f32.mrf.mxu0
      %v2088 = vadd.f32 %v1927, %v2087
      %v2089 = vpop.f32.mrf.mxu0
      %v2090 = vpop.f32.mrf.mxu0
      %v2091 = vadd.f32 %v1930, %v2090
      %v2092 = vpop.f32.mrf.mxu0
      %2093 = vmatprep.mubr.bf16.mxu0 %v911
      %2094 = vmatmul.mubr.bf16.gmra.mxu0 %v910
      %v2095 = vpop.f32.mrf.mxu0
      %v2096 = vadd.f32 %v1935, %v2095
      %v2097 = vpop.f32.mrf.mxu0
      %v2098 = vpop.f32.mrf.mxu0
      %v2099 = vadd.f32 %v1938, %v2098
      %v2100 = vpop.f32.mrf.mxu0
      %2101 = vmatprep.mubr.bf16.mxu0 %v914
      %2102 = vmatmul.mubr.bf16.gmra.mxu0 %v913
      %v2103 = vpop.f32.mrf.mxu0
      %v2104 = vadd.f32 %v1943, %v2103
      %v2105 = vpop.f32.mrf.mxu0
      %v2106 = vpop.f32.mrf.mxu0
      %v2107 = vadd.f32 %v1946, %v2106
      %v2108 = vpop.f32.mrf.mxu0
      %2109 = vmatprep.mubr.bf16.mxu0 %v917
      %2110 = vmatmul.mubr.bf16.gmra.mxu0 %v916
      %v2111 = vpop.f32.mrf.mxu0
      %v2112 = vadd.f32 %v1951, %v2111
      %v2113 = vpop.f32.mrf.mxu0
      %v2114 = vpop.f32.mrf.mxu0
      %v2115 = vadd.f32 %v1954, %v2114
      %v2116 = vpop.f32.mrf.mxu0
      %2117 = vmatprep.mubr.bf16.mxu0 %v920
      %2118 = vmatmul.mubr.bf16.gmra.mxu0 %v919
      %v2119 = vpop.f32.mrf.mxu0
      %v2120 = vadd.f32 %v1959, %v2119
      %v2121 = vpop.f32.mrf.mxu0
      %v2122 = vpop.f32.mrf.mxu0
      %v2123 = vadd.f32 %v1962, %v2122
      %v2124 = vpop.f32.mrf.mxu0
      %2125 = vmatprep.mubr.bf16.mxu0 %v923
      %2126 = vmatmul.mubr.bf16.gmra.mxu0 %v922
      %v2127 = vpop.f32.mrf.mxu0
      %v2128 = vadd.f32 %v1967, %v2127
      %v2129 = vpop.f32.mrf.mxu0
      %v2130 = vpop.f32.mrf.mxu0
      %v2131 = vadd.f32 %v1970, %v2130
      %v2132 = vpop.f32.mrf.mxu0
      %2133 = vmatprep.mubr.bf16.mxu0 %v926
      %2134 = vmatmul.mubr.bf16.gmra.mxu0 %v925
      %v2135 = vpop.f32.mrf.mxu0
      %v2136 = vadd.f32 %v1975, %v2135
      %v2137 = vpop.f32.mrf.mxu0
      %v2138 = vpop.f32.mrf.mxu0
      %v2139 = vadd.f32 %v1978, %v2138
      %v2140 = vpop.f32.mrf.mxu0
      %2141 = vmatprep.mubr.bf16.mxu0 %v929
      %2142 = vmatmul.mubr.bf16.gmra.mxu0 %v928
      %v2143 = vpop.f32.mrf.mxu0
      %v2144 = vadd.f32 %v1983, %v2143
      %v2145 = vpop.f32.mrf.mxu0
      %v2146 = vpop.f32.mrf.mxu0
      %v2147 = vadd.f32 %v1986, %v2146
      %v2148 = vpop.f32.mrf.mxu0
      %2149 = vmatprep.mubr.bf16.mxu0 %v881
      %2150 = vmatmul.mubr.bf16.gmra.mxu0 %v880
      %v2151 = vpop.f32.mrf.mxu0
      %v2152 = vadd.f32 %v1991, %v2151
      %v2153 = vpop.f32.mrf.mxu0
      %v2154 = vpop.f32.mrf.mxu0
      %v2155 = vadd.f32 %v1994, %v2154
      %v2156 = vpop.f32.mrf.mxu0
      %2157 = vdwg.mxu0
      %2158 = vmatprep.subr.bf16.mxu0 0
      %2159 = vmatpush1.bf16.msra.mxu0 %v1441
      %2160 = vmatprep.subr.bf16.mxu0 0
      %2161 = vmatpush1.bf16.msra.mxu0 %v1440
      %2162 = vmatprep.subr.bf16.mxu0 0
      %2163 = vmatpush1.bf16.msra.mxu0 %v1439
      %2164 = vmatprep.subr.bf16.mxu0 0
      %2165 = vmatpush1.bf16.msra.mxu0 %v1438
      %2166 = vmatprep.subr.bf16.mxu0 0
      %2167 = vmatpush1.bf16.msra.mxu0 %v1437
      %2168 = vmatprep.subr.bf16.mxu0 0
      %2169 = vmatpush1.bf16.msra.mxu0 %v1436
      %2170 = vmatprep.subr.bf16.mxu0 0
      %2171 = vmatpush1.bf16.msra.mxu0 %v1435
      %2172 = vmatprep.subr.bf16.mxu0 0
      %2173 = vmatpush1.bf16.msra.mxu0 %v1434
      %2174 = vmatprep.subr.bf16.mxu0 0
      %2175 = vmatpush2.bf16.msra.mxu0 0
      %2176 = vmatprep.subr.bf16.mxu0 0
      %2177 = vmatpush2.bf16.msra.mxu0 0
      %2178 = vmatprep.subr.bf16.mxu0 0
      %2179 = vmatpush2.bf16.msra.mxu0 0
      %2180 = vmatprep.subr.bf16.mxu0 0
      %2181 = vmatpush2.bf16.msra.mxu0 0
      %2182 = vmatprep.subr.bf16.mxu0 0
      %2183 = vmatpush2.bf16.msra.mxu0 0
      %2184 = vmatprep.subr.bf16.mxu0 0
      %2185 = vmatpush2.bf16.msra.mxu0 0
      %2186 = vmatprep.subr.bf16.mxu0 0
      %2187 = vmatpush2.bf16.msra.mxu0 0
      %2188 = vmatprep.subr.bf16.mxu0 0
      %2189 = vmatpush2.bf16.msra.mxu0 0
      %2190 = vmatprep.mubr.bf16.mxu0 0
      %2191 = vmatmul.mubr.bf16.gmra.mxu0 %v888
      %v2192 = vpop.f32.mrf.mxu0
      %v2193 = vadd.f32 %v2032, %v2192
      %v2194 = vpop.f32.mrf.mxu0
      %v2195 = vpop.f32.mrf.mxu0
      %v2196 = vadd.f32 %v2035, %v2195
      %v2197 = vpop.f32.mrf.mxu0
      %2198 = vmatprep.mubr.bf16.mxu0 0
      %2199 = vmatmul.mubr.bf16.gmra.mxu0 %v891
      %v2200 = vpop.f32.mrf.mxu0
      %v2201 = vadd.f32 %v2040, %v2200
      %v2202 = vpop.f32.mrf.mxu0
      %v2203 = vpop.f32.mrf.mxu0
      %v2204 = vadd.f32 %v2043, %v2203
      %v2205 = vpop.f32.mrf.mxu0
      %2206 = vmatprep.mubr.bf16.mxu0 0
      %2207 = vmatmul.mubr.bf16.gmra.mxu0 %v894
      %v2208 = vpop.f32.mrf.mxu0
      %v2209 = vadd.f32 %v2048, %v2208
      %v2210 = vpop.f32.mrf.mxu0
      %v2211 = vpop.f32.mrf.mxu0
      %v2212 = vadd.f32 %v2051, %v2211
      %v2213 = vpop.f32.mrf.mxu0
      %2214 = vmatprep.mubr.bf16.mxu0 0
      %2215 = vmatmul.mubr.bf16.gmra.mxu0 %v897
      %v2216 = vpop.f32.mrf.mxu0
      %v2217 = vadd.f32 %v2056, %v2216
      %v2218 = vpop.f32.mrf.mxu0
      %v2219 = vpop.f32.mrf.mxu0
      %v2220 = vadd.f32 %v2059, %v2219
      %v2221 = vpop.f32.mrf.mxu0
      %2222 = vmatprep.mubr.bf16.mxu0 0
      %2223 = vmatmul.mubr.bf16.gmra.mxu0 %v900
      %v2224 = vpop.f32.mrf.mxu0
      %v2225 = vadd.f32 %v2064, %v2224
      %v2226 = vpop.f32.mrf.mxu0
      %v2227 = vpop.f32.mrf.mxu0
      %v2228 = vadd.f32 %v2067, %v2227
      %v2229 = vpop.f32.mrf.mxu0
      %2230 = vmatprep.mubr.bf16.mxu0 0
      %2231 = vmatmul.mubr.bf16.gmra.mxu0 %v903
      %v2232 = vpop.f32.mrf.mxu0
      %v2233 = vadd.f32 %v2072, %v2232
      %v2234 = vpop.f32.mrf.mxu0
      %v2235 = vpop.f32.mrf.mxu0
      %v2236 = vadd.f32 %v2075, %v2235
      %v2237 = vpop.f32.mrf.mxu0
      %2238 = vmatprep.mubr.bf16.mxu0 0
      %2239 = vmatmul.mubr.bf16.gmra.mxu0 %v906
      %v2240 = vpop.f32.mrf.mxu0
      %v2241 = vadd.f32 %v2080, %v2240
      %v2242 = vpop.f32.mrf.mxu0
      %v2243 = vpop.f32.mrf.mxu0
      %v2244 = vadd.f32 %v2083, %v2243
      %v2245 = vpop.f32.mrf.mxu0
      %2246 = vmatprep.mubr.bf16.mxu0 0
      %2247 = vmatmul.mubr.bf16.gmra.mxu0 %v909
      %v2248 = vpop.f32.mrf.mxu0
      %v2249 = vadd.f32 %v2088, %v2248
      %v2250 = vpop.f32.mrf.mxu0
      %v2251 = vpop.f32.mrf.mxu0
      %v2252 = vadd.f32 %v2091, %v2251
      %v2253 = vpop.f32.mrf.mxu0
      %2254 = vmatprep.mubr.bf16.mxu0 0
      %2255 = vmatmul.mubr.bf16.gmra.mxu0 %v912
      %v2256 = vpop.f32.mrf.mxu0
      %v2257 = vadd.f32 %v2096, %v2256
      %v2258 = vpop.f32.mrf.mxu0
      %v2259 = vpop.f32.mrf.mxu0
      %v2260 = vadd.f32 %v2099, %v2259
      %v2261 = vpop.f32.mrf.mxu0
      %2262 = vmatprep.mubr.bf16.mxu0 0
      %2263 = vmatmul.mubr.bf16.gmra.mxu0 %v915
      %v2264 = vpop.f32.mrf.mxu0
      %v2265 = vadd.f32 %v2104, %v2264
      %v2266 = vpop.f32.mrf.mxu0
      %v2267 = vpop.f32.mrf.mxu0
      %v2268 = vadd.f32 %v2107, %v2267
      %v2269 = vpop.f32.mrf.mxu0
      %2270 = vmatprep.mubr.bf16.mxu0 0
      %2271 = vmatmul.mubr.bf16.gmra.mxu0 %v918
      %v2272 = vpop.f32.mrf.mxu0
      %v2273 = vadd.f32 %v2112, %v2272
      %v2274 = vpop.f32.mrf.mxu0
      %v2275 = vpop.f32.mrf.mxu0
      %v2276 = vadd.f32 %v2115, %v2275
      %v2277 = vpop.f32.mrf.mxu0
      %2278 = vmatprep.mubr.bf16.mxu0 0
      %2279 = vmatmul.mubr.bf16.gmra.mxu0 %v921
      %v2280 = vpop.f32.mrf.mxu0
      %v2281 = vadd.f32 %v2120, %v2280
      %v2282 = vpop.f32.mrf.mxu0
      %v2283 = vpop.f32.mrf.mxu0
      %v2284 = vadd.f32 %v2123, %v2283
      %v2285 = vpop.f32.mrf.mxu0
      %2286 = vmatprep.mubr.bf16.mxu0 0
      %2287 = vmatmul.mubr.bf16.gmra.mxu0 %v924
      %v2288 = vpop.f32.mrf.mxu0
      %v2289 = vadd.f32 %v2128, %v2288
      %v2290 = vpop.f32.mrf.mxu0
      %v2291 = vpop.f32.mrf.mxu0
      %v2292 = vadd.f32 %v2131, %v2291
      %v2293 = vpop.f32.mrf.mxu0
      %2294 = vmatprep.mubr.bf16.mxu0 0
      %2295 = vmatmul.mubr.bf16.gmra.mxu0 %v927
      %v2296 = vpop.f32.mrf.mxu0
      %v2297 = vadd.f32 %v2136, %v2296
      %v2298 = vpop.f32.mrf.mxu0
      %v2299 = vpop.f32.mrf.mxu0
      %v2300 = vadd.f32 %v2139, %v2299
      %v2301 = vpop.f32.mrf.mxu0
      %2302 = vmatprep.mubr.bf16.mxu0 0
      %2303 = vmatmul.mubr.bf16.gmra.mxu0 %v930
      %v2304 = vpop.f32.mrf.mxu0
      %v2305 = vadd.f32 %v2144, %v2304
      %v2306 = vpop.f32.mrf.mxu0
      %v2307 = vpop.f32.mrf.mxu0
      %v2308 = vadd.f32 %v2147, %v2307
      %v2309 = vpop.f32.mrf.mxu0
      %2310 = vmatprep.mubr.bf16.mxu0 0
      %2311 = vmatmul.mubr.bf16.gmra.mxu0 %v882
      %v2312 = vpop.f32.mrf.mxu0
      %v2313 = vadd.f32 %v2152, %v2312
      %v2314 = vpop.f32.mrf.mxu0
      %v2315 = vpop.f32.mrf.mxu0
      %v2316 = vadd.f32 %v2155, %v2315
      %v2317 = vpop.f32.mrf.mxu0
      %2318 = vdwg.mxu0
      %v2319 = vmax.f32 %v2193, 0.0
      %v2320 = vmax.f32 %v2196, 0.0
      %v2321 = vmax.f32 %v2201, 0.0
      %v2322 = vmax.f32 %v2204, 0.0
      %v2323 = vmax.f32 %v2209, 0.0
      %v2324 = vmax.f32 %v2212, 0.0
      %v2325 = vmax.f32 %v2217, 0.0
      %v2326 = vmax.f32 %v2220, 0.0
      %v2327 = vmax.f32 %v2225, 0.0
      %v2328 = vmax.f32 %v2228, 0.0
      %v2329 = vmax.f32 %v2233, 0.0
      %v2330 = vmax.f32 %v2236, 0.0
      %v2331 = vmax.f32 %v2241, 0.0
      %v2332 = vmax.f32 %v2244, 0.0
      %v2333 = vmax.f32 %v2249, 0.0
      %v2334 = vmax.f32 %v2252, 0.0
      %v2335 = vmax.f32 %v2257, 0.0
      %v2336 = vmax.f32 %v2260, 0.0
      %v2337 = vmax.f32 %v2265, 0.0
      %v2338 = vmax.f32 %v2268, 0.0
      %v2339 = vmax.f32 %v2273, 0.0
      %v2340 = vmax.f32 %v2276, 0.0
      %v2341 = vmax.f32 %v2281, 0.0
      %v2342 = vmax.f32 %v2284, 0.0
      %v2343 = vmax.f32 %v2289, 0.0
      %v2344 = vmax.f32 %v2292, 0.0
      %v2345 = vmax.f32 %v2297, 0.0
      %v2346 = vmax.f32 %v2300, 0.0
      %v2347 = vmax.f32 %v2305, 0.0
      %v2348 = vmax.f32 %v2308, 0.0
      %v2349 = vmax.f32 %v2313, 0.0
      %v2350 = vmax.f32 %v2316, 0.0
      %v2381 = vrot.slane %v2319, 7
      %v2382 = vsel %vm678, %v679, %v2381
      %v2383 = vrot.slane %v2320, 7
      %v2384 = vsel %vm678, %v2381, %v2383
      %v2385 = vrot.slane %v2321, 7
      %v2386 = vsel %vm678, %v679, %v2385
      %v2387 = vrot.slane %v2322, 7
      %v2388 = vsel %vm678, %v2385, %v2387
      %v2389 = vrot.slane %v2323, 7
      %v2390 = vsel %vm678, %v679, %v2389
      %v2391 = vrot.slane %v2324, 7
      %v2392 = vsel %vm678, %v2389, %v2391
      %v2393 = vrot.slane %v2325, 7
      %v2394 = vsel %vm678, %v679, %v2393
      %v2395 = vrot.slane %v2326, 7
      %v2396 = vsel %vm678, %v2393, %v2395
      %v2397 = vrot.slane %v2327, 7
      %v2398 = vsel %vm678, %v679, %v2397
      %v2399 = vrot.slane %v2328, 7
      %v2400 = vsel %vm678, %v2397, %v2399
      %v2401 = vrot.slane %v2329, 7
      %v2402 = vsel %vm678, %v679, %v2401
      %v2403 = vrot.slane %v2330, 7
      %v2404 = vsel %vm678, %v2401, %v2403
      %v2405 = vrot.slane %v2331, 7
      %v2406 = vsel %vm678, %v679, %v2405
      %v2407 = vrot.slane %v2332, 7
      %v2408 = vsel %vm678, %v2405, %v2407
      %v2409 = vrot.slane %v2333, 7
      %v2410 = vsel %vm678, %v679, %v2409
      %v2411 = vrot.slane %v2334, 7
      %v2412 = vsel %vm678, %v2409, %v2411
      %v2413 = vrot.slane %v2335, 7
      %v2414 = vsel %vm678, %v679, %v2413
      %v2415 = vrot.slane %v2336, 7
      %v2416 = vsel %vm678, %v2413, %v2415
      %v2417 = vrot.slane %v2337, 7
      %v2418 = vsel %vm678, %v679, %v2417
      %v2419 = vrot.slane %v2338, 7
      %v2420 = vsel %vm678, %v2417, %v2419
      %v2421 = vrot.slane %v2339, 7
      %v2422 = vsel %vm678, %v679, %v2421
      %v2423 = vrot.slane %v2340, 7
      %v2424 = vsel %vm678, %v2421, %v2423
      %v2425 = vrot.slane %v2341, 7
      %v2426 = vsel %vm678, %v679, %v2425
      %v2427 = vrot.slane %v2342, 7
      %v2428 = vsel %vm678, %v2425, %v2427
      %v2429 = vrot.slane %v2343, 7
      %v2430 = vsel %vm678, %v679, %v2429
      %v2431 = vrot.slane %v2344, 7
      %v2432 = vsel %vm678, %v2429, %v2431
      %v2433 = vrot.slane %v2345, 7
      %v2434 = vsel %vm678, %v679, %v2433
      %v2435 = vrot.slane %v2346, 7
      %v2436 = vsel %vm678, %v2433, %v2435
      %v2437 = vrot.slane %v2347, 7
      %v2438 = vsel %vm678, %v679, %v2437
      %v2439 = vrot.slane %v2348, 7
      %v2440 = vsel %vm678, %v2437, %v2439
      %v2471 = vrot.slane %v2319, 1
      %v2472 = vrot.slane %v2320, 1
      %v2473 = vsel %vm772, %v2471, %v2472
      %v2474 = vsel %vm772, %v2472, %v773
      %v2475 = vrot.slane %v2321, 1
      %v2476 = vrot.slane %v2322, 1
      %v2477 = vsel %vm772, %v2475, %v2476
      %v2478 = vsel %vm772, %v2476, %v773
      %v2479 = vrot.slane %v2323, 1
      %v2480 = vrot.slane %v2324, 1
      %v2481 = vsel %vm772, %v2479, %v2480
      %v2482 = vsel %vm772, %v2480, %v773
      %v2483 = vrot.slane %v2325, 1
      %v2484 = vrot.slane %v2326, 1
      %v2485 = vsel %vm772, %v2483, %v2484
      %v2486 = vsel %vm772, %v2484, %v773
      %v2487 = vrot.slane %v2327, 1
      %v2488 = vrot.slane %v2328, 1
      %v2489 = vsel %vm772, %v2487, %v2488
      %v2490 = vsel %vm772, %v2488, %v773
      %v2491 = vrot.slane %v2329, 1
      %v2492 = vrot.slane %v2330, 1
      %v2493 = vsel %vm772, %v2491, %v2492
      %v2494 = vsel %vm772, %v2492, %v773
      %v2495 = vrot.slane %v2331, 1
      %v2496 = vrot.slane %v2332, 1
      %v2497 = vsel %vm772, %v2495, %v2496
      %v2498 = vsel %vm772, %v2496, %v773
      %v2499 = vrot.slane %v2333, 1
      %v2500 = vrot.slane %v2334, 1
      %v2501 = vsel %vm772, %v2499, %v2500
      %v2502 = vsel %vm772, %v2500, %v773
      %v2503 = vrot.slane %v2335, 1
      %v2504 = vrot.slane %v2336, 1
      %v2505 = vsel %vm772, %v2503, %v2504
      %v2506 = vsel %vm772, %v2504, %v773
      %v2507 = vrot.slane %v2337, 1
      %v2508 = vrot.slane %v2338, 1
      %v2509 = vsel %vm772, %v2507, %v2508
      %v2510 = vsel %vm772, %v2508, %v773
      %v2511 = vrot.slane %v2339, 1
      %v2512 = vrot.slane %v2340, 1
      %v2513 = vsel %vm772, %v2511, %v2512
      %v2514 = vsel %vm772, %v2512, %v773
      %v2515 = vrot.slane %v2341, 1
      %v2516 = vrot.slane %v2342, 1
      %v2517 = vsel %vm772, %v2515, %v2516
      %v2518 = vsel %vm772, %v2516, %v773
      %v2519 = vrot.slane %v2343, 1
      %v2520 = vrot.slane %v2344, 1
      %v2521 = vsel %vm772, %v2519, %v2520
      %v2522 = vsel %vm772, %v2520, %v773
      %v2523 = vrot.slane %v2345, 1
      %v2524 = vrot.slane %v2346, 1
      %v2525 = vsel %vm772, %v2523, %v2524
      %v2526 = vsel %vm772, %v2524, %v773
      %v2527 = vrot.slane %v2347, 1
      %v2528 = vrot.slane %v2348, 1
      %v2529 = vsel %vm772, %v2527, %v2528
      %v2530 = vsel %vm772, %v2528, %v773
      %v2563 = vrot.slane %v2349, 7
      %v2564 = vsel %vm678, %v679, %v2563
      %v2565 = vrot.slane %v2350, 7
      %v2566 = vsel %vm678, %v2563, %v2565
      %v2569 = vrot.slane %v2349, 1
      %v2570 = vrot.slane %v2350, 1
      %v2571 = vsel %vm772, %v2569, %v2570
      %v2572 = vsel %vm772, %v2570, %v773
      %v2575 = vpack.c.bf16 %v2384, %v2382
      %v2576 = vpack.c.bf16 %v2320, %v2319
      %v2577 = vpack.c.bf16 %v2474, %v2473
      %v2578 = vpack.c.bf16 %v2388, %v2386
      %v2579 = vpack.c.bf16 %v2322, %v2321
      %v2580 = vpack.c.bf16 %v2478, %v2477
      %v2581 = vpack.c.bf16 %v2392, %v2390
      %v2582 = vpack.c.bf16 %v2324, %v2323
      %v2583 = vpack.c.bf16 %v2482, %v2481
      %v2584 = vpack.c.bf16 %v2396, %v2394
      %v2585 = vpack.c.bf16 %v2326, %v2325
      %v2586 = vpack.c.bf16 %v2486, %v2485
      %v2587 = vpack.c.bf16 %v2400, %v2398
      %v2588 = vpack.c.bf16 %v2328, %v2327
      %v2589 = vpack.c.bf16 %v2490, %v2489
      %v2590 = vpack.c.bf16 %v2404, %v2402
      %v2591 = vpack.c.bf16 %v2330, %v2329
      %v2592 = vpack.c.bf16 %v2494, %v2493
      %v2593 = vpack.c.bf16 %v2408, %v2406
      %v2594 = vpack.c.bf16 %v2332, %v2331
      %v2595 = vpack.c.bf16 %v2498, %v2497
      %v2596 = vpack.c.bf16 %v2412, %v2410
      %v2597 = vpack.c.bf16 %v2334, %v2333
      %v2598 = vpack.c.bf16 %v2502, %v2501
      %v2599 = vpack.c.bf16 %v2416, %v2414
      %v2600 = vpack.c.bf16 %v2336, %v2335
      %v2601 = vpack.c.bf16 %v2506, %v2505
      %v2602 = vpack.c.bf16 %v2420, %v2418
      %v2603 = vpack.c.bf16 %v2338, %v2337
      %v2604 = vpack.c.bf16 %v2510, %v2509
      %v2605 = vpack.c.bf16 %v2424, %v2422
      %v2606 = vpack.c.bf16 %v2340, %v2339
      %v2607 = vpack.c.bf16 %v2514, %v2513
      %v2608 = vpack.c.bf16 %v2428, %v2426
      %v2609 = vpack.c.bf16 %v2342, %v2341
      %v2610 = vpack.c.bf16 %v2518, %v2517
      %v2611 = vpack.c.bf16 %v2432, %v2430
      %v2612 = vpack.c.bf16 %v2344, %v2343
      %v2613 = vpack.c.bf16 %v2522, %v2521
      %v2614 = vpack.c.bf16 %v2436, %v2434
      %v2615 = vpack.c.bf16 %v2346, %v2345
      %v2616 = vpack.c.bf16 %v2526, %v2525
      %v2617 = vpack.c.bf16 %v2440, %v2438
      %v2618 = vpack.c.bf16 %v2348, %v2347
      %v2619 = vpack.c.bf16 %v2530, %v2529
      %v2620 = vpack.c.bf16 %v2566, %v2564
      %v2621 = vpack.c.bf16 %v2350, %v2349
      %v2622 = vpack.c.bf16 %v2572, %v2571
      %v2623 = vld [vmem:[%s5] sm:$0xf]
      %v2624 = vld [vmem:[%s5 + $0x4] sm:$0xf]
      %v2625 = vld [vmem:[%s5 + $0x8] sm:$0xf]
      %v2626 = vld [vmem:[%s5 + $0xc] sm:$0xf]
      %v2627 = vld [vmem:[%s5 + $0x10] sm:$0xf]
      %v2628 = vld [vmem:[%s5 + $0x14] sm:$0xf]
      %v2629 = vld [vmem:[%s5 + $0x18] sm:$0xf]
      %v2630 = vld [vmem:[%s5 + $0x1c] sm:$0xf]
      %v2631 = vld [vmem:[%s5 + $0x20] sm:$0xf]
      %v2632 = vld [vmem:[%s5 + $0x24] sm:$0xf]
      %v2633 = vld [vmem:[%s5 + $0x28] sm:$0xf]
      %v2634 = vld [vmem:[%s5 + $0x2c] sm:$0xf]
      %v2635 = vld [vmem:[%s5 + $0x30] sm:$0xf]
      %v2636 = vld [vmem:[%s5 + $0x34] sm:$0xf]
      %v2637 = vld [vmem:[%s5 + $0x38] sm:$0xf]
      %v2638 = vld [vmem:[%s5 + $0x3c] sm:$0xf]
      %v2639 = vld [vmem:[%s5 + $0x40] sm:$0xf]
      %v2640 = vld [vmem:[%s5 + $0x44] sm:$0xf]
      %v2641 = vld [vmem:[%s5 + $0x48] sm:$0xf]
      %v2642 = vld [vmem:[%s5 + $0x4c] sm:$0xf]
      %v2643 = vld [vmem:[%s5 + $0x50] sm:$0xf]
      %v2644 = vld [vmem:[%s5 + $0x54] sm:$0xf]
      %v2645 = vld [vmem:[%s5 + $0x58] sm:$0xf]
      %v2646 = vld [vmem:[%s5 + $0x5c] sm:$0xf]
      %v2647 = vld [vmem:[%s5 + $0x60] sm:$0xf]
      %v2648 = vld [vmem:[%s5 + $0x64] sm:$0xf]
      %v2649 = vld [vmem:[%s5 + $0x68] sm:$0xf]
      %v2650 = vld [vmem:[%s5 + $0x6c] sm:$0xf]
      %v2651 = vld [vmem:[%s5 + $0x70] sm:$0xf]
      %v2652 = vld [vmem:[%s5 + $0x74] sm:$0xf]
      %v2653 = vld [vmem:[%s5 + $0x78] sm:$0xf]
      %v2654 = vld [vmem:[%s5 + $0x7c] sm:$0xf]
      %v2655 = vld [vmem:[%s5 + $0x80] sm:$0xf]
      %v2656 = vld [vmem:[%s5 + $0x84] sm:$0xf]
      %v2657 = vld [vmem:[%s5 + $0x88] sm:$0xf]
      %v2658 = vld [vmem:[%s5 + $0x8c] sm:$0xf]
      %v2659 = vld [vmem:[%s5 + $0x90] sm:$0xf]
      %v2660 = vld [vmem:[%s5 + $0x94] sm:$0xf]
      %v2661 = vld [vmem:[%s5 + $0x98] sm:$0xf]
      %v2662 = vld [vmem:[%s5 + $0x9c] sm:$0xf]
      %v2663 = vld [vmem:[%s5 + $0xa0] sm:$0xf]
      %v2664 = vld [vmem:[%s5 + $0xa4] sm:$0xf]
      %v2665 = vld [vmem:[%s5 + $0xa8] sm:$0xf]
      %v2666 = vld [vmem:[%s5 + $0xac] sm:$0xf]
      %v2667 = vld [vmem:[%s5 + $0xb0] sm:$0xf]
      %v2668 = vld [vmem:[%s5 + $0xb4] sm:$0xf]
      %v2669 = vld [vmem:[%s5 + $0xb8] sm:$0xf]
      %v2670 = vld [vmem:[%s5 + $0xbc] sm:$0xf]
      %v2671 = vld [vmem:[%s5 + $0xc0] sm:$0xf]
      %v2672 = vld [vmem:[%s5 + $0xc4] sm:$0xf]
      %v2673 = vld [vmem:[%s5 + $0xc8] sm:$0xf]
      %v2674 = vld [vmem:[%s5 + $0xcc] sm:$0xf]
      %v2675 = vld [vmem:[%s5 + $0xd0] sm:$0xf]
      %v2676 = vld [vmem:[%s5 + $0xd4] sm:$0xf]
      %v2677 = vld [vmem:[%s5 + $0xd8] sm:$0xf]
      %v2678 = vld [vmem:[%s5 + $0xdc] sm:$0xf]
      %v2679 = vld [vmem:[%s5 + $0xe0] sm:$0xf]
      %v2680 = vld [vmem:[%s5 + $0xe4] sm:$0xf]
      %v2681 = vld [vmem:[%s5 + $0xe8] sm:$0xf]
      %v2682 = vld [vmem:[%s5 + $0xec] sm:$0xf]
      %v2683 = vld [vmem:[%s5 + $0xf0] sm:$0xf]
      %v2684 = vld [vmem:[%s5 + $0xf4] sm:$0xf]
      %v2685 = vld [vmem:[%s5 + $0xf8] sm:$0xf]
      %v2686 = vld [vmem:[%s5 + $0xfc] sm:$0xf]
      %v2687 = vld [vmem:[%s5 + $0x100] sm:$0xf]
      %v2688 = vld [vmem:[%s5 + $0x104] sm:$0xf]
      %v2689 = vld [vmem:[%s5 + $0x108] sm:$0xf]
      %v2690 = vld [vmem:[%s5 + $0x10c] sm:$0xf]
      %v2691 = vld [vmem:[%s5 + $0x110] sm:$0xf]
      %v2692 = vld [vmem:[%s5 + $0x114] sm:$0xf]
      %v2693 = vld [vmem:[%s5 + $0x118] sm:$0xf]
      %v2694 = vld [vmem:[%s5 + $0x11c] sm:$0xf]
      %v2695 = vld [vmem:[%s5 + $0x120] sm:$0xf]
      %v2696 = vld [vmem:[%s5 + $0x124] sm:$0xf]
      %v2697 = vld [vmem:[%s5 + $0x128] sm:$0xf]
      %v2698 = vld [vmem:[%s5 + $0x12c] sm:$0xf]
      %v2699 = vld [vmem:[%s5 + $0x130] sm:$0xf]
      %v2700 = vld [vmem:[%s5 + $0x134] sm:$0xf]
      %v2701 = vld [vmem:[%s5 + $0x138] sm:$0xf]
      %v2702 = vld [vmem:[%s5 + $0x13c] sm:$0xf]
      %v2703 = vld [vmem:[%s5 + $0x140] sm:$0xf]
      %v2704 = vld [vmem:[%s5 + $0x144] sm:$0xf]
      %v2705 = vld [vmem:[%s5 + $0x148] sm:$0xf]
      %v2706 = vld [vmem:[%s5 + $0x14c] sm:$0xf]
      %v2707 = vld [vmem:[%s5 + $0x150] sm:$0xf]
      %v2708 = vld [vmem:[%s5 + $0x154] sm:$0xf]
      %v2709 = vld [vmem:[%s5 + $0x158] sm:$0xf]
      %v2710 = vld [vmem:[%s5 + $0x15c] sm:$0xf]
      %v2711 = vld [vmem:[%s5 + $0x160] sm:$0xf]
      %v2712 = vld [vmem:[%s5 + $0x164] sm:$0xf]
      %v2713 = vld [vmem:[%s5 + $0x168] sm:$0xf]
      %v2714 = vld [vmem:[%s5 + $0x16c] sm:$0xf]
      %v2715 = vld [vmem:[%s5 + $0x170] sm:$0xf]
      %v2716 = vld [vmem:[%s5 + $0x174] sm:$0xf]
      %v2717 = vld [vmem:[%s5 + $0x178] sm:$0xf]
      %v2718 = vld [vmem:[%s5 + $0x17c] sm:$0xf]
      %v2719 = vld [vmem:[%s5 + $0x180] sm:$0xf]
      %v2720 = vld [vmem:[%s5 + $0x184] sm:$0xf]
      %v2721 = vld [vmem:[%s5 + $0x188] sm:$0xf]
      %v2722 = vld [vmem:[%s5 + $0x18c] sm:$0xf]
      %v2723 = vld [vmem:[%s5 + $0x190] sm:$0xf]
      %v2724 = vld [vmem:[%s5 + $0x194] sm:$0xf]
      %v2725 = vld [vmem:[%s5 + $0x198] sm:$0xf]
      %v2726 = vld [vmem:[%s5 + $0x19c] sm:$0xf]
      %v2727 = vld [vmem:[%s5 + $0x1a0] sm:$0xf]
      %v2728 = vld [vmem:[%s5 + $0x1a4] sm:$0xf]
      %v2729 = vld [vmem:[%s5 + $0x1a8] sm:$0xf]
      %v2730 = vld [vmem:[%s5 + $0x1ac] sm:$0xf]
      %v2731 = vld [vmem:[%s5 + $0x1b0] sm:$0xf]
      %v2732 = vld [vmem:[%s5 + $0x1b4] sm:$0xf]
      %v2733 = vld [vmem:[%s5 + $0x1b8] sm:$0xf]
      %v2734 = vld [vmem:[%s5 + $0x1bc] sm:$0xf]
      %v2735 = vld [vmem:[%s5 + $0x1c0] sm:$0xf]
      %v2736 = vld [vmem:[%s5 + $0x1c4] sm:$0xf]
      %v2737 = vld [vmem:[%s5 + $0x1c8] sm:$0xf]
      %v2738 = vld [vmem:[%s5 + $0x1cc] sm:$0xf]
      %v2739 = vld [vmem:[%s5 + $0x1d0] sm:$0xf]
      %v2740 = vld [vmem:[%s5 + $0x1d4] sm:$0xf]
      %v2741 = vld [vmem:[%s5 + $0x1d8] sm:$0xf]
      %v2742 = vld [vmem:[%s5 + $0x1dc] sm:$0xf]
      %v2743 = vld [vmem:[%s5 + $0x1e0] sm:$0xf]
      %v2744 = vld [vmem:[%s5 + $0x1e4] sm:$0xf]
      %v2745 = vld [vmem:[%s5 + $0x1e8] sm:$0xf]
      %v2746 = vld [vmem:[%s5 + $0x1ec] sm:$0xf]
      %v2747 = vld [vmem:[%s5 + $0x1f0] sm:$0xf]
      %v2748 = vld [vmem:[%s5 + $0x1f4] sm:$0xf]
      %v2749 = vld [vmem:[%s5 + $0x1f8] sm:$0xf]
      %v2750 = vld [vmem:[%s5 + $0x1fc] sm:$0xf]
      %v2751 = vld [vmem:[%s5 + $0x200] sm:$0xf]
      %v2752 = vld [vmem:[%s5 + $0x204] sm:$0xf]
      %v2753 = vld [vmem:[%s5 + $0x208] sm:$0xf]
      %v2754 = vld [vmem:[%s5 + $0x20c] sm:$0xf]
      %v2755 = vld [vmem:[%s5 + $0x210] sm:$0xf]
      %v2756 = vld [vmem:[%s5 + $0x214] sm:$0xf]
      %v2757 = vld [vmem:[%s5 + $0x218] sm:$0xf]
      %v2758 = vld [vmem:[%s5 + $0x21c] sm:$0xf]
      %v2759 = vld [vmem:[%s5 + $0x220] sm:$0xf]
      %v2760 = vld [vmem:[%s5 + $0x224] sm:$0xf]
      %v2761 = vld [vmem:[%s5 + $0x228] sm:$0xf]
      %v2762 = vld [vmem:[%s5 + $0x22c] sm:$0xf]
      %v2763 = vld [vmem:[%s5 + $0x230] sm:$0xf]
      %v2764 = vld [vmem:[%s5 + $0x234] sm:$0xf]
      %v2765 = vld [vmem:[%s5 + $0x238] sm:$0xf]
      %v2766 = vld [vmem:[%s5 + $0x23c] sm:$0xf]
      %v2767 = vld [vmem:[%s6] sm:$0x1]
      %v2769 = vlaneseq
      %v2770 = vshrl.u32 %v2769, 7
      %v2771 = vsub.s32 0, %v2770
      %v2772 = vrot.slane %v2767, %v2771
      %v2918 = vunpack.c.l.b16 %v2623
      %v2919 = vunpack.c.l.b16 %v2624
      %v2920 = vunpack.c.l.b16 %v2625
      %v2921 = vunpack.c.l.b16 %v2626
      %v2922 = vunpack.c.l.b16 %v2627
      %v2923 = vunpack.c.l.b16 %v2628
      %v2924 = vunpack.c.l.b16 %v2629
      %v2925 = vunpack.c.l.b16 %v2630
      %v2926 = vunpack.c.l.b16 %v2631
      %v2927 = vunpack.c.l.b16 %v2632
      %v2928 = vunpack.c.l.b16 %v2633
      %v2929 = vunpack.c.l.b16 %v2634
      %v2930 = vunpack.c.l.b16 %v2635
      %v2931 = vunpack.c.l.b16 %v2636
      %v2932 = vunpack.c.l.b16 %v2637
      %v2933 = vunpack.c.l.b16 %v2638
      %v2934 = vunpack.c.l.b16 %v2639
      %v2935 = vunpack.c.l.b16 %v2640
      %v2936 = vunpack.c.l.b16 %v2641
      %v2937 = vunpack.c.l.b16 %v2642
      %v2938 = vunpack.c.l.b16 %v2643
      %v2939 = vunpack.c.l.b16 %v2644
      %v2940 = vunpack.c.l.b16 %v2645
      %v2941 = vunpack.c.l.b16 %v2646
      %v2942 = vunpack.c.l.b16 %v2647
      %v2943 = vunpack.c.l.b16 %v2648
      %v2944 = vunpack.c.l.b16 %v2649
      %v2945 = vunpack.c.l.b16 %v2650
      %v2946 = vunpack.c.l.b16 %v2651
      %v2947 = vunpack.c.l.b16 %v2652
      %v2948 = vunpack.c.l.b16 %v2653
      %v2949 = vunpack.c.l.b16 %v2654
      %v2950 = vunpack.c.l.b16 %v2655
      %v2951 = vunpack.c.l.b16 %v2656
      %v2952 = vunpack.c.l.b16 %v2657
      %v2953 = vunpack.c.l.b16 %v2658
      %v2954 = vunpack.c.l.b16 %v2659
      %v2955 = vunpack.c.l.b16 %v2660
      %v2956 = vunpack.c.l.b16 %v2661
      %v2957 = vunpack.c.l.b16 %v2662
      %v2958 = vunpack.c.l.b16 %v2663
      %v2959 = vunpack.c.l.b16 %v2664
      %v2960 = vunpack.c.l.b16 %v2665
      %v2961 = vunpack.c.l.b16 %v2666
      %v2962 = vunpack.c.l.b16 %v2667
      %v2963 = vunpack.c.l.b16 %v2668
      %v2964 = vunpack.c.l.b16 %v2669
      %v2965 = vunpack.c.l.b16 %v2670
      %v2966 = vunpack.c.l.b16 %v2671
      %v2967 = vunpack.c.l.b16 %v2672
      %v2968 = vunpack.c.l.b16 %v2673
      %v2969 = vunpack.c.l.b16 %v2674
      %v2970 = vunpack.c.l.b16 %v2675
      %v2971 = vunpack.c.l.b16 %v2676
      %v2972 = vunpack.c.l.b16 %v2677
      %v2973 = vunpack.c.l.b16 %v2678
      %v2974 = vunpack.c.l.b16 %v2679
      %v2975 = vunpack.c.l.b16 %v2680
      %v2976 = vunpack.c.l.b16 %v2681
      %v2977 = vunpack.c.l.b16 %v2682
      %v2978 = vunpack.c.l.b16 %v2683
      %v2979 = vunpack.c.l.b16 %v2684
      %v2980 = vunpack.c.l.b16 %v2685
      %v2981 = vunpack.c.l.b16 %v2686
      %v2982 = vunpack.c.l.b16 %v2687
      %v2983 = vunpack.c.l.b16 %v2688
      %v2984 = vunpack.c.l.b16 %v2689
      %v2985 = vunpack.c.l.b16 %v2690
      %v2986 = vunpack.c.l.b16 %v2691
      %v2987 = vunpack.c.l.b16 %v2692
      %v2988 = vunpack.c.l.b16 %v2693
      %v2989 = vunpack.c.l.b16 %v2694
      %v2990 = vunpack.c.l.b16 %v2695
      %v2991 = vunpack.c.l.b16 %v2696
      %v2992 = vunpack.c.l.b16 %v2697
      %v2993 = vunpack.c.l.b16 %v2698
      %v2994 = vunpack.c.l.b16 %v2699
      %v2995 = vunpack.c.l.b16 %v2700
      %v2996 = vunpack.c.l.b16 %v2701
      %v2997 = vunpack.c.l.b16 %v2702
      %v2998 = vunpack.c.l.b16 %v2703
      %v2999 = vunpack.c.l.b16 %v2704
      %v3000 = vunpack.c.l.b16 %v2705
      %v3001 = vunpack.c.l.b16 %v2706
      %v3002 = vunpack.c.l.b16 %v2707
      %v3003 = vunpack.c.l.b16 %v2708
      %v3004 = vunpack.c.l.b16 %v2709
      %v3005 = vunpack.c.l.b16 %v2710
      %v3006 = vunpack.c.l.b16 %v2711
      %v3007 = vunpack.c.l.b16 %v2712
      %v3008 = vunpack.c.l.b16 %v2713
      %v3009 = vunpack.c.l.b16 %v2714
      %v3010 = vunpack.c.l.b16 %v2715
      %v3011 = vunpack.c.l.b16 %v2716
      %v3012 = vunpack.c.l.b16 %v2717
      %v3013 = vunpack.c.l.b16 %v2718
      %v3014 = vunpack.c.l.b16 %v2719
      %v3015 = vunpack.c.l.b16 %v2720
      %v3016 = vunpack.c.l.b16 %v2721
      %v3017 = vunpack.c.l.b16 %v2722
      %v3018 = vunpack.c.l.b16 %v2723
      %v3019 = vunpack.c.l.b16 %v2724
      %v3020 = vunpack.c.l.b16 %v2725
      %v3021 = vunpack.c.l.b16 %v2726
      %v3022 = vunpack.c.l.b16 %v2727
      %v3023 = vunpack.c.l.b16 %v2728
      %v3024 = vunpack.c.l.b16 %v2729
      %v3025 = vunpack.c.l.b16 %v2730
      %v3026 = vunpack.c.l.b16 %v2731
      %v3027 = vunpack.c.l.b16 %v2732
      %v3028 = vunpack.c.l.b16 %v2733
      %v3029 = vunpack.c.l.b16 %v2734
      %v3030 = vunpack.c.l.b16 %v2735
      %v3031 = vunpack.c.l.b16 %v2736
      %v3032 = vunpack.c.l.b16 %v2737
      %v3033 = vunpack.c.l.b16 %v2738
      %v3034 = vunpack.c.l.b16 %v2739
      %v3035 = vunpack.c.l.b16 %v2740
      %v3036 = vunpack.c.l.b16 %v2741
      %v3037 = vunpack.c.l.b16 %v2742
      %v3038 = vunpack.c.l.b16 %v2743
      %v3039 = vunpack.c.l.b16 %v2744
      %v3040 = vunpack.c.l.b16 %v2745
      %v3041 = vunpack.c.l.b16 %v2746
      %v3042 = vunpack.c.l.b16 %v2747
      %v3043 = vunpack.c.l.b16 %v2748
      %v3044 = vunpack.c.l.b16 %v2749
      %v3045 = vunpack.c.l.b16 %v2750
      %v3046 = vunpack.c.l.b16 %v2751
      %v3047 = vunpack.c.l.b16 %v2752
      %v3048 = vunpack.c.l.b16 %v2753
      %v3049 = vunpack.c.l.b16 %v2754
      %v3050 = vunpack.c.l.b16 %v2755
      %v3051 = vunpack.c.l.b16 %v2756
      %v3052 = vunpack.c.l.b16 %v2757
      %v3053 = vunpack.c.l.b16 %v2758
      %v3054 = vunpack.c.l.b16 %v2759
      %v3055 = vunpack.c.l.b16 %v2760
      %v3056 = vunpack.c.l.b16 %v2761
      %v3057 = vunpack.c.l.b16 %v2762
      %v3058 = vunpack.c.l.b16 %v2763
      %v3059 = vunpack.c.l.b16 %v2764
      %v3060 = vunpack.c.l.b16 %v2765
      %v3061 = vunpack.c.l.b16 %v2766
      %v3062 = vpack.c.b16 %v2919, %v2918
      %v3063 = vpack.c.b16 %v2921, %v2920
      %v3064 = vpack.c.b16 %v2923, %v2922
      %v3065 = vpack.c.b16 %v2925, %v2924
      %v3066 = vpack.c.b16 %v2927, %v2926
      %v3067 = vpack.c.b16 %v2929, %v2928
      %v3068 = vpack.c.b16 %v2931, %v2930
      %v3069 = vpack.c.b16 %v2933, %v2932
      %v3070 = vpack.c.b16 %v2935, %v2934
      %v3071 = vpack.c.b16 %v2937, %v2936
      %v3072 = vpack.c.b16 %v2939, %v2938
      %v3073 = vpack.c.b16 %v2941, %v2940
      %v3074 = vpack.c.b16 %v2943, %v2942
      %v3075 = vpack.c.b16 %v2945, %v2944
      %v3076 = vpack.c.b16 %v2947, %v2946
      %v3077 = vpack.c.b16 %v2949, %v2948
      %v3078 = vpack.c.b16 %v2951, %v2950
      %v3079 = vpack.c.b16 %v2953, %v2952
      %v3080 = vpack.c.b16 %v2955, %v2954
      %v3081 = vpack.c.b16 %v2957, %v2956
      %v3082 = vpack.c.b16 %v2959, %v2958
      %v3083 = vpack.c.b16 %v2961, %v2960
      %v3084 = vpack.c.b16 %v2963, %v2962
      %v3085 = vpack.c.b16 %v2965, %v2964
      %v3086 = vpack.c.b16 %v2967, %v2966
      %v3087 = vpack.c.b16 %v2969, %v2968
      %v3088 = vpack.c.b16 %v2971, %v2970
      %v3089 = vpack.c.b16 %v2973, %v2972
      %v3090 = vpack.c.b16 %v2975, %v2974
      %v3091 = vpack.c.b16 %v2977, %v2976
      %v3092 = vpack.c.b16 %v2979, %v2978
      %v3093 = vpack.c.b16 %v2981, %v2980
      %v3094 = vpack.c.b16 %v2983, %v2982
      %v3095 = vpack.c.b16 %v2985, %v2984
      %v3096 = vpack.c.b16 %v2987, %v2986
      %v3097 = vpack.c.b16 %v2989, %v2988
      %v3098 = vpack.c.b16 %v2991, %v2990
      %v3099 = vpack.c.b16 %v2993, %v2992
      %v3100 = vpack.c.b16 %v2995, %v2994
      %v3101 = vpack.c.b16 %v2997, %v2996
      %v3102 = vpack.c.b16 %v2999, %v2998
      %v3103 = vpack.c.b16 %v3001, %v3000
      %v3104 = vpack.c.b16 %v3003, %v3002
      %v3105 = vpack.c.b16 %v3005, %v3004
      %v3106 = vpack.c.b16 %v3007, %v3006
      %v3107 = vpack.c.b16 %v3009, %v3008
      %v3108 = vpack.c.b16 %v3011, %v3010
      %v3109 = vpack.c.b16 %v3013, %v3012
      %v3110 = vpack.c.b16 %v3015, %v3014
      %v3111 = vpack.c.b16 %v3017, %v3016
      %v3112 = vpack.c.b16 %v3019, %v3018
      %v3113 = vpack.c.b16 %v3021, %v3020
      %v3114 = vpack.c.b16 %v3023, %v3022
      %v3115 = vpack.c.b16 %v3025, %v3024
      %v3116 = vpack.c.b16 %v3027, %v3026
      %v3117 = vpack.c.b16 %v3029, %v3028
      %v3118 = vpack.c.b16 %v3031, %v3030
      %v3119 = vpack.c.b16 %v3033, %v3032
      %v3120 = vpack.c.b16 %v3035, %v3034
      %v3121 = vpack.c.b16 %v3037, %v3036
      %v3122 = vpack.c.b16 %v3039, %v3038
      %v3123 = vpack.c.b16 %v3041, %v3040
      %v3124 = vpack.c.b16 %v3043, %v3042
      %v3125 = vpack.c.b16 %v3045, %v3044
      %v3126 = vpack.c.b16 %v3047, %v3046
      %v3127 = vpack.c.b16 %v3049, %v3048
      %v3128 = vpack.c.b16 %v3051, %v3050
      %v3129 = vpack.c.b16 %v3053, %v3052
      %v3130 = vpack.c.b16 %v3055, %v3054
      %v3131 = vpack.c.b16 %v3057, %v3056
      %v3132 = vpack.c.b16 %v3059, %v3058
      %v3133 = vpack.c.b16 %v3061, %v3060
      %3206 = vmatprep.subr.bf16.mxu0 0
      %3207 = vmatpush1.bf16.msra.mxu0 %v3069
      %3208 = vmatprep.subr.bf16.mxu0 0
      %3209 = vmatpush1.bf16.msra.mxu0 %v3068
      %3210 = vmatprep.subr.bf16.mxu0 0
      %3211 = vmatpush1.bf16.msra.mxu0 %v3067
      %3212 = vmatprep.subr.bf16.mxu0 0
      %3213 = vmatpush1.bf16.msra.mxu0 %v3066
      %3214 = vmatprep.subr.bf16.mxu0 0
      %3215 = vmatpush1.bf16.msra.mxu0 %v3065
      %3216 = vmatprep.subr.bf16.mxu0 0
      %3217 = vmatpush1.bf16.msra.mxu0 %v3064
      %3218 = vmatprep.subr.bf16.mxu0 0
      %3219 = vmatpush1.bf16.msra.mxu0 %v3063
      %3220 = vmatprep.subr.bf16.mxu0 0
      %3221 = vmatpush1.bf16.msra.mxu0 %v3062
      %3222 = vmatprep.subr.bf16.mxu0 0
      %3223 = vmatpush2.bf16.msra.mxu0 %v3077
      %3224 = vmatprep.subr.bf16.mxu0 0
      %3225 = vmatpush2.bf16.msra.mxu0 %v3076
      %3226 = vmatprep.subr.bf16.mxu0 0
      %3227 = vmatpush2.bf16.msra.mxu0 %v3075
      %3228 = vmatprep.subr.bf16.mxu0 0
      %3229 = vmatpush2.bf16.msra.mxu0 %v3074
      %3230 = vmatprep.subr.bf16.mxu0 0
      %3231 = vmatpush2.bf16.msra.mxu0 %v3073
      %3232 = vmatprep.subr.bf16.mxu0 0
      %3233 = vmatpush2.bf16.msra.mxu0 %v3072
      %3234 = vmatprep.subr.bf16.mxu0 0
      %3235 = vmatpush2.bf16.msra.mxu0 %v3071
      %3236 = vmatprep.subr.bf16.mxu0 0
      %3237 = vmatpush2.bf16.msra.mxu0 %v3070
      %3238 = vmatprep.mubr.bf16.mxu0 %v881
      %3239 = vmatmul.mubr.bf16.gmra.mxu0 %v880
      %v3240 = vpop.f32.mrf.mxu0
      %v3241 = vadd.f32 %v2772, %v3240
      %v3242 = vpop.f32.mrf.mxu0
      %v3243 = vpop.f32.mrf.mxu0
      %v3244 = vadd.f32 %v2772, %v3243
      %v3245 = vpop.f32.mrf.mxu0
      %3246 = vmatprep.mubr.bf16.mxu0 %v2576
      %3247 = vmatmul.mubr.bf16.gmra.mxu0 %v2575
      %v3248 = vpop.f32.mrf.mxu0
      %v3249 = vadd.f32 %v2772, %v3248
      %v3250 = vpop.f32.mrf.mxu0
      %v3251 = vpop.f32.mrf.mxu0
      %v3252 = vadd.f32 %v2772, %v3251
      %v3253 = vpop.f32.mrf.mxu0
      %3254 = vmatprep.mubr.bf16.mxu0 %v2579
      %3255 = vmatmul.mubr.bf16.gmra.mxu0 %v2578
      %v3256 = vpop.f32.mrf.mxu0
      %v3257 = vadd.f32 %v2772, %v3256
      %v3258 = vpop.f32.mrf.mxu0
      %v3259 = vpop.f32.mrf.mxu0
      %v3260 = vadd.f32 %v2772, %v3259
      %v3261 = vpop.f32.mrf.mxu0
      %3262 = vmatprep.mubr.bf16.mxu0 %v2582
      %3263 = vmatmul.mubr.bf16.gmra.mxu0 %v2581
      %v3264 = vpop.f32.mrf.mxu0
      %v3265 = vadd.f32 %v2772, %v3264
      %v3266 = vpop.f32.mrf.mxu0
      %v3267 = vpop.f32.mrf.mxu0
      %v3268 = vadd.f32 %v2772, %v3267
      %v3269 = vpop.f32.mrf.mxu0
      %3270 = vmatprep.mubr.bf16.mxu0 %v2585
      %3271 = vmatmul.mubr.bf16.gmra.mxu0 %v2584
      %v3272 = vpop.f32.mrf.mxu0
      %v3273 = vadd.f32 %v2772, %v3272
      %v3274 = vpop.f32.mrf.mxu0
      %v3275 = vpop.f32.mrf.mxu0
      %v3276 = vadd.f32 %v2772, %v3275
      %v3277 = vpop.f32.mrf.mxu0
      %3278 = vmatprep.mubr.bf16.mxu0 %v2588
      %3279 = vmatmul.mubr.bf16.gmra.mxu0 %v2587
      %v3280 = vpop.f32.mrf.mxu0
      %v3281 = vadd.f32 %v2772, %v3280
      %v3282 = vpop.f32.mrf.mxu0
      %v3283 = vpop.f32.mrf.mxu0
      %v3284 = vadd.f32 %v2772, %v3283
      %v3285 = vpop.f32.mrf.mxu0
      %3286 = vmatprep.mubr.bf16.mxu0 %v2591
      %3287 = vmatmul.mubr.bf16.gmra.mxu0 %v2590
      %v3288 = vpop.f32.mrf.mxu0
      %v3289 = vadd.f32 %v2772, %v3288
      %v3290 = vpop.f32.mrf.mxu0
      %v3291 = vpop.f32.mrf.mxu0
      %v3292 = vadd.f32 %v2772, %v3291
      %v3293 = vpop.f32.mrf.mxu0
      %3294 = vmatprep.mubr.bf16.mxu0 %v2594
      %3295 = vmatmul.mubr.bf16.gmra.mxu0 %v2593
      %v3296 = vpop.f32.mrf.mxu0
      %v3297 = vadd.f32 %v2772, %v3296
      %v3298 = vpop.f32.mrf.mxu0
      %v3299 = vpop.f32.mrf.mxu0
      %v3300 = vadd.f32 %v2772, %v3299
      %v3301 = vpop.f32.mrf.mxu0
      %3302 = vmatprep.mubr.bf16.mxu0 %v2597
      %3303 = vmatmul.mubr.bf16.gmra.mxu0 %v2596
      %v3304 = vpop.f32.mrf.mxu0
      %v3305 = vadd.f32 %v2772, %v3304
      %v3306 = vpop.f32.mrf.mxu0
      %v3307 = vpop.f32.mrf.mxu0
      %v3308 = vadd.f32 %v2772, %v3307
      %v3309 = vpop.f32.mrf.mxu0
      %3310 = vmatprep.mubr.bf16.mxu0 %v2600
      %3311 = vmatmul.mubr.bf16.gmra.mxu0 %v2599
      %v3312 = vpop.f32.mrf.mxu0
      %v3313 = vadd.f32 %v2772, %v3312
      %v3314 = vpop.f32.mrf.mxu0
      %v3315 = vpop.f32.mrf.mxu0
      %v3316 = vadd.f32 %v2772, %v3315
      %v3317 = vpop.f32.mrf.mxu0
      %3318 = vmatprep.mubr.bf16.mxu0 %v2603
      %3319 = vmatmul.mubr.bf16.gmra.mxu0 %v2602
      %v3320 = vpop.f32.mrf.mxu0
      %v3321 = vadd.f32 %v2772, %v3320
      %v3322 = vpop.f32.mrf.mxu0
      %v3323 = vpop.f32.mrf.mxu0
      %v3324 = vadd.f32 %v2772, %v3323
      %v3325 = vpop.f32.mrf.mxu0
      %3326 = vmatprep.mubr.bf16.mxu0 %v2606
      %3327 = vmatmul.mubr.bf16.gmra.mxu0 %v2605
      %v3328 = vpop.f32.mrf.mxu0
      %v3329 = vadd.f32 %v2772, %v3328
      %v3330 = vpop.f32.mrf.mxu0
      %v3331 = vpop.f32.mrf.mxu0
      %v3332 = vadd.f32 %v2772, %v3331
      %v3333 = vpop.f32.mrf.mxu0
      %3334 = vmatprep.mubr.bf16.mxu0 %v2609
      %3335 = vmatmul.mubr.bf16.gmra.mxu0 %v2608
      %v3336 = vpop.f32.mrf.mxu0
      %v3337 = vadd.f32 %v2772, %v3336
      %v3338 = vpop.f32.mrf.mxu0
      %v3339 = vpop.f32.mrf.mxu0
      %v3340 = vadd.f32 %v2772, %v3339
      %v3341 = vpop.f32.mrf.mxu0
      %3342 = vmatprep.mubr.bf16.mxu0 %v2612
      %3343 = vmatmul.mubr.bf16.gmra.mxu0 %v2611
      %v3344 = vpop.f32.mrf.mxu0
      %v3345 = vadd.f32 %v2772, %v3344
      %v3346 = vpop.f32.mrf.mxu0
      %v3347 = vpop.f32.mrf.mxu0
      %v3348 = vadd.f32 %v2772, %v3347
      %v3349 = vpop.f32.mrf.mxu0
      %3350 = vmatprep.mubr.bf16.mxu0 %v2615
      %3351 = vmatmul.mubr.bf16.gmra.mxu0 %v2614
      %v3352 = vpop.f32.mrf.mxu0
      %v3353 = vadd.f32 %v2772, %v3352
      %v3354 = vpop.f32.mrf.mxu0
      %v3355 = vpop.f32.mrf.mxu0
      %v3356 = vadd.f32 %v2772, %v3355
      %v3357 = vpop.f32.mrf.mxu0
      %3358 = vmatprep.mubr.bf16.mxu0 %v2618
      %3359 = vmatmul.mubr.bf16.gmra.mxu0 %v2617
      %v3360 = vpop.f32.mrf.mxu0
      %v3361 = vadd.f32 %v2772, %v3360
      %v3362 = vpop.f32.mrf.mxu0
      %v3363 = vpop.f32.mrf.mxu0
      %v3364 = vadd.f32 %v2772, %v3363
      %v3365 = vpop.f32.mrf.mxu0
      %3366 = vdwg.mxu0
      %3367 = vmatprep.subr.bf16.mxu0 0
      %3368 = vmatpush1.bf16.msra.mxu0 %v3085
      %3369 = vmatprep.subr.bf16.mxu0 0
      %3370 = vmatpush1.bf16.msra.mxu0 %v3084
      %3371 = vmatprep.subr.bf16.mxu0 0
      %3372 = vmatpush1.bf16.msra.mxu0 %v3083
      %3373 = vmatprep.subr.bf16.mxu0 0
      %3374 = vmatpush1.bf16.msra.mxu0 %v3082
      %3375 = vmatprep.subr.bf16.mxu0 0
      %3376 = vmatpush1.bf16.msra.mxu0 %v3081
      %3377 = vmatprep.subr.bf16.mxu0 0
      %3378 = vmatpush1.bf16.msra.mxu0 %v3080
      %3379 = vmatprep.subr.bf16.mxu0 0
      %3380 = vmatpush1.bf16.msra.mxu0 %v3079
      %3381 = vmatprep.subr.bf16.mxu0 0
      %3382 = vmatpush1.bf16.msra.mxu0 %v3078
      %3383 = vmatprep.subr.bf16.mxu0 0
      %3384 = vmatpush2.bf16.msra.mxu0 %v3093
      %3385 = vmatprep.subr.bf16.mxu0 0
      %3386 = vmatpush2.bf16.msra.mxu0 %v3092
      %3387 = vmatprep.subr.bf16.mxu0 0
      %3388 = vmatpush2.bf16.msra.mxu0 %v3091
      %3389 = vmatprep.subr.bf16.mxu0 0
      %3390 = vmatpush2.bf16.msra.mxu0 %v3090
      %3391 = vmatprep.subr.bf16.mxu0 0
      %3392 = vmatpush2.bf16.msra.mxu0 %v3089
      %3393 = vmatprep.subr.bf16.mxu0 0
      %3394 = vmatpush2.bf16.msra.mxu0 %v3088
      %3395 = vmatprep.subr.bf16.mxu0 0
      %3396 = vmatpush2.bf16.msra.mxu0 %v3087
      %3397 = vmatprep.subr.bf16.mxu0 0
      %3398 = vmatpush2.bf16.msra.mxu0 %v3086
      %3399 = vmatprep.mubr.bf16.mxu0 %v2575
      %3400 = vmatmul.mubr.bf16.gmra.mxu0 %v882
      %v3401 = vpop.f32.mrf.mxu0
      %v3402 = vadd.f32 %v3241, %v3401
      %v3403 = vpop.f32.mrf.mxu0
      %v3404 = vpop.f32.mrf.mxu0
      %v3405 = vadd.f32 %v3244, %v3404
      %v3406 = vpop.f32.mrf.mxu0
      %3407 = vmatprep.mubr.bf16.mxu0 %v2578
      %3408 = vmatmul.mubr.bf16.gmra.mxu0 %v2577
      %v3409 = vpop.f32.mrf.mxu0
      %v3410 = vadd.f32 %v3249, %v3409
      %v3411 = vpop.f32.mrf.mxu0
      %v3412 = vpop.f32.mrf.mxu0
      %v3413 = vadd.f32 %v3252, %v3412
      %v3414 = vpop.f32.mrf.mxu0
      %3415 = vmatprep.mubr.bf16.mxu0 %v2581
      %3416 = vmatmul.mubr.bf16.gmra.mxu0 %v2580
      %v3417 = vpop.f32.mrf.mxu0
      %v3418 = vadd.f32 %v3257, %v3417
      %v3419 = vpop.f32.mrf.mxu0
      %v3420 = vpop.f32.mrf.mxu0
      %v3421 = vadd.f32 %v3260, %v3420
      %v3422 = vpop.f32.mrf.mxu0
      %3423 = vmatprep.mubr.bf16.mxu0 %v2584
      %3424 = vmatmul.mubr.bf16.gmra.mxu0 %v2583
      %v3425 = vpop.f32.mrf.mxu0
      %v3426 = vadd.f32 %v3265, %v3425
      %v3427 = vpop.f32.mrf.mxu0
      %v3428 = vpop.f32.mrf.mxu0
      %v3429 = vadd.f32 %v3268, %v3428
      %v3430 = vpop.f32.mrf.mxu0
      %3431 = vmatprep.mubr.bf16.mxu0 %v2587
      %3432 = vmatmul.mubr.bf16.gmra.mxu0 %v2586
      %v3433 = vpop.f32.mrf.mxu0
      %v3434 = vadd.f32 %v3273, %v3433
      %v3435 = vpop.f32.mrf.mxu0
      %v3436 = vpop.f32.mrf.mxu0
      %v3437 = vadd.f32 %v3276, %v3436
      %v3438 = vpop.f32.mrf.mxu0
      %3439 = vmatprep.mubr.bf16.mxu0 %v2590
      %3440 = vmatmul.mubr.bf16.gmra.mxu0 %v2589
      %v3441 = vpop.f32.mrf.mxu0
      %v3442 = vadd.f32 %v3281, %v3441
      %v3443 = vpop.f32.mrf.mxu0
      %v3444 = vpop.f32.mrf.mxu0
      %v3445 = vadd.f32 %v3284, %v3444
      %v3446 = vpop.f32.mrf.mxu0
      %3447 = vmatprep.mubr.bf16.mxu0 %v2593
      %3448 = vmatmul.mubr.bf16.gmra.mxu0 %v2592
      %v3449 = vpop.f32.mrf.mxu0
      %v3450 = vadd.f32 %v3289, %v3449
      %v3451 = vpop.f32.mrf.mxu0
      %v3452 = vpop.f32.mrf.mxu0
      %v3453 = vadd.f32 %v3292, %v3452
      %v3454 = vpop.f32.mrf.mxu0
      %3455 = vmatprep.mubr.bf16.mxu0 %v2596
      %3456 = vmatmul.mubr.bf16.gmra.mxu0 %v2595
      %v3457 = vpop.f32.mrf.mxu0
      %v3458 = vadd.f32 %v3297, %v3457
      %v3459 = vpop.f32.mrf.mxu0
      %v3460 = vpop.f32.mrf.mxu0
      %v3461 = vadd.f32 %v3300, %v3460
      %v3462 = vpop.f32.mrf.mxu0
      %3463 = vmatprep.mubr.bf16.mxu0 %v2599
      %3464 = vmatmul.mubr.bf16.gmra.mxu0 %v2598
      %v3465 = vpop.f32.mrf.mxu0
      %v3466 = vadd.f32 %v3305, %v3465
      %v3467 = vpop.f32.mrf.mxu0
      %v3468 = vpop.f32.mrf.mxu0
      %v3469 = vadd.f32 %v3308, %v3468
      %v3470 = vpop.f32.mrf.mxu0
      %3471 = vmatprep.mubr.bf16.mxu0 %v2602
      %3472 = vmatmul.mubr.bf16.gmra.mxu0 %v2601
      %v3473 = vpop.f32.mrf.mxu0
      %v3474 = vadd.f32 %v3313, %v3473
      %v3475 = vpop.f32.mrf.mxu0
      %v3476 = vpop.f32.mrf.mxu0
      %v3477 = vadd.f32 %v3316, %v3476
      %v3478 = vpop.f32.mrf.mxu0
      %3479 = vmatprep.mubr.bf16.mxu0 %v2605
      %3480 = vmatmul.mubr.bf16.gmra.mxu0 %v2604
      %v3481 = vpop.f32.mrf.mxu0
      %v3482 = vadd.f32 %v3321, %v3481
      %v3483 = vpop.f32.mrf.mxu0
      %v3484 = vpop.f32.mrf.mxu0
      %v3485 = vadd.f32 %v3324, %v3484
      %v3486 = vpop.f32.mrf.mxu0
      %3487 = vmatprep.mubr.bf16.mxu0 %v2608
      %3488 = vmatmul.mubr.bf16.gmra.mxu0 %v2607
      %v3489 = vpop.f32.mrf.mxu0
      %v3490 = vadd.f32 %v3329, %v3489
      %v3491 = vpop.f32.mrf.mxu0
      %v3492 = vpop.f32.mrf.mxu0
      %v3493 = vadd.f32 %v3332, %v3492
      %v3494 = vpop.f32.mrf.mxu0
      %3495 = vmatprep.mubr.bf16.mxu0 %v2611
      %3496 = vmatmul.mubr.bf16.gmra.mxu0 %v2610
      %v3497 = vpop.f32.mrf.mxu0
      %v3498 = vadd.f32 %v3337, %v3497
      %v3499 = vpop.f32.mrf.mxu0
      %v3500 = vpop.f32.mrf.mxu0
      %v3501 = vadd.f32 %v3340, %v3500
      %v3502 = vpop.f32.mrf.mxu0
      %3503 = vmatprep.mubr.bf16.mxu0 %v2614
      %3504 = vmatmul.mubr.bf16.gmra.mxu0 %v2613
      %v3505 = vpop.f32.mrf.mxu0
      %v3506 = vadd.f32 %v3345, %v3505
      %v3507 = vpop.f32.mrf.mxu0
      %v3508 = vpop.f32.mrf.mxu0
      %v3509 = vadd.f32 %v3348, %v3508
      %v3510 = vpop.f32.mrf.mxu0
      %3511 = vmatprep.mubr.bf16.mxu0 %v2617
      %3512 = vmatmul.mubr.bf16.gmra.mxu0 %v2616
      %v3513 = vpop.f32.mrf.mxu0
      %v3514 = vadd.f32 %v3353, %v3513
      %v3515 = vpop.f32.mrf.mxu0
      %v3516 = vpop.f32.mrf.mxu0
      %v3517 = vadd.f32 %v3356, %v3516
      %v3518 = vpop.f32.mrf.mxu0
      %3519 = vmatprep.mubr.bf16.mxu0 %v2620
      %3520 = vmatmul.mubr.bf16.gmra.mxu0 %v2619
      %v3521 = vpop.f32.mrf.mxu0
      %v3522 = vadd.f32 %v3361, %v3521
      %v3523 = vpop.f32.mrf.mxu0
      %v3524 = vpop.f32.mrf.mxu0
      %v3525 = vadd.f32 %v3364, %v3524
      %v3526 = vpop.f32.mrf.mxu0
      %3527 = vdwg.mxu0
      %3528 = vmatprep.subr.bf16.mxu0 0
      %3529 = vmatpush1.bf16.msra.mxu0 %v3101
      %3530 = vmatprep.subr.bf16.mxu0 0
      %3531 = vmatpush1.bf16.msra.mxu0 %v3100
      %3532 = vmatprep.subr.bf16.mxu0 0
      %3533 = vmatpush1.bf16.msra.mxu0 %v3099
      %3534 = vmatprep.subr.bf16.mxu0 0
      %3535 = vmatpush1.bf16.msra.mxu0 %v3098
      %3536 = vmatprep.subr.bf16.mxu0 0
      %3537 = vmatpush1.bf16.msra.mxu0 %v3097
      %3538 = vmatprep.subr.bf16.mxu0 0
      %3539 = vmatpush1.bf16.msra.mxu0 %v3096
      %3540 = vmatprep.subr.bf16.mxu0 0
      %3541 = vmatpush1.bf16.msra.mxu0 %v3095
      %3542 = vmatprep.subr.bf16.mxu0 0
      %3543 = vmatpush1.bf16.msra.mxu0 %v3094
      %3544 = vmatprep.subr.bf16.mxu0 0
      %3545 = vmatpush2.bf16.msra.mxu0 %v3109
      %3546 = vmatprep.subr.bf16.mxu0 0
      %3547 = vmatpush2.bf16.msra.mxu0 %v3108
      %3548 = vmatprep.subr.bf16.mxu0 0
      %3549 = vmatpush2.bf16.msra.mxu0 %v3107
      %3550 = vmatprep.subr.bf16.mxu0 0
      %3551 = vmatpush2.bf16.msra.mxu0 %v3106
      %3552 = vmatprep.subr.bf16.mxu0 0
      %3553 = vmatpush2.bf16.msra.mxu0 %v3105
      %3554 = vmatprep.subr.bf16.mxu0 0
      %3555 = vmatpush2.bf16.msra.mxu0 %v3104
      %3556 = vmatprep.subr.bf16.mxu0 0
      %3557 = vmatpush2.bf16.msra.mxu0 %v3103
      %3558 = vmatprep.subr.bf16.mxu0 0
      %3559 = vmatpush2.bf16.msra.mxu0 %v3102
      %3560 = vmatprep.mubr.bf16.mxu0 %v2577
      %3561 = vmatmul.mubr.bf16.gmra.mxu0 %v2576
      %v3562 = vpop.f32.mrf.mxu0
      %v3563 = vadd.f32 %v3402, %v3562
      %v3564 = vpop.f32.mrf.mxu0
      %v3565 = vpop.f32.mrf.mxu0
      %v3566 = vadd.f32 %v3405, %v3565
      %v3567 = vpop.f32.mrf.mxu0
      %3568 = vmatprep.mubr.bf16.mxu0 %v2580
      %3569 = vmatmul.mubr.bf16.gmra.mxu0 %v2579
      %v3570 = vpop.f32.mrf.mxu0
      %v3571 = vadd.f32 %v3410, %v3570
      %v3572 = vpop.f32.mrf.mxu0
      %v3573 = vpop.f32.mrf.mxu0
      %v3574 = vadd.f32 %v3413, %v3573
      %v3575 = vpop.f32.mrf.mxu0
      %3576 = vmatprep.mubr.bf16.mxu0 %v2583
      %3577 = vmatmul.mubr.bf16.gmra.mxu0 %v2582
      %v3578 = vpop.f32.mrf.mxu0
      %v3579 = vadd.f32 %v3418, %v3578
      %v3580 = vpop.f32.mrf.mxu0
      %v3581 = vpop.f32.mrf.mxu0
      %v3582 = vadd.f32 %v3421, %v3581
      %v3583 = vpop.f32.mrf.mxu0
      %3584 = vmatprep.mubr.bf16.mxu0 %v2586
      %3585 = vmatmul.mubr.bf16.gmra.mxu0 %v2585
      %v3586 = vpop.f32.mrf.mxu0
      %v3587 = vadd.f32 %v3426, %v3586
      %v3588 = vpop.f32.mrf.mxu0
      %v3589 = vpop.f32.mrf.mxu0
      %v3590 = vadd.f32 %v3429, %v3589
      %v3591 = vpop.f32.mrf.mxu0
      %3592 = vmatprep.mubr.bf16.mxu0 %v2589
      %3593 = vmatmul.mubr.bf16.gmra.mxu0 %v2588
      %v3594 = vpop.f32.mrf.mxu0
      %v3595 = vadd.f32 %v3434, %v3594
      %v3596 = vpop.f32.mrf.mxu0
      %v3597 = vpop.f32.mrf.mxu0
      %v3598 = vadd.f32 %v3437, %v3597
      %v3599 = vpop.f32.mrf.mxu0
      %3600 = vmatprep.mubr.bf16.mxu0 %v2592
      %3601 = vmatmul.mubr.bf16.gmra.mxu0 %v2591
      %v3602 = vpop.f32.mrf.mxu0
      %v3603 = vadd.f32 %v3442, %v3602
      %v3604 = vpop.f32.mrf.mxu0
      %v3605 = vpop.f32.mrf.mxu0
      %v3606 = vadd.f32 %v3445, %v3605
      %v3607 = vpop.f32.mrf.mxu0
      %3608 = vmatprep.mubr.bf16.mxu0 %v2595
      %3609 = vmatmul.mubr.bf16.gmra.mxu0 %v2594
      %v3610 = vpop.f32.mrf.mxu0
      %v3611 = vadd.f32 %v3450, %v3610
      %v3612 = vpop.f32.mrf.mxu0
      %v3613 = vpop.f32.mrf.mxu0
      %v3614 = vadd.f32 %v3453, %v3613
      %v3615 = vpop.f32.mrf.mxu0
      %3616 = vmatprep.mubr.bf16.mxu0 %v2598
      %3617 = vmatmul.mubr.bf16.gmra.mxu0 %v2597
      %v3618 = vpop.f32.mrf.mxu0
      %v3619 = vadd.f32 %v3458, %v3618
      %v3620 = vpop.f32.mrf.mxu0
      %v3621 = vpop.f32.mrf.mxu0
      %v3622 = vadd.f32 %v3461, %v3621
      %v3623 = vpop.f32.mrf.mxu0
      %3624 = vmatprep.mubr.bf16.mxu0 %v2601
      %3625 = vmatmul.mubr.bf16.gmra.mxu0 %v2600
      %v3626 = vpop.f32.mrf.mxu0
      %v3627 = vadd.f32 %v3466, %v3626
      %v3628 = vpop.f32.mrf.mxu0
      %v3629 = vpop.f32.mrf.mxu0
      %v3630 = vadd.f32 %v3469, %v3629
      %v3631 = vpop.f32.mrf.mxu0
      %3632 = vmatprep.mubr.bf16.mxu0 %v2604
      %3633 = vmatmul.mubr.bf16.gmra.mxu0 %v2603
      %v3634 = vpop.f32.mrf.mxu0
      %v3635 = vadd.f32 %v3474, %v3634
      %v3636 = vpop.f32.mrf.mxu0
      %v3637 = vpop.f32.mrf.mxu0
      %v3638 = vadd.f32 %v3477, %v3637
      %v3639 = vpop.f32.mrf.mxu0
      %3640 = vmatprep.mubr.bf16.mxu0 %v2607
      %3641 = vmatmul.mubr.bf16.gmra.mxu0 %v2606
      %v3642 = vpop.f32.mrf.mxu0
      %v3643 = vadd.f32 %v3482, %v3642
      %v3644 = vpop.f32.mrf.mxu0
      %v3645 = vpop.f32.mrf.mxu0
      %v3646 = vadd.f32 %v3485, %v3645
      %v3647 = vpop.f32.mrf.mxu0
      %3648 = vmatprep.mubr.bf16.mxu0 %v2610
      %3649 = vmatmul.mubr.bf16.gmra.mxu0 %v2609
      %v3650 = vpop.f32.mrf.mxu0
      %v3651 = vadd.f32 %v3490, %v3650
      %v3652 = vpop.f32.mrf.mxu0
      %v3653 = vpop.f32.mrf.mxu0
      %v3654 = vadd.f32 %v3493, %v3653
      %v3655 = vpop.f32.mrf.mxu0
      %3656 = vmatprep.mubr.bf16.mxu0 %v2613
      %3657 = vmatmul.mubr.bf16.gmra.mxu0 %v2612
      %v3658 = vpop.f32.mrf.mxu0
      %v3659 = vadd.f32 %v3498, %v3658
      %v3660 = vpop.f32.mrf.mxu0
      %v3661 = vpop.f32.mrf.mxu0
      %v3662 = vadd.f32 %v3501, %v3661
      %v3663 = vpop.f32.mrf.mxu0
      %3664 = vmatprep.mubr.bf16.mxu0 %v2616
      %3665 = vmatmul.mubr.bf16.gmra.mxu0 %v2615
      %v3666 = vpop.f32.mrf.mxu0
      %v3667 = vadd.f32 %v3506, %v3666
      %v3668 = vpop.f32.mrf.mxu0
      %v3669 = vpop.f32.mrf.mxu0
      %v3670 = vadd.f32 %v3509, %v3669
      %v3671 = vpop.f32.mrf.mxu0
      %3672 = vmatprep.mubr.bf16.mxu0 %v2619
      %3673 = vmatmul.mubr.bf16.gmra.mxu0 %v2618
      %v3674 = vpop.f32.mrf.mxu0
      %v3675 = vadd.f32 %v3514, %v3674
      %v3676 = vpop.f32.mrf.mxu0
      %v3677 = vpop.f32.mrf.mxu0
      %v3678 = vadd.f32 %v3517, %v3677
      %v3679 = vpop.f32.mrf.mxu0
      %3680 = vmatprep.mubr.bf16.mxu0 %v2622
      %3681 = vmatmul.mubr.bf16.gmra.mxu0 %v2621
      %v3682 = vpop.f32.mrf.mxu0
      %v3683 = vadd.f32 %v3522, %v3682
      %v3684 = vpop.f32.mrf.mxu0
      %v3685 = vpop.f32.mrf.mxu0
      %v3686 = vadd.f32 %v3525, %v3685
      %v3687 = vpop.f32.mrf.mxu0
      %3688 = vdwg.mxu0
      %3689 = vmatprep.subr.bf16.mxu0 0
      %3690 = vmatpush1.bf16.msra.mxu0 %v3117
      %3691 = vmatprep.subr.bf16.mxu0 0
      %3692 = vmatpush1.bf16.msra.mxu0 %v3116
      %3693 = vmatprep.subr.bf16.mxu0 0
      %3694 = vmatpush1.bf16.msra.mxu0 %v3115
      %3695 = vmatprep.subr.bf16.mxu0 0
      %3696 = vmatpush1.bf16.msra.mxu0 %v3114
      %3697 = vmatprep.subr.bf16.mxu0 0
      %3698 = vmatpush1.bf16.msra.mxu0 %v3113
      %3699 = vmatprep.subr.bf16.mxu0 0
      %3700 = vmatpush1.bf16.msra.mxu0 %v3112
      %3701 = vmatprep.subr.bf16.mxu0 0
      %3702 = vmatpush1.bf16.msra.mxu0 %v3111
      %3703 = vmatprep.subr.bf16.mxu0 0
      %3704 = vmatpush1.bf16.msra.mxu0 %v3110
      %3705 = vmatprep.subr.bf16.mxu0 0
      %3706 = vmatpush2.bf16.msra.mxu0 %v3125
      %3707 = vmatprep.subr.bf16.mxu0 0
      %3708 = vmatpush2.bf16.msra.mxu0 %v3124
      %3709 = vmatprep.subr.bf16.mxu0 0
      %3710 = vmatpush2.bf16.msra.mxu0 %v3123
      %3711 = vmatprep.subr.bf16.mxu0 0
      %3712 = vmatpush2.bf16.msra.mxu0 %v3122
      %3713 = vmatprep.subr.bf16.mxu0 0
      %3714 = vmatpush2.bf16.msra.mxu0 %v3121
      %3715 = vmatprep.subr.bf16.mxu0 0
      %3716 = vmatpush2.bf16.msra.mxu0 %v3120
      %3717 = vmatprep.subr.bf16.mxu0 0
      %3718 = vmatpush2.bf16.msra.mxu0 %v3119
      %3719 = vmatprep.subr.bf16.mxu0 0
      %3720 = vmatpush2.bf16.msra.mxu0 %v3118
      %3721 = vmatprep.mubr.bf16.mxu0 %v2579
      %3722 = vmatmul.mubr.bf16.gmra.mxu0 %v2578
      %v3723 = vpop.f32.mrf.mxu0
      %v3724 = vadd.f32 %v3563, %v3723
      %v3725 = vpop.f32.mrf.mxu0
      %v3726 = vpop.f32.mrf.mxu0
      %v3727 = vadd.f32 %v3566, %v3726
      %v3728 = vpop.f32.mrf.mxu0
      %3729 = vmatprep.mubr.bf16.mxu0 %v2582
      %3730 = vmatmul.mubr.bf16.gmra.mxu0 %v2581
      %v3731 = vpop.f32.mrf.mxu0
      %v3732 = vadd.f32 %v3571, %v3731
      %v3733 = vpop.f32.mrf.mxu0
      %v3734 = vpop.f32.mrf.mxu0
      %v3735 = vadd.f32 %v3574, %v3734
      %v3736 = vpop.f32.mrf.mxu0
      %3737 = vmatprep.mubr.bf16.mxu0 %v2585
      %3738 = vmatmul.mubr.bf16.gmra.mxu0 %v2584
      %v3739 = vpop.f32.mrf.mxu0
      %v3740 = vadd.f32 %v3579, %v3739
      %v3741 = vpop.f32.mrf.mxu0
      %v3742 = vpop.f32.mrf.mxu0
      %v3743 = vadd.f32 %v3582, %v3742
      %v3744 = vpop.f32.mrf.mxu0
      %3745 = vmatprep.mubr.bf16.mxu0 %v2588
      %3746 = vmatmul.mubr.bf16.gmra.mxu0 %v2587
      %v3747 = vpop.f32.mrf.mxu0
      %v3748 = vadd.f32 %v3587, %v3747
      %v3749 = vpop.f32.mrf.mxu0
      %v3750 = vpop.f32.mrf.mxu0
      %v3751 = vadd.f32 %v3590, %v3750
      %v3752 = vpop.f32.mrf.mxu0
      %3753 = vmatprep.mubr.bf16.mxu0 %v2591
      %3754 = vmatmul.mubr.bf16.gmra.mxu0 %v2590
      %v3755 = vpop.f32.mrf.mxu0
      %v3756 = vadd.f32 %v3595, %v3755
      %v3757 = vpop.f32.mrf.mxu0
      %v3758 = vpop.f32.mrf.mxu0
      %v3759 = vadd.f32 %v3598, %v3758
      %v3760 = vpop.f32.mrf.mxu0
      %3761 = vmatprep.mubr.bf16.mxu0 %v2594
      %3762 = vmatmul.mubr.bf16.gmra.mxu0 %v2593
      %v3763 = vpop.f32.mrf.mxu0
      %v3764 = vadd.f32 %v3603, %v3763
      %v3765 = vpop.f32.mrf.mxu0
      %v3766 = vpop.f32.mrf.mxu0
      %v3767 = vadd.f32 %v3606, %v3766
      %v3768 = vpop.f32.mrf.mxu0
      %3769 = vmatprep.mubr.bf16.mxu0 %v2597
      %3770 = vmatmul.mubr.bf16.gmra.mxu0 %v2596
      %v3771 = vpop.f32.mrf.mxu0
      %v3772 = vadd.f32 %v3611, %v3771
      %v3773 = vpop.f32.mrf.mxu0
      %v3774 = vpop.f32.mrf.mxu0
      %v3775 = vadd.f32 %v3614, %v3774
      %v3776 = vpop.f32.mrf.mxu0
      %3777 = vmatprep.mubr.bf16.mxu0 %v2600
      %3778 = vmatmul.mubr.bf16.gmra.mxu0 %v2599
      %v3779 = vpop.f32.mrf.mxu0
      %v3780 = vadd.f32 %v3619, %v3779
      %v3781 = vpop.f32.mrf.mxu0
      %v3782 = vpop.f32.mrf.mxu0
      %v3783 = vadd.f32 %v3622, %v3782
      %v3784 = vpop.f32.mrf.mxu0
      %3785 = vmatprep.mubr.bf16.mxu0 %v2603
      %3786 = vmatmul.mubr.bf16.gmra.mxu0 %v2602
      %v3787 = vpop.f32.mrf.mxu0
      %v3788 = vadd.f32 %v3627, %v3787
      %v3789 = vpop.f32.mrf.mxu0
      %v3790 = vpop.f32.mrf.mxu0
      %v3791 = vadd.f32 %v3630, %v3790
      %v3792 = vpop.f32.mrf.mxu0
      %3793 = vmatprep.mubr.bf16.mxu0 %v2606
      %3794 = vmatmul.mubr.bf16.gmra.mxu0 %v2605
      %v3795 = vpop.f32.mrf.mxu0
      %v3796 = vadd.f32 %v3635, %v3795
      %v3797 = vpop.f32.mrf.mxu0
      %v3798 = vpop.f32.mrf.mxu0
      %v3799 = vadd.f32 %v3638, %v3798
      %v3800 = vpop.f32.mrf.mxu0
      %3801 = vmatprep.mubr.bf16.mxu0 %v2609
      %3802 = vmatmul.mubr.bf16.gmra.mxu0 %v2608
      %v3803 = vpop.f32.mrf.mxu0
      %v3804 = vadd.f32 %v3643, %v3803
      %v3805 = vpop.f32.mrf.mxu0
      %v3806 = vpop.f32.mrf.mxu0
      %v3807 = vadd.f32 %v3646, %v3806
      %v3808 = vpop.f32.mrf.mxu0
      %3809 = vmatprep.mubr.bf16.mxu0 %v2612
      %3810 = vmatmul.mubr.bf16.gmra.mxu0 %v2611
      %v3811 = vpop.f32.mrf.mxu0
      %v3812 = vadd.f32 %v3651, %v3811
      %v3813 = vpop.f32.mrf.mxu0
      %v3814 = vpop.f32.mrf.mxu0
      %v3815 = vadd.f32 %v3654, %v3814
      %v3816 = vpop.f32.mrf.mxu0
      %3817 = vmatprep.mubr.bf16.mxu0 %v2615
      %3818 = vmatmul.mubr.bf16.gmra.mxu0 %v2614
      %v3819 = vpop.f32.mrf.mxu0
      %v3820 = vadd.f32 %v3659, %v3819
      %v3821 = vpop.f32.mrf.mxu0
      %v3822 = vpop.f32.mrf.mxu0
      %v3823 = vadd.f32 %v3662, %v3822
      %v3824 = vpop.f32.mrf.mxu0
      %3825 = vmatprep.mubr.bf16.mxu0 %v2618
      %3826 = vmatmul.mubr.bf16.gmra.mxu0 %v2617
      %v3827 = vpop.f32.mrf.mxu0
      %v3828 = vadd.f32 %v3667, %v3827
      %v3829 = vpop.f32.mrf.mxu0
      %v3830 = vpop.f32.mrf.mxu0
      %v3831 = vadd.f32 %v3670, %v3830
      %v3832 = vpop.f32.mrf.mxu0
      %3833 = vmatprep.mubr.bf16.mxu0 %v2621
      %3834 = vmatmul.mubr.bf16.gmra.mxu0 %v2620
      %v3835 = vpop.f32.mrf.mxu0
      %v3836 = vadd.f32 %v3675, %v3835
      %v3837 = vpop.f32.mrf.mxu0
      %v3838 = vpop.f32.mrf.mxu0
      %v3839 = vadd.f32 %v3678, %v3838
      %v3840 = vpop.f32.mrf.mxu0
      %3841 = vmatprep.mubr.bf16.mxu0 %v881
      %3842 = vmatmul.mubr.bf16.gmra.mxu0 %v880
      %v3843 = vpop.f32.mrf.mxu0
      %v3844 = vadd.f32 %v3683, %v3843
      %v3845 = vpop.f32.mrf.mxu0
      %v3846 = vpop.f32.mrf.mxu0
      %v3847 = vadd.f32 %v3686, %v3846
      %v3848 = vpop.f32.mrf.mxu0
      %3849 = vdwg.mxu0
      %3850 = vmatprep.subr.bf16.mxu0 0
      %3851 = vmatpush1.bf16.msra.mxu0 %v3133
      %3852 = vmatprep.subr.bf16.mxu0 0
      %3853 = vmatpush1.bf16.msra.mxu0 %v3132
      %3854 = vmatprep.subr.bf16.mxu0 0
      %3855 = vmatpush1.bf16.msra.mxu0 %v3131
      %3856 = vmatprep.subr.bf16.mxu0 0
      %3857 = vmatpush1.bf16.msra.mxu0 %v3130
      %3858 = vmatprep.subr.bf16.mxu0 0
      %3859 = vmatpush1.bf16.msra.mxu0 %v3129
      %3860 = vmatprep.subr.bf16.mxu0 0
      %3861 = vmatpush1.bf16.msra.mxu0 %v3128
      %3862 = vmatprep.subr.bf16.mxu0 0
      %3863 = vmatpush1.bf16.msra.mxu0 %v3127
      %3864 = vmatprep.subr.bf16.mxu0 0
      %3865 = vmatpush1.bf16.msra.mxu0 %v3126
      %3866 = vmatprep.subr.bf16.mxu0 0
      %3867 = vmatpush2.bf16.msra.mxu0 0
      %3868 = vmatprep.subr.bf16.mxu0 0
      %3869 = vmatpush2.bf16.msra.mxu0 0
      %3870 = vmatprep.subr.bf16.mxu0 0
      %3871 = vmatpush2.bf16.msra.mxu0 0
      %3872 = vmatprep.subr.bf16.mxu0 0
      %3873 = vmatpush2.bf16.msra.mxu0 0
      %3874 = vmatprep.subr.bf16.mxu0 0
      %3875 = vmatpush2.bf16.msra.mxu0 0
      %3876 = vmatprep.subr.bf16.mxu0 0
      %3877 = vmatpush2.bf16.msra.mxu0 0
      %3878 = vmatprep.subr.bf16.mxu0 0
      %3879 = vmatpush2.bf16.msra.mxu0 0
      %3880 = vmatprep.subr.bf16.mxu0 0
      %3881 = vmatpush2.bf16.msra.mxu0 0
      %3882 = vmatprep.mubr.bf16.mxu0 0
      %3883 = vmatmul.mubr.bf16.gmra.mxu0 %v2580
      %v3884 = vpop.f32.mrf.mxu0
      %v3885 = vadd.f32 %v3724, %v3884
      %v3886 = vpop.f32.mrf.mxu0
      %v3887 = vpop.f32.mrf.mxu0
      %v3888 = vadd.f32 %v3727, %v3887
      %v3889 = vpop.f32.mrf.mxu0
      %3890 = vmatprep.mubr.bf16.mxu0 0
      %3891 = vmatmul.mubr.bf16.gmra.mxu0 %v2583
      %v3892 = vpop.f32.mrf.mxu0
      %v3893 = vadd.f32 %v3732, %v3892
      %v3894 = vpop.f32.mrf.mxu0
      %v3895 = vpop.f32.mrf.mxu0
      %v3896 = vadd.f32 %v3735, %v3895
      %v3897 = vpop.f32.mrf.mxu0
      %3898 = vmatprep.mubr.bf16.mxu0 0
      %3899 = vmatmul.mubr.bf16.gmra.mxu0 %v2586
      %v3900 = vpop.f32.mrf.mxu0
      %v3901 = vadd.f32 %v3740, %v3900
      %v3902 = vpop.f32.mrf.mxu0
      %v3903 = vpop.f32.mrf.mxu0
      %v3904 = vadd.f32 %v3743, %v3903
      %v3905 = vpop.f32.mrf.mxu0
      %3906 = vmatprep.mubr.bf16.mxu0 0
      %3907 = vmatmul.mubr.bf16.gmra.mxu0 %v2589
      %v3908 = vpop.f32.mrf.mxu0
      %v3909 = vadd.f32 %v3748, %v3908
      %v3910 = vpop.f32.mrf.mxu0
      %v3911 = vpop.f32.mrf.mxu0
      %v3912 = vadd.f32 %v3751, %v3911
      %v3913 = vpop.f32.mrf.mxu0
      %3914 = vmatprep.mubr.bf16.mxu0 0
      %3915 = vmatmul.mubr.bf16.gmra.mxu0 %v2592
      %v3916 = vpop.f32.mrf.mxu0
      %v3917 = vadd.f32 %v3756, %v3916
      %v3918 = vpop.f32.mrf.mxu0
      %v3919 = vpop.f32.mrf.mxu0
      %v3920 = vadd.f32 %v3759, %v3919
      %v3921 = vpop.f32.mrf.mxu0
      %3922 = vmatprep.mubr.bf16.mxu0 0
      %3923 = vmatmul.mubr.bf16.gmra.mxu0 %v2595
      %v3924 = vpop.f32.mrf.mxu0
      %v3925 = vadd.f32 %v3764, %v3924
      %v3926 = vpop.f32.mrf.mxu0
      %v3927 = vpop.f32.mrf.mxu0
      %v3928 = vadd.f32 %v3767, %v3927
      %v3929 = vpop.f32.mrf.mxu0
      %3930 = vmatprep.mubr.bf16.mxu0 0
      %3931 = vmatmul.mubr.bf16.gmra.mxu0 %v2598
      %v3932 = vpop.f32.mrf.mxu0
      %v3933 = vadd.f32 %v3772, %v3932
      %v3934 = vpop.f32.mrf.mxu0
      %v3935 = vpop.f32.mrf.mxu0
      %v3936 = vadd.f32 %v3775, %v3935
      %v3937 = vpop.f32.mrf.mxu0
      %3938 = vmatprep.mubr.bf16.mxu0 0
      %3939 = vmatmul.mubr.bf16.gmra.mxu0 %v2601
      %v3940 = vpop.f32.mrf.mxu0
      %v3941 = vadd.f32 %v3780, %v3940
      %v3942 = vpop.f32.mrf.mxu0
      %v3943 = vpop.f32.mrf.mxu0
      %v3944 = vadd.f32 %v3783, %v3943
      %v3945 = vpop.f32.mrf.mxu0
      %3946 = vmatprep.mubr.bf16.mxu0 0
      %3947 = vmatmul.mubr.bf16.gmra.mxu0 %v2604
      %v3948 = vpop.f32.mrf.mxu0
      %v3949 = vadd.f32 %v3788, %v3948
      %v3950 = vpop.f32.mrf.mxu0
      %v3951 = vpop.f32.mrf.mxu0
      %v3952 = vadd.f32 %v3791, %v3951
      %v3953 = vpop.f32.mrf.mxu0
      %3954 = vmatprep.mubr.bf16.mxu0 0
      %3955 = vmatmul.mubr.bf16.gmra.mxu0 %v2607
      %v3956 = vpop.f32.mrf.mxu0
      %v3957 = vadd.f32 %v3796, %v3956
      %v3958 = vpop.f32.mrf.mxu0
      %v3959 = vpop.f32.mrf.mxu0
      %v3960 = vadd.f32 %v3799, %v3959
      %v3961 = vpop.f32.mrf.mxu0
      %3962 = vmatprep.mubr.bf16.mxu0 0
      %3963 = vmatmul.mubr.bf16.gmra.mxu0 %v2610
      %v3964 = vpop.f32.mrf.mxu0
      %v3965 = vadd.f32 %v3804, %v3964
      %v3966 = vpop.f32.mrf.mxu0
      %v3967 = vpop.f32.mrf.mxu0
      %v3968 = vadd.f32 %v3807, %v3967
      %v3969 = vpop.f32.mrf.mxu0
      %3970 = vmatprep.mubr.bf16.mxu0 0
      %3971 = vmatmul.mubr.bf16.gmra.mxu0 %v2613
      %v3972 = vpop.f32.mrf.mxu0
      %v3973 = vadd.f32 %v3812, %v3972
      %v3974 = vpop.f32.mrf.mxu0
      %v3975 = vpop.f32.mrf.mxu0
      %v3976 = vadd.f32 %v3815, %v3975
      %v3977 = vpop.f32.mrf.mxu0
      %3978 = vmatprep.mubr.bf16.mxu0 0
      %3979 = vmatmul.mubr.bf16.gmra.mxu0 %v2616
      %v3980 = vpop.f32.mrf.mxu0
      %v3981 = vadd.f32 %v3820, %v3980
      %v3982 = vpop.f32.mrf.mxu0
      %v3983 = vpop.f32.mrf.mxu0
      %v3984 = vadd.f32 %v3823, %v3983
      %v3985 = vpop.f32.mrf.mxu0
      %3986 = vmatprep.mubr.bf16.mxu0 0
      %3987 = vmatmul.mubr.bf16.gmra.mxu0 %v2619
      %v3988 = vpop.f32.mrf.mxu0
      %v3989 = vadd.f32 %v3828, %v3988
      %v3990 = vpop.f32.mrf.mxu0
      %v3991 = vpop.f32.mrf.mxu0
      %v3992 = vadd.f32 %v3831, %v3991
      %v3993 = vpop.f32.mrf.mxu0
      %3994 = vmatprep.mubr.bf16.mxu0 0
      %3995 = vmatmul.mubr.bf16.gmra.mxu0 %v2622
      %v3996 = vpop.f32.mrf.mxu0
      %v3997 = vadd.f32 %v3836, %v3996
      %v3998 = vpop.f32.mrf.mxu0
      %v3999 = vpop.f32.mrf.mxu0
      %v4000 = vadd.f32 %v3839, %v3999
      %v4001 = vpop.f32.mrf.mxu0
      %4002 = vmatprep.mubr.bf16.mxu0 0
      %4003 = vmatmul.mubr.bf16.gmra.mxu0 %v882
      %v4004 = vpop.f32.mrf.mxu0
      %v4005 = vadd.f32 %v3844, %v4004
      %v4006 = vpop.f32.mrf.mxu0
      %v4007 = vpop.f32.mrf.mxu0
      %v4008 = vadd.f32 %v3847, %v4007
      %v4009 = vpop.f32.mrf.mxu0
      %4010 = vdwg.mxu0
      %v4011 = vmax.f32 %v3885, 0.0
      %v4012 = vmax.f32 %v3888, 0.0
      %v4013 = vmax.f32 %v3893, 0.0
      %v4014 = vmax.f32 %v3896, 0.0
      %v4015 = vmax.f32 %v3901, 0.0
      %v4016 = vmax.f32 %v3904, 0.0
      %v4017 = vmax.f32 %v3909, 0.0
      %v4018 = vmax.f32 %v3912, 0.0
      %v4019 = vmax.f32 %v3917, 0.0
      %v4020 = vmax.f32 %v3920, 0.0
      %v4021 = vmax.f32 %v3925, 0.0
      %v4022 = vmax.f32 %v3928, 0.0
      %v4023 = vmax.f32 %v3933, 0.0
      %v4024 = vmax.f32 %v3936, 0.0
      %v4025 = vmax.f32 %v3941, 0.0
      %v4026 = vmax.f32 %v3944, 0.0
      %v4027 = vmax.f32 %v3949, 0.0
      %v4028 = vmax.f32 %v3952, 0.0
      %v4029 = vmax.f32 %v3957, 0.0
      %v4030 = vmax.f32 %v3960, 0.0
      %v4031 = vmax.f32 %v3965, 0.0
      %v4032 = vmax.f32 %v3968, 0.0
      %v4033 = vmax.f32 %v3973, 0.0
      %v4034 = vmax.f32 %v3976, 0.0
      %v4035 = vmax.f32 %v3981, 0.0
      %v4036 = vmax.f32 %v3984, 0.0
      %v4037 = vmax.f32 %v3989, 0.0
      %v4038 = vmax.f32 %v3992, 0.0
      %v4039 = vmax.f32 %v3997, 0.0
      %v4040 = vmax.f32 %v4000, 0.0
      %v4041 = vmax.f32 %v4005, 0.0
      %v4042 = vmax.f32 %v4008, 0.0
      %v4073 = vrot.slane %v4011, 7
      %v4074 = vsel %vm678, %v679, %v4073
      %v4075 = vrot.slane %v4012, 7
      %v4076 = vsel %vm678, %v4073, %v4075
      %v4077 = vrot.slane %v4013, 7
      %v4078 = vsel %vm678, %v679, %v4077
      %v4079 = vrot.slane %v4014, 7
      %v4080 = vsel %vm678, %v4077, %v4079
      %v4081 = vrot.slane %v4015, 7
      %v4082 = vsel %vm678, %v679, %v4081
      %v4083 = vrot.slane %v4016, 7
      %v4084 = vsel %vm678, %v4081, %v4083
      %v4085 = vrot.slane %v4017, 7
      %v4086 = vsel %vm678, %v679, %v4085
      %v4087 = vrot.slane %v4018, 7
      %v4088 = vsel %vm678, %v4085, %v4087
      %v4089 = vrot.slane %v4019, 7
      %v4090 = vsel %vm678, %v679, %v4089
      %v4091 = vrot.slane %v4020, 7
      %v4092 = vsel %vm678, %v4089, %v4091
      %v4093 = vrot.slane %v4021, 7
      %v4094 = vsel %vm678, %v679, %v4093
      %v4095 = vrot.slane %v4022, 7
      %v4096 = vsel %vm678, %v4093, %v4095
      %v4097 = vrot.slane %v4023, 7
      %v4098 = vsel %vm678, %v679, %v4097
      %v4099 = vrot.slane %v4024, 7
      %v4100 = vsel %vm678, %v4097, %v4099
      %v4101 = vrot.slane %v4025, 7
      %v4102 = vsel %vm678, %v679, %v4101
      %v4103 = vrot.slane %v4026, 7
      %v4104 = vsel %vm678, %v4101, %v4103
      %v4105 = vrot.slane %v4027, 7
      %v4106 = vsel %vm678, %v679, %v4105
      %v4107 = vrot.slane %v4028, 7
      %v4108 = vsel %vm678, %v4105, %v4107
      %v4109 = vrot.slane %v4029, 7
      %v4110 = vsel %vm678, %v679, %v4109
      %v4111 = vrot.slane %v4030, 7
      %v4112 = vsel %vm678, %v4109, %v4111
      %v4113 = vrot.slane %v4031, 7
      %v4114 = vsel %vm678, %v679, %v4113
      %v4115 = vrot.slane %v4032, 7
      %v4116 = vsel %vm678, %v4113, %v4115
      %v4117 = vrot.slane %v4033, 7
      %v4118 = vsel %vm678, %v679, %v4117
      %v4119 = vrot.slane %v4034, 7
      %v4120 = vsel %vm678, %v4117, %v4119
      %v4121 = vrot.slane %v4035, 7
      %v4122 = vsel %vm678, %v679, %v4121
      %v4123 = vrot.slane %v4036, 7
      %v4124 = vsel %vm678, %v4121, %v4123
      %v4125 = vrot.slane %v4037, 7
      %v4126 = vsel %vm678, %v679, %v4125
      %v4127 = vrot.slane %v4038, 7
      %v4128 = vsel %vm678, %v4125, %v4127
      %v4129 = vrot.slane %v4039, 7
      %v4130 = vsel %vm678, %v679, %v4129
      %v4131 = vrot.slane %v4040, 7
      %v4132 = vsel %vm678, %v4129, %v4131
      %v4163 = vrot.slane %v4011, 1
      %v4164 = vrot.slane %v4012, 1
      %v4165 = vsel %vm772, %v4163, %v4164
      %v4166 = vsel %vm772, %v4164, %v773
      %v4167 = vrot.slane %v4013, 1
      %v4168 = vrot.slane %v4014, 1
      %v4169 = vsel %vm772, %v4167, %v4168
      %v4170 = vsel %vm772, %v4168, %v773
      %v4171 = vrot.slane %v4015, 1
      %v4172 = vrot.slane %v4016, 1
      %v4173 = vsel %vm772, %v4171, %v4172
      %v4174 = vsel %vm772, %v4172, %v773
      %v4175 = vrot.slane %v4017, 1
      %v4176 = vrot.slane %v4018, 1
      %v4177 = vsel %vm772, %v4175, %v4176
      %v4178 = vsel %vm772, %v4176, %v773
      %v4179 = vrot.slane %v4019, 1
      %v4180 = vrot.slane %v4020, 1
      %v4181 = vsel %vm772, %v4179, %v4180
      %v4182 = vsel %vm772, %v4180, %v773
      %v4183 = vrot.slane %v4021, 1
      %v4184 = vrot.slane %v4022, 1
      %v4185 = vsel %vm772, %v4183, %v4184
      %v4186 = vsel %vm772, %v4184, %v773
      %v4187 = vrot.slane %v4023, 1
      %v4188 = vrot.slane %v4024, 1
      %v4189 = vsel %vm772, %v4187, %v4188
      %v4190 = vsel %vm772, %v4188, %v773
      %v4191 = vrot.slane %v4025, 1
      %v4192 = vrot.slane %v4026, 1
      %v4193 = vsel %vm772, %v4191, %v4192
      %v4194 = vsel %vm772, %v4192, %v773
      %v4195 = vrot.slane %v4027, 1
      %v4196 = vrot.slane %v4028, 1
      %v4197 = vsel %vm772, %v4195, %v4196
      %v4198 = vsel %vm772, %v4196, %v773
      %v4199 = vrot.slane %v4029, 1
      %v4200 = vrot.slane %v4030, 1
      %v4201 = vsel %vm772, %v4199, %v4200
      %v4202 = vsel %vm772, %v4200, %v773
      %v4203 = vrot.slane %v4031, 1
      %v4204 = vrot.slane %v4032, 1
      %v4205 = vsel %vm772, %v4203, %v4204
      %v4206 = vsel %vm772, %v4204, %v773
      %v4207 = vrot.slane %v4033, 1
      %v4208 = vrot.slane %v4034, 1
      %v4209 = vsel %vm772, %v4207, %v4208
      %v4210 = vsel %vm772, %v4208, %v773
      %v4211 = vrot.slane %v4035, 1
      %v4212 = vrot.slane %v4036, 1
      %v4213 = vsel %vm772, %v4211, %v4212
      %v4214 = vsel %vm772, %v4212, %v773
      %v4215 = vrot.slane %v4037, 1
      %v4216 = vrot.slane %v4038, 1
      %v4217 = vsel %vm772, %v4215, %v4216
      %v4218 = vsel %vm772, %v4216, %v773
      %v4219 = vrot.slane %v4039, 1
      %v4220 = vrot.slane %v4040, 1
      %v4221 = vsel %vm772, %v4219, %v4220
      %v4222 = vsel %vm772, %v4220, %v773
      %v4255 = vrot.slane %v4041, 7
      %v4256 = vsel %vm678, %v679, %v4255
      %v4257 = vrot.slane %v4042, 7
      %v4258 = vsel %vm678, %v4255, %v4257
      %v4261 = vrot.slane %v4041, 1
      %v4262 = vrot.slane %v4042, 1
      %v4263 = vsel %vm772, %v4261, %v4262
      %v4264 = vsel %vm772, %v4262, %v773
      %v4267 = vpack.c.bf16 %v4076, %v4074
      %v4268 = vpack.c.bf16 %v4012, %v4011
      %v4269 = vpack.c.bf16 %v4166, %v4165
      %v4270 = vpack.c.bf16 %v4080, %v4078
      %v4271 = vpack.c.bf16 %v4014, %v4013
      %v4272 = vpack.c.bf16 %v4170, %v4169
      %v4273 = vpack.c.bf16 %v4084, %v4082
      %v4274 = vpack.c.bf16 %v4016, %v4015
      %v4275 = vpack.c.bf16 %v4174, %v4173
      %v4276 = vpack.c.bf16 %v4088, %v4086
      %v4277 = vpack.c.bf16 %v4018, %v4017
      %v4278 = vpack.c.bf16 %v4178, %v4177
      %v4279 = vpack.c.bf16 %v4092, %v4090
      %v4280 = vpack.c.bf16 %v4020, %v4019
      %v4281 = vpack.c.bf16 %v4182, %v4181
      %v4282 = vpack.c.bf16 %v4096, %v4094
      %v4283 = vpack.c.bf16 %v4022, %v4021
      %v4284 = vpack.c.bf16 %v4186, %v4185
      %v4285 = vpack.c.bf16 %v4100, %v4098
      %v4286 = vpack.c.bf16 %v4024, %v4023
      %v4287 = vpack.c.bf16 %v4190, %v4189
      %v4288 = vpack.c.bf16 %v4104, %v4102
      %v4289 = vpack.c.bf16 %v4026, %v4025
      %v4290 = vpack.c.bf16 %v4194, %v4193
      %v4291 = vpack.c.bf16 %v4108, %v4106
      %v4292 = vpack.c.bf16 %v4028, %v4027
      %v4293 = vpack.c.bf16 %v4198, %v4197
      %v4294 = vpack.c.bf16 %v4112, %v4110
      %v4295 = vpack.c.bf16 %v4030, %v4029
      %v4296 = vpack.c.bf16 %v4202, %v4201
      %v4297 = vpack.c.bf16 %v4116, %v4114
      %v4298 = vpack.c.bf16 %v4032, %v4031
      %v4299 = vpack.c.bf16 %v4206, %v4205
      %v4300 = vpack.c.bf16 %v4120, %v4118
      %v4301 = vpack.c.bf16 %v4034, %v4033
      %v4302 = vpack.c.bf16 %v4210, %v4209
      %v4303 = vpack.c.bf16 %v4124, %v4122
      %v4304 = vpack.c.bf16 %v4036, %v4035
      %v4305 = vpack.c.bf16 %v4214, %v4213
      %v4306 = vpack.c.bf16 %v4128, %v4126
      %v4307 = vpack.c.bf16 %v4038, %v4037
      %v4308 = vpack.c.bf16 %v4218, %v4217
      %v4309 = vpack.c.bf16 %v4132, %v4130
      %v4310 = vpack.c.bf16 %v4040, %v4039
      %v4311 = vpack.c.bf16 %v4222, %v4221
      %v4312 = vpack.c.bf16 %v4258, %v4256
      %v4313 = vpack.c.bf16 %v4042, %v4041
      %v4314 = vpack.c.bf16 %v4264, %v4263
      %v4315 = vld [vmem:[%s7] sm:$0xf]
      %v4316 = vld [vmem:[%s7 + $0x4] sm:$0xf]
      %v4317 = vld [vmem:[%s7 + $0x8] sm:$0xf]
      %v4318 = vld [vmem:[%s7 + $0xc] sm:$0xf]
      %v4319 = vld [vmem:[%s7 + $0x10] sm:$0xf]
      %v4320 = vld [vmem:[%s7 + $0x14] sm:$0xf]
      %v4321 = vld [vmem:[%s7 + $0x18] sm:$0xf]
      %v4322 = vld [vmem:[%s7 + $0x1c] sm:$0xf]
      %v4323 = vld [vmem:[%s7 + $0x20] sm:$0xf]
      %v4324 = vld [vmem:[%s7 + $0x24] sm:$0xf]
      %v4325 = vld [vmem:[%s7 + $0x28] sm:$0xf]
      %v4326 = vld [vmem:[%s7 + $0x2c] sm:$0xf]
      %v4327 = vld [vmem:[%s7 + $0x30] sm:$0xf]
      %v4328 = vld [vmem:[%s7 + $0x34] sm:$0xf]
      %v4329 = vld [vmem:[%s7 + $0x38] sm:$0xf]
      %v4330 = vld [vmem:[%s7 + $0x3c] sm:$0xf]
      %v4331 = vld [vmem:[%s7 + $0x40] sm:$0xf]
      %v4332 = vld [vmem:[%s7 + $0x44] sm:$0xf]
      %v4333 = vld [vmem:[%s7 + $0x48] sm:$0xf]
      %v4334 = vld [vmem:[%s7 + $0x4c] sm:$0xf]
      %v4335 = vld [vmem:[%s7 + $0x50] sm:$0xf]
      %v4336 = vld [vmem:[%s7 + $0x54] sm:$0xf]
      %v4337 = vld [vmem:[%s7 + $0x58] sm:$0xf]
      %v4338 = vld [vmem:[%s7 + $0x5c] sm:$0xf]
      %v4339 = vld [vmem:[%s7 + $0x60] sm:$0xf]
      %v4340 = vld [vmem:[%s7 + $0x64] sm:$0xf]
      %v4341 = vld [vmem:[%s7 + $0x68] sm:$0xf]
      %v4342 = vld [vmem:[%s7 + $0x6c] sm:$0xf]
      %v4343 = vld [vmem:[%s7 + $0x70] sm:$0xf]
      %v4344 = vld [vmem:[%s7 + $0x74] sm:$0xf]
      %v4345 = vld [vmem:[%s7 + $0x78] sm:$0xf]
      %v4346 = vld [vmem:[%s7 + $0x7c] sm:$0xf]
      %v4347 = vld [vmem:[%s7 + $0x80] sm:$0xf]
      %v4348 = vld [vmem:[%s7 + $0x84] sm:$0xf]
      %v4349 = vld [vmem:[%s7 + $0x88] sm:$0xf]
      %v4350 = vld [vmem:[%s7 + $0x8c] sm:$0xf]
      %v4351 = vld [vmem:[%s7 + $0x90] sm:$0xf]
      %v4352 = vld [vmem:[%s7 + $0x94] sm:$0xf]
      %v4353 = vld [vmem:[%s7 + $0x98] sm:$0xf]
      %v4354 = vld [vmem:[%s7 + $0x9c] sm:$0xf]
      %v4355 = vld [vmem:[%s7 + $0xa0] sm:$0xf]
      %v4356 = vld [vmem:[%s7 + $0xa4] sm:$0xf]
      %v4357 = vld [vmem:[%s7 + $0xa8] sm:$0xf]
      %v4358 = vld [vmem:[%s7 + $0xac] sm:$0xf]
      %v4359 = vld [vmem:[%s7 + $0xb0] sm:$0xf]
      %v4360 = vld [vmem:[%s7 + $0xb4] sm:$0xf]
      %v4361 = vld [vmem:[%s7 + $0xb8] sm:$0xf]
      %v4362 = vld [vmem:[%s7 + $0xbc] sm:$0xf]
      %v4363 = vld [vmem:[%s7 + $0xc0] sm:$0xf]
      %v4364 = vld [vmem:[%s7 + $0xc4] sm:$0xf]
      %v4365 = vld [vmem:[%s7 + $0xc8] sm:$0xf]
      %v4366 = vld [vmem:[%s7 + $0xcc] sm:$0xf]
      %v4367 = vld [vmem:[%s7 + $0xd0] sm:$0xf]
      %v4368 = vld [vmem:[%s7 + $0xd4] sm:$0xf]
      %v4369 = vld [vmem:[%s7 + $0xd8] sm:$0xf]
      %v4370 = vld [vmem:[%s7 + $0xdc] sm:$0xf]
      %v4371 = vld [vmem:[%s7 + $0xe0] sm:$0xf]
      %v4372 = vld [vmem:[%s7 + $0xe4] sm:$0xf]
      %v4373 = vld [vmem:[%s7 + $0xe8] sm:$0xf]
      %v4374 = vld [vmem:[%s7 + $0xec] sm:$0xf]
      %v4375 = vld [vmem:[%s7 + $0xf0] sm:$0xf]
      %v4376 = vld [vmem:[%s7 + $0xf4] sm:$0xf]
      %v4377 = vld [vmem:[%s7 + $0xf8] sm:$0xf]
      %v4378 = vld [vmem:[%s7 + $0xfc] sm:$0xf]
      %v4379 = vld [vmem:[%s7 + $0x100] sm:$0xf]
      %v4380 = vld [vmem:[%s7 + $0x104] sm:$0xf]
      %v4381 = vld [vmem:[%s7 + $0x108] sm:$0xf]
      %v4382 = vld [vmem:[%s7 + $0x10c] sm:$0xf]
      %v4383 = vld [vmem:[%s7 + $0x110] sm:$0xf]
      %v4384 = vld [vmem:[%s7 + $0x114] sm:$0xf]
      %v4385 = vld [vmem:[%s7 + $0x118] sm:$0xf]
      %v4386 = vld [vmem:[%s7 + $0x11c] sm:$0xf]
      %v4387 = vld [vmem:[%s7 + $0x120] sm:$0xf]
      %v4388 = vld [vmem:[%s7 + $0x124] sm:$0xf]
      %v4389 = vld [vmem:[%s7 + $0x128] sm:$0xf]
      %v4390 = vld [vmem:[%s7 + $0x12c] sm:$0xf]
      %v4391 = vld [vmem:[%s7 + $0x130] sm:$0xf]
      %v4392 = vld [vmem:[%s7 + $0x134] sm:$0xf]
      %v4393 = vld [vmem:[%s7 + $0x138] sm:$0xf]
      %v4394 = vld [vmem:[%s7 + $0x13c] sm:$0xf]
      %v4395 = vld [vmem:[%s7 + $0x140] sm:$0xf]
      %v4396 = vld [vmem:[%s7 + $0x144] sm:$0xf]
      %v4397 = vld [vmem:[%s7 + $0x148] sm:$0xf]
      %v4398 = vld [vmem:[%s7 + $0x14c] sm:$0xf]
      %v4399 = vld [vmem:[%s7 + $0x150] sm:$0xf]
      %v4400 = vld [vmem:[%s7 + $0x154] sm:$0xf]
      %v4401 = vld [vmem:[%s7 + $0x158] sm:$0xf]
      %v4402 = vld [vmem:[%s7 + $0x15c] sm:$0xf]
      %v4403 = vld [vmem:[%s7 + $0x160] sm:$0xf]
      %v4404 = vld [vmem:[%s7 + $0x164] sm:$0xf]
      %v4405 = vld [vmem:[%s7 + $0x168] sm:$0xf]
      %v4406 = vld [vmem:[%s7 + $0x16c] sm:$0xf]
      %v4407 = vld [vmem:[%s7 + $0x170] sm:$0xf]
      %v4408 = vld [vmem:[%s7 + $0x174] sm:$0xf]
      %v4409 = vld [vmem:[%s7 + $0x178] sm:$0xf]
      %v4410 = vld [vmem:[%s7 + $0x17c] sm:$0xf]
      %v4411 = vld [vmem:[%s7 + $0x180] sm:$0xf]
      %v4412 = vld [vmem:[%s7 + $0x184] sm:$0xf]
      %v4413 = vld [vmem:[%s7 + $0x188] sm:$0xf]
      %v4414 = vld [vmem:[%s7 + $0x18c] sm:$0xf]
      %v4415 = vld [vmem:[%s7 + $0x190] sm:$0xf]
      %v4416 = vld [vmem:[%s7 + $0x194] sm:$0xf]
      %v4417 = vld [vmem:[%s7 + $0x198] sm:$0xf]
      %v4418 = vld [vmem:[%s7 + $0x19c] sm:$0xf]
      %v4419 = vld [vmem:[%s7 + $0x1a0] sm:$0xf]
      %v4420 = vld [vmem:[%s7 + $0x1a4] sm:$0xf]
      %v4421 = vld [vmem:[%s7 + $0x1a8] sm:$0xf]
      %v4422 = vld [vmem:[%s7 + $0x1ac] sm:$0xf]
      %v4423 = vld [vmem:[%s7 + $0x1b0] sm:$0xf]
      %v4424 = vld [vmem:[%s7 + $0x1b4] sm:$0xf]
      %v4425 = vld [vmem:[%s7 + $0x1b8] sm:$0xf]
      %v4426 = vld [vmem:[%s7 + $0x1bc] sm:$0xf]
      %v4427 = vld [vmem:[%s7 + $0x1c0] sm:$0xf]
      %v4428 = vld [vmem:[%s7 + $0x1c4] sm:$0xf]
      %v4429 = vld [vmem:[%s7 + $0x1c8] sm:$0xf]
      %v4430 = vld [vmem:[%s7 + $0x1cc] sm:$0xf]
      %v4431 = vld [vmem:[%s7 + $0x1d0] sm:$0xf]
      %v4432 = vld [vmem:[%s7 + $0x1d4] sm:$0xf]
      %v4433 = vld [vmem:[%s7 + $0x1d8] sm:$0xf]
      %v4434 = vld [vmem:[%s7 + $0x1dc] sm:$0xf]
      %v4435 = vld [vmem:[%s7 + $0x1e0] sm:$0xf]
      %v4436 = vld [vmem:[%s7 + $0x1e4] sm:$0xf]
      %v4437 = vld [vmem:[%s7 + $0x1e8] sm:$0xf]
      %v4438 = vld [vmem:[%s7 + $0x1ec] sm:$0xf]
      %v4439 = vld [vmem:[%s7 + $0x1f0] sm:$0xf]
      %v4440 = vld [vmem:[%s7 + $0x1f4] sm:$0xf]
      %v4441 = vld [vmem:[%s7 + $0x1f8] sm:$0xf]
      %v4442 = vld [vmem:[%s7 + $0x1fc] sm:$0xf]
      %v4443 = vld [vmem:[%s7 + $0x200] sm:$0xf]
      %v4444 = vld [vmem:[%s7 + $0x204] sm:$0xf]
      %v4445 = vld [vmem:[%s7 + $0x208] sm:$0xf]
      %v4446 = vld [vmem:[%s7 + $0x20c] sm:$0xf]
      %v4447 = vld [vmem:[%s7 + $0x210] sm:$0xf]
      %v4448 = vld [vmem:[%s7 + $0x214] sm:$0xf]
      %v4449 = vld [vmem:[%s7 + $0x218] sm:$0xf]
      %v4450 = vld [vmem:[%s7 + $0x21c] sm:$0xf]
      %v4451 = vld [vmem:[%s7 + $0x220] sm:$0xf]
      %v4452 = vld [vmem:[%s7 + $0x224] sm:$0xf]
      %v4453 = vld [vmem:[%s7 + $0x228] sm:$0xf]
      %v4454 = vld [vmem:[%s7 + $0x22c] sm:$0xf]
      %v4455 = vld [vmem:[%s7 + $0x230] sm:$0xf]
      %v4456 = vld [vmem:[%s7 + $0x234] sm:$0xf]
      %v4457 = vld [vmem:[%s7 + $0x238] sm:$0xf]
      %v4458 = vld [vmem:[%s7 + $0x23c] sm:$0xf]
      %v4459 = vld [vmem:[#allocation2] sm:$0x1]
      %v4461 = vlaneseq
      %v4462 = vshrl.u32 %v4461, 7
      %v4463 = vsub.s32 0, %v4462
      %v4464 = vrot.slane %v4459, %v4463
      %v4610 = vunpack.c.l.b16 %v4315
      %v4611 = vunpack.c.l.b16 %v4316
      %v4612 = vunpack.c.l.b16 %v4317
      %v4613 = vunpack.c.l.b16 %v4318
      %v4614 = vunpack.c.l.b16 %v4319
      %v4615 = vunpack.c.l.b16 %v4320
      %v4616 = vunpack.c.l.b16 %v4321
      %v4617 = vunpack.c.l.b16 %v4322
      %v4618 = vunpack.c.l.b16 %v4323
      %v4619 = vunpack.c.l.b16 %v4324
      %v4620 = vunpack.c.l.b16 %v4325
      %v4621 = vunpack.c.l.b16 %v4326
      %v4622 = vunpack.c.l.b16 %v4327
      %v4623 = vunpack.c.l.b16 %v4328
      %v4624 = vunpack.c.l.b16 %v4329
      %v4625 = vunpack.c.l.b16 %v4330
      %v4626 = vunpack.c.l.b16 %v4331
      %v4627 = vunpack.c.l.b16 %v4332
      %v4628 = vunpack.c.l.b16 %v4333
      %v4629 = vunpack.c.l.b16 %v4334
      %v4630 = vunpack.c.l.b16 %v4335
      %v4631 = vunpack.c.l.b16 %v4336
      %v4632 = vunpack.c.l.b16 %v4337
      %v4633 = vunpack.c.l.b16 %v4338
      %v4634 = vunpack.c.l.b16 %v4339
      %v4635 = vunpack.c.l.b16 %v4340
      %v4636 = vunpack.c.l.b16 %v4341
      %v4637 = vunpack.c.l.b16 %v4342
      %v4638 = vunpack.c.l.b16 %v4343
      %v4639 = vunpack.c.l.b16 %v4344
      %v4640 = vunpack.c.l.b16 %v4345
      %v4641 = vunpack.c.l.b16 %v4346
      %v4642 = vunpack.c.l.b16 %v4347
      %v4643 = vunpack.c.l.b16 %v4348
      %v4644 = vunpack.c.l.b16 %v4349
      %v4645 = vunpack.c.l.b16 %v4350
      %v4646 = vunpack.c.l.b16 %v4351
      %v4647 = vunpack.c.l.b16 %v4352
      %v4648 = vunpack.c.l.b16 %v4353
      %v4649 = vunpack.c.l.b16 %v4354
      %v4650 = vunpack.c.l.b16 %v4355
      %v4651 = vunpack.c.l.b16 %v4356
      %v4652 = vunpack.c.l.b16 %v4357
      %v4653 = vunpack.c.l.b16 %v4358
      %v4654 = vunpack.c.l.b16 %v4359
      %v4655 = vunpack.c.l.b16 %v4360
      %v4656 = vunpack.c.l.b16 %v4361
      %v4657 = vunpack.c.l.b16 %v4362
      %v4658 = vunpack.c.l.b16 %v4363
      %v4659 = vunpack.c.l.b16 %v4364
      %v4660 = vunpack.c.l.b16 %v4365
      %v4661 = vunpack.c.l.b16 %v4366
      %v4662 = vunpack.c.l.b16 %v4367
      %v4663 = vunpack.c.l.b16 %v4368
      %v4664 = vunpack.c.l.b16 %v4369
      %v4665 = vunpack.c.l.b16 %v4370
      %v4666 = vunpack.c.l.b16 %v4371
      %v4667 = vunpack.c.l.b16 %v4372
      %v4668 = vunpack.c.l.b16 %v4373
      %v4669 = vunpack.c.l.b16 %v4374
      %v4670 = vunpack.c.l.b16 %v4375
      %v4671 = vunpack.c.l.b16 %v4376
      %v4672 = vunpack.c.l.b16 %v4377
      %v4673 = vunpack.c.l.b16 %v4378
      %v4674 = vunpack.c.l.b16 %v4379
      %v4675 = vunpack.c.l.b16 %v4380
      %v4676 = vunpack.c.l.b16 %v4381
      %v4677 = vunpack.c.l.b16 %v4382
      %v4678 = vunpack.c.l.b16 %v4383
      %v4679 = vunpack.c.l.b16 %v4384
      %v4680 = vunpack.c.l.b16 %v4385
      %v4681 = vunpack.c.l.b16 %v4386
      %v4682 = vunpack.c.l.b16 %v4387
      %v4683 = vunpack.c.l.b16 %v4388
      %v4684 = vunpack.c.l.b16 %v4389
      %v4685 = vunpack.c.l.b16 %v4390
      %v4686 = vunpack.c.l.b16 %v4391
      %v4687 = vunpack.c.l.b16 %v4392
      %v4688 = vunpack.c.l.b16 %v4393
      %v4689 = vunpack.c.l.b16 %v4394
      %v4690 = vunpack.c.l.b16 %v4395
      %v4691 = vunpack.c.l.b16 %v4396
      %v4692 = vunpack.c.l.b16 %v4397
      %v4693 = vunpack.c.l.b16 %v4398
      %v4694 = vunpack.c.l.b16 %v4399
      %v4695 = vunpack.c.l.b16 %v4400
      %v4696 = vunpack.c.l.b16 %v4401
      %v4697 = vunpack.c.l.b16 %v4402
      %v4698 = vunpack.c.l.b16 %v4403
      %v4699 = vunpack.c.l.b16 %v4404
      %v4700 = vunpack.c.l.b16 %v4405
      %v4701 = vunpack.c.l.b16 %v4406
      %v4702 = vunpack.c.l.b16 %v4407
      %v4703 = vunpack.c.l.b16 %v4408
      %v4704 = vunpack.c.l.b16 %v4409
      %v4705 = vunpack.c.l.b16 %v4410
      %v4706 = vunpack.c.l.b16 %v4411
      %v4707 = vunpack.c.l.b16 %v4412
      %v4708 = vunpack.c.l.b16 %v4413
      %v4709 = vunpack.c.l.b16 %v4414
      %v4710 = vunpack.c.l.b16 %v4415
      %v4711 = vunpack.c.l.b16 %v4416
      %v4712 = vunpack.c.l.b16 %v4417
      %v4713 = vunpack.c.l.b16 %v4418
      %v4714 = vunpack.c.l.b16 %v4419
      %v4715 = vunpack.c.l.b16 %v4420
      %v4716 = vunpack.c.l.b16 %v4421
      %v4717 = vunpack.c.l.b16 %v4422
      %v4718 = vunpack.c.l.b16 %v4423
      %v4719 = vunpack.c.l.b16 %v4424
      %v4720 = vunpack.c.l.b16 %v4425
      %v4721 = vunpack.c.l.b16 %v4426
      %v4722 = vunpack.c.l.b16 %v4427
      %v4723 = vunpack.c.l.b16 %v4428
      %v4724 = vunpack.c.l.b16 %v4429
      %v4725 = vunpack.c.l.b16 %v4430
      %v4726 = vunpack.c.l.b16 %v4431
      %v4727 = vunpack.c.l.b16 %v4432
      %v4728 = vunpack.c.l.b16 %v4433
      %v4729 = vunpack.c.l.b16 %v4434
      %v4730 = vunpack.c.l.b16 %v4435
      %v4731 = vunpack.c.l.b16 %v4436
      %v4732 = vunpack.c.l.b16 %v4437
      %v4733 = vunpack.c.l.b16 %v4438
      %v4734 = vunpack.c.l.b16 %v4439
      %v4735 = vunpack.c.l.b16 %v4440
      %v4736 = vunpack.c.l.b16 %v4441
      %v4737 = vunpack.c.l.b16 %v4442
      %v4738 = vunpack.c.l.b16 %v4443
      %v4739 = vunpack.c.l.b16 %v4444
      %v4740 = vunpack.c.l.b16 %v4445
      %v4741 = vunpack.c.l.b16 %v4446
      %v4742 = vunpack.c.l.b16 %v4447
      %v4743 = vunpack.c.l.b16 %v4448
      %v4744 = vunpack.c.l.b16 %v4449
      %v4745 = vunpack.c.l.b16 %v4450
      %v4746 = vunpack.c.l.b16 %v4451
      %v4747 = vunpack.c.l.b16 %v4452
      %v4748 = vunpack.c.l.b16 %v4453
      %v4749 = vunpack.c.l.b16 %v4454
      %v4750 = vunpack.c.l.b16 %v4455
      %v4751 = vunpack.c.l.b16 %v4456
      %v4752 = vunpack.c.l.b16 %v4457
      %v4753 = vunpack.c.l.b16 %v4458
      %v4754 = vpack.c.b16 %v4611, %v4610
      %v4755 = vpack.c.b16 %v4613, %v4612
      %v4756 = vpack.c.b16 %v4615, %v4614
      %v4757 = vpack.c.b16 %v4617, %v4616
      %v4758 = vpack.c.b16 %v4619, %v4618
      %v4759 = vpack.c.b16 %v4621, %v4620
      %v4760 = vpack.c.b16 %v4623, %v4622
      %v4761 = vpack.c.b16 %v4625, %v4624
      %v4762 = vpack.c.b16 %v4627, %v4626
      %v4763 = vpack.c.b16 %v4629, %v4628
      %v4764 = vpack.c.b16 %v4631, %v4630
      %v4765 = vpack.c.b16 %v4633, %v4632
      %v4766 = vpack.c.b16 %v4635, %v4634
      %v4767 = vpack.c.b16 %v4637, %v4636
      %v4768 = vpack.c.b16 %v4639, %v4638
      %v4769 = vpack.c.b16 %v4641, %v4640
      %v4770 = vpack.c.b16 %v4643, %v4642
      %v4771 = vpack.c.b16 %v4645, %v4644
      %v4772 = vpack.c.b16 %v4647, %v4646
      %v4773 = vpack.c.b16 %v4649, %v4648
      %v4774 = vpack.c.b16 %v4651, %v4650
      %v4775 = vpack.c.b16 %v4653, %v4652
      %v4776 = vpack.c.b16 %v4655, %v4654
      %v4777 = vpack.c.b16 %v4657, %v4656
      %v4778 = vpack.c.b16 %v4659, %v4658
      %v4779 = vpack.c.b16 %v4661, %v4660
      %v4780 = vpack.c.b16 %v4663, %v4662
      %v4781 = vpack.c.b16 %v4665, %v4664
      %v4782 = vpack.c.b16 %v4667, %v4666
      %v4783 = vpack.c.b16 %v4669, %v4668
      %v4784 = vpack.c.b16 %v4671, %v4670
      %v4785 = vpack.c.b16 %v4673, %v4672
      %v4786 = vpack.c.b16 %v4675, %v4674
      %v4787 = vpack.c.b16 %v4677, %v4676
      %v4788 = vpack.c.b16 %v4679, %v4678
      %v4789 = vpack.c.b16 %v4681, %v4680
      %v4790 = vpack.c.b16 %v4683, %v4682
      %v4791 = vpack.c.b16 %v4685, %v4684
      %v4792 = vpack.c.b16 %v4687, %v4686
      %v4793 = vpack.c.b16 %v4689, %v4688
      %v4794 = vpack.c.b16 %v4691, %v4690
      %v4795 = vpack.c.b16 %v4693, %v4692
      %v4796 = vpack.c.b16 %v4695, %v4694
      %v4797 = vpack.c.b16 %v4697, %v4696
      %v4798 = vpack.c.b16 %v4699, %v4698
      %v4799 = vpack.c.b16 %v4701, %v4700
      %v4800 = vpack.c.b16 %v4703, %v4702
      %v4801 = vpack.c.b16 %v4705, %v4704
      %v4802 = vpack.c.b16 %v4707, %v4706
      %v4803 = vpack.c.b16 %v4709, %v4708
      %v4804 = vpack.c.b16 %v4711, %v4710
      %v4805 = vpack.c.b16 %v4713, %v4712
      %v4806 = vpack.c.b16 %v4715, %v4714
      %v4807 = vpack.c.b16 %v4717, %v4716
      %v4808 = vpack.c.b16 %v4719, %v4718
      %v4809 = vpack.c.b16 %v4721, %v4720
      %v4810 = vpack.c.b16 %v4723, %v4722
      %v4811 = vpack.c.b16 %v4725, %v4724
      %v4812 = vpack.c.b16 %v4727, %v4726
      %v4813 = vpack.c.b16 %v4729, %v4728
      %v4814 = vpack.c.b16 %v4731, %v4730
      %v4815 = vpack.c.b16 %v4733, %v4732
      %v4816 = vpack.c.b16 %v4735, %v4734
      %v4817 = vpack.c.b16 %v4737, %v4736
      %v4818 = vpack.c.b16 %v4739, %v4738
      %v4819 = vpack.c.b16 %v4741, %v4740
      %v4820 = vpack.c.b16 %v4743, %v4742
      %v4821 = vpack.c.b16 %v4745, %v4744
      %v4822 = vpack.c.b16 %v4747, %v4746
      %v4823 = vpack.c.b16 %v4749, %v4748
      %v4824 = vpack.c.b16 %v4751, %v4750
      %v4825 = vpack.c.b16 %v4753, %v4752
      %4898 = vmatprep.subr.bf16.mxu0 0
      %4899 = vmatpush1.bf16.msra.mxu0 %v4761
      %4900 = vmatprep.subr.bf16.mxu0 0
      %4901 = vmatpush1.bf16.msra.mxu0 %v4760
      %4902 = vmatprep.subr.bf16.mxu0 0
      %4903 = vmatpush1.bf16.msra.mxu0 %v4759
      %4904 = vmatprep.subr.bf16.mxu0 0
      %4905 = vmatpush1.bf16.msra.mxu0 %v4758
      %4906 = vmatprep.subr.bf16.mxu0 0
      %4907 = vmatpush1.bf16.msra.mxu0 %v4757
      %4908 = vmatprep.subr.bf16.mxu0 0
      %4909 = vmatpush1.bf16.msra.mxu0 %v4756
      %4910 = vmatprep.subr.bf16.mxu0 0
      %4911 = vmatpush1.bf16.msra.mxu0 %v4755
      %4912 = vmatprep.subr.bf16.mxu0 0
      %4913 = vmatpush1.bf16.msra.mxu0 %v4754
      %4914 = vmatprep.subr.bf16.mxu0 0
      %4915 = vmatpush2.bf16.msra.mxu0 %v4769
      %4916 = vmatprep.subr.bf16.mxu0 0
      %4917 = vmatpush2.bf16.msra.mxu0 %v4768
      %4918 = vmatprep.subr.bf16.mxu0 0
      %4919 = vmatpush2.bf16.msra.mxu0 %v4767
      %4920 = vmatprep.subr.bf16.mxu0 0
      %4921 = vmatpush2.bf16.msra.mxu0 %v4766
      %4922 = vmatprep.subr.bf16.mxu0 0
      %4923 = vmatpush2.bf16.msra.mxu0 %v4765
      %4924 = vmatprep.subr.bf16.mxu0 0
      %4925 = vmatpush2.bf16.msra.mxu0 %v4764
      %4926 = vmatprep.subr.bf16.mxu0 0
      %4927 = vmatpush2.bf16.msra.mxu0 %v4763
      %4928 = vmatprep.subr.bf16.mxu0 0
      %4929 = vmatpush2.bf16.msra.mxu0 %v4762
      %4930 = vmatprep.mubr.bf16.mxu0 %v881
      %4931 = vmatmul.mubr.bf16.gmra.mxu0 %v880
      %v4932 = vpop.f32.mrf.mxu0
      %v4933 = vadd.f32 %v4464, %v4932
      %v4934 = vpop.f32.mrf.mxu0
      %v4935 = vpop.f32.mrf.mxu0
      %v4936 = vadd.f32 %v4464, %v4935
      %v4937 = vpop.f32.mrf.mxu0
      %4938 = vmatprep.mubr.bf16.mxu0 %v4268
      %4939 = vmatmul.mubr.bf16.gmra.mxu0 %v4267
      %v4940 = vpop.f32.mrf.mxu0
      %v4941 = vadd.f32 %v4464, %v4940
      %v4942 = vpop.f32.mrf.mxu0
      %v4943 = vpop.f32.mrf.mxu0
      %v4944 = vadd.f32 %v4464, %v4943
      %v4945 = vpop.f32.mrf.mxu0
      %4946 = vmatprep.mubr.bf16.mxu0 %v4271
      %4947 = vmatmul.mubr.bf16.gmra.mxu0 %v4270
      %v4948 = vpop.f32.mrf.mxu0
      %v4949 = vadd.f32 %v4464, %v4948
      %v4950 = vpop.f32.mrf.mxu0
      %v4951 = vpop.f32.mrf.mxu0
      %v4952 = vadd.f32 %v4464, %v4951
      %v4953 = vpop.f32.mrf.mxu0
      %4954 = vmatprep.mubr.bf16.mxu0 %v4274
      %4955 = vmatmul.mubr.bf16.gmra.mxu0 %v4273
      %v4956 = vpop.f32.mrf.mxu0
      %v4957 = vadd.f32 %v4464, %v4956
      %v4958 = vpop.f32.mrf.mxu0
      %v4959 = vpop.f32.mrf.mxu0
      %v4960 = vadd.f32 %v4464, %v4959
      %v4961 = vpop.f32.mrf.mxu0
      %4962 = vmatprep.mubr.bf16.mxu0 %v4277
      %4963 = vmatmul.mubr.bf16.gmra.mxu0 %v4276
      %v4964 = vpop.f32.mrf.mxu0
      %v4965 = vadd.f32 %v4464, %v4964
      %v4966 = vpop.f32.mrf.mxu0
      %v4967 = vpop.f32.mrf.mxu0
      %v4968 = vadd.f32 %v4464, %v4967
      %v4969 = vpop.f32.mrf.mxu0
      %4970 = vmatprep.mubr.bf16.mxu0 %v4280
      %4971 = vmatmul.mubr.bf16.gmra.mxu0 %v4279
      %v4972 = vpop.f32.mrf.mxu0
      %v4973 = vadd.f32 %v4464, %v4972
      %v4974 = vpop.f32.mrf.mxu0
      %v4975 = vpop.f32.mrf.mxu0
      %v4976 = vadd.f32 %v4464, %v4975
      %v4977 = vpop.f32.mrf.mxu0
      %4978 = vmatprep.mubr.bf16.mxu0 %v4283
      %4979 = vmatmul.mubr.bf16.gmra.mxu0 %v4282
      %v4980 = vpop.f32.mrf.mxu0
      %v4981 = vadd.f32 %v4464, %v4980
      %v4982 = vpop.f32.mrf.mxu0
      %v4983 = vpop.f32.mrf.mxu0
      %v4984 = vadd.f32 %v4464, %v4983
      %v4985 = vpop.f32.mrf.mxu0
      %4986 = vmatprep.mubr.bf16.mxu0 %v4286
      %4987 = vmatmul.mubr.bf16.gmra.mxu0 %v4285
      %v4988 = vpop.f32.mrf.mxu0
      %v4989 = vadd.f32 %v4464, %v4988
      %v4990 = vpop.f32.mrf.mxu0
      %v4991 = vpop.f32.mrf.mxu0
      %v4992 = vadd.f32 %v4464, %v4991
      %v4993 = vpop.f32.mrf.mxu0
      %4994 = vmatprep.mubr.bf16.mxu0 %v4289
      %4995 = vmatmul.mubr.bf16.gmra.mxu0 %v4288
      %v4996 = vpop.f32.mrf.mxu0
      %v4997 = vadd.f32 %v4464, %v4996
      %v4998 = vpop.f32.mrf.mxu0
      %v4999 = vpop.f32.mrf.mxu0
      %v5000 = vadd.f32 %v4464, %v4999
      %v5001 = vpop.f32.mrf.mxu0
      %5002 = vmatprep.mubr.bf16.mxu0 %v4292
      %5003 = vmatmul.mubr.bf16.gmra.mxu0 %v4291
      %v5004 = vpop.f32.mrf.mxu0
      %v5005 = vadd.f32 %v4464, %v5004
      %v5006 = vpop.f32.mrf.mxu0
      %v5007 = vpop.f32.mrf.mxu0
      %v5008 = vadd.f32 %v4464, %v5007
      %v5009 = vpop.f32.mrf.mxu0
      %5010 = vmatprep.mubr.bf16.mxu0 %v4295
      %5011 = vmatmul.mubr.bf16.gmra.mxu0 %v4294
      %v5012 = vpop.f32.mrf.mxu0
      %v5013 = vadd.f32 %v4464, %v5012
      %v5014 = vpop.f32.mrf.mxu0
      %v5015 = vpop.f32.mrf.mxu0
      %v5016 = vadd.f32 %v4464, %v5015
      %v5017 = vpop.f32.mrf.mxu0
      %5018 = vmatprep.mubr.bf16.mxu0 %v4298
      %5019 = vmatmul.mubr.bf16.gmra.mxu0 %v4297
      %v5020 = vpop.f32.mrf.mxu0
      %v5021 = vadd.f32 %v4464, %v5020
      %v5022 = vpop.f32.mrf.mxu0
      %v5023 = vpop.f32.mrf.mxu0
      %v5024 = vadd.f32 %v4464, %v5023
      %v5025 = vpop.f32.mrf.mxu0
      %5026 = vmatprep.mubr.bf16.mxu0 %v4301
      %5027 = vmatmul.mubr.bf16.gmra.mxu0 %v4300
      %v5028 = vpop.f32.mrf.mxu0
      %v5029 = vadd.f32 %v4464, %v5028
      %v5030 = vpop.f32.mrf.mxu0
      %v5031 = vpop.f32.mrf.mxu0
      %v5032 = vadd.f32 %v4464, %v5031
      %v5033 = vpop.f32.mrf.mxu0
      %5034 = vmatprep.mubr.bf16.mxu0 %v4304
      %5035 = vmatmul.mubr.bf16.gmra.mxu0 %v4303
      %v5036 = vpop.f32.mrf.mxu0
      %v5037 = vadd.f32 %v4464, %v5036
      %v5038 = vpop.f32.mrf.mxu0
      %v5039 = vpop.f32.mrf.mxu0
      %v5040 = vadd.f32 %v4464, %v5039
      %v5041 = vpop.f32.mrf.mxu0
      %5042 = vmatprep.mubr.bf16.mxu0 %v4307
      %5043 = vmatmul.mubr.bf16.gmra.mxu0 %v4306
      %v5044 = vpop.f32.mrf.mxu0
      %v5045 = vadd.f32 %v4464, %v5044
      %v5046 = vpop.f32.mrf.mxu0
      %v5047 = vpop.f32.mrf.mxu0
      %v5048 = vadd.f32 %v4464, %v5047
      %v5049 = vpop.f32.mrf.mxu0
      %5050 = vmatprep.mubr.bf16.mxu0 %v4310
      %5051 = vmatmul.mubr.bf16.gmra.mxu0 %v4309
      %v5052 = vpop.f32.mrf.mxu0
      %v5053 = vadd.f32 %v4464, %v5052
      %v5054 = vpop.f32.mrf.mxu0
      %v5055 = vpop.f32.mrf.mxu0
      %v5056 = vadd.f32 %v4464, %v5055
      %v5057 = vpop.f32.mrf.mxu0
      %5058 = vdwg.mxu0
      %5059 = vmatprep.subr.bf16.mxu0 0
      %5060 = vmatpush1.bf16.msra.mxu0 %v4777
      %5061 = vmatprep.subr.bf16.mxu0 0
      %5062 = vmatpush1.bf16.msra.mxu0 %v4776
      %5063 = vmatprep.subr.bf16.mxu0 0
      %5064 = vmatpush1.bf16.msra.mxu0 %v4775
      %5065 = vmatprep.subr.bf16.mxu0 0
      %5066 = vmatpush1.bf16.msra.mxu0 %v4774
      %5067 = vmatprep.subr.bf16.mxu0 0
      %5068 = vmatpush1.bf16.msra.mxu0 %v4773
      %5069 = vmatprep.subr.bf16.mxu0 0
      %5070 = vmatpush1.bf16.msra.mxu0 %v4772
      %5071 = vmatprep.subr.bf16.mxu0 0
      %5072 = vmatpush1.bf16.msra.mxu0 %v4771
      %5073 = vmatprep.subr.bf16.mxu0 0
      %5074 = vmatpush1.bf16.msra.mxu0 %v4770
      %5075 = vmatprep.subr.bf16.mxu0 0
      %5076 = vmatpush2.bf16.msra.mxu0 %v4785
      %5077 = vmatprep.subr.bf16.mxu0 0
      %5078 = vmatpush2.bf16.msra.mxu0 %v4784
      %5079 = vmatprep.subr.bf16.mxu0 0
      %5080 = vmatpush2.bf16.msra.mxu0 %v4783
      %5081 = vmatprep.subr.bf16.mxu0 0
      %5082 = vmatpush2.bf16.msra.mxu0 %v4782
      %5083 = vmatprep.subr.bf16.mxu0 0
      %5084 = vmatpush2.bf16.msra.mxu0 %v4781
      %5085 = vmatprep.subr.bf16.mxu0 0
      %5086 = vmatpush2.bf16.msra.mxu0 %v4780
      %5087 = vmatprep.subr.bf16.mxu0 0
      %5088 = vmatpush2.bf16.msra.mxu0 %v4779
      %5089 = vmatprep.subr.bf16.mxu0 0
      %5090 = vmatpush2.bf16.msra.mxu0 %v4778
      %5091 = vmatprep.mubr.bf16.mxu0 %v4267
      %5092 = vmatmul.mubr.bf16.gmra.mxu0 %v882
      %v5093 = vpop.f32.mrf.mxu0
      %v5094 = vadd.f32 %v4933, %v5093
      %v5095 = vpop.f32.mrf.mxu0
      %v5096 = vpop.f32.mrf.mxu0
      %v5097 = vadd.f32 %v4936, %v5096
      %v5098 = vpop.f32.mrf.mxu0
      %5099 = vmatprep.mubr.bf16.mxu0 %v4270
      %5100 = vmatmul.mubr.bf16.gmra.mxu0 %v4269
      %v5101 = vpop.f32.mrf.mxu0
      %v5102 = vadd.f32 %v4941, %v5101
      %v5103 = vpop.f32.mrf.mxu0
      %v5104 = vpop.f32.mrf.mxu0
      %v5105 = vadd.f32 %v4944, %v5104
      %v5106 = vpop.f32.mrf.mxu0
      %5107 = vmatprep.mubr.bf16.mxu0 %v4273
      %5108 = vmatmul.mubr.bf16.gmra.mxu0 %v4272
      %v5109 = vpop.f32.mrf.mxu0
      %v5110 = vadd.f32 %v4949, %v5109
      %v5111 = vpop.f32.mrf.mxu0
      %v5112 = vpop.f32.mrf.mxu0
      %v5113 = vadd.f32 %v4952, %v5112
      %v5114 = vpop.f32.mrf.mxu0
      %5115 = vmatprep.mubr.bf16.mxu0 %v4276
      %5116 = vmatmul.mubr.bf16.gmra.mxu0 %v4275
      %v5117 = vpop.f32.mrf.mxu0
      %v5118 = vadd.f32 %v4957, %v5117
      %v5119 = vpop.f32.mrf.mxu0
      %v5120 = vpop.f32.mrf.mxu0
      %v5121 = vadd.f32 %v4960, %v5120
      %v5122 = vpop.f32.mrf.mxu0
      %5123 = vmatprep.mubr.bf16.mxu0 %v4279
      %5124 = vmatmul.mubr.bf16.gmra.mxu0 %v4278
      %v5125 = vpop.f32.mrf.mxu0
      %v5126 = vadd.f32 %v4965, %v5125
      %v5127 = vpop.f32.mrf.mxu0
      %v5128 = vpop.f32.mrf.mxu0
      %v5129 = vadd.f32 %v4968, %v5128
      %v5130 = vpop.f32.mrf.mxu0
      %5131 = vmatprep.mubr.bf16.mxu0 %v4282
      %5132 = vmatmul.mubr.bf16.gmra.mxu0 %v4281
      %v5133 = vpop.f32.mrf.mxu0
      %v5134 = vadd.f32 %v4973, %v5133
      %v5135 = vpop.f32.mrf.mxu0
      %v5136 = vpop.f32.mrf.mxu0
      %v5137 = vadd.f32 %v4976, %v5136
      %v5138 = vpop.f32.mrf.mxu0
      %5139 = vmatprep.mubr.bf16.mxu0 %v4285
      %5140 = vmatmul.mubr.bf16.gmra.mxu0 %v4284
      %v5141 = vpop.f32.mrf.mxu0
      %v5142 = vadd.f32 %v4981, %v5141
      %v5143 = vpop.f32.mrf.mxu0
      %v5144 = vpop.f32.mrf.mxu0
      %v5145 = vadd.f32 %v4984, %v5144
      %v5146 = vpop.f32.mrf.mxu0
      %5147 = vmatprep.mubr.bf16.mxu0 %v4288
      %5148 = vmatmul.mubr.bf16.gmra.mxu0 %v4287
      %v5149 = vpop.f32.mrf.mxu0
      %v5150 = vadd.f32 %v4989, %v5149
      %v5151 = vpop.f32.mrf.mxu0
      %v5152 = vpop.f32.mrf.mxu0
      %v5153 = vadd.f32 %v4992, %v5152
      %v5154 = vpop.f32.mrf.mxu0
      %5155 = vmatprep.mubr.bf16.mxu0 %v4291
      %5156 = vmatmul.mubr.bf16.gmra.mxu0 %v4290
      %v5157 = vpop.f32.mrf.mxu0
      %v5158 = vadd.f32 %v4997, %v5157
      %v5159 = vpop.f32.mrf.mxu0
      %v5160 = vpop.f32.mrf.mxu0
      %v5161 = vadd.f32 %v5000, %v5160
      %v5162 = vpop.f32.mrf.mxu0
      %5163 = vmatprep.mubr.bf16.mxu0 %v4294
      %5164 = vmatmul.mubr.bf16.gmra.mxu0 %v4293
      %v5165 = vpop.f32.mrf.mxu0
      %v5166 = vadd.f32 %v5005, %v5165
      %v5167 = vpop.f32.mrf.mxu0
      %v5168 = vpop.f32.mrf.mxu0
      %v5169 = vadd.f32 %v5008, %v5168
      %v5170 = vpop.f32.mrf.mxu0
      %5171 = vmatprep.mubr.bf16.mxu0 %v4297
      %5172 = vmatmul.mubr.bf16.gmra.mxu0 %v4296
      %v5173 = vpop.f32.mrf.mxu0
      %v5174 = vadd.f32 %v5013, %v5173
      %v5175 = vpop.f32.mrf.mxu0
      %v5176 = vpop.f32.mrf.mxu0
      %v5177 = vadd.f32 %v5016, %v5176
      %v5178 = vpop.f32.mrf.mxu0
      %5179 = vmatprep.mubr.bf16.mxu0 %v4300
      %5180 = vmatmul.mubr.bf16.gmra.mxu0 %v4299
      %v5181 = vpop.f32.mrf.mxu0
      %v5182 = vadd.f32 %v5021, %v5181
      %v5183 = vpop.f32.mrf.mxu0
      %v5184 = vpop.f32.mrf.mxu0
      %v5185 = vadd.f32 %v5024, %v5184
      %v5186 = vpop.f32.mrf.mxu0
      %5187 = vmatprep.mubr.bf16.mxu0 %v4303
      %5188 = vmatmul.mubr.bf16.gmra.mxu0 %v4302
      %v5189 = vpop.f32.mrf.mxu0
      %v5190 = vadd.f32 %v5029, %v5189
      %v5191 = vpop.f32.mrf.mxu0
      %v5192 = vpop.f32.mrf.mxu0
      %v5193 = vadd.f32 %v5032, %v5192
      %v5194 = vpop.f32.mrf.mxu0
      %5195 = vmatprep.mubr.bf16.mxu0 %v4306
      %5196 = vmatmul.mubr.bf16.gmra.mxu0 %v4305
      %v5197 = vpop.f32.mrf.mxu0
      %v5198 = vadd.f32 %v5037, %v5197
      %v5199 = vpop.f32.mrf.mxu0
      %v5200 = vpop.f32.mrf.mxu0
      %v5201 = vadd.f32 %v5040, %v5200
      %v5202 = vpop.f32.mrf.mxu0
      %5203 = vmatprep.mubr.bf16.mxu0 %v4309
      %5204 = vmatmul.mubr.bf16.gmra.mxu0 %v4308
      %v5205 = vpop.f32.mrf.mxu0
      %v5206 = vadd.f32 %v5045, %v5205
      %v5207 = vpop.f32.mrf.mxu0
      %v5208 = vpop.f32.mrf.mxu0
      %v5209 = vadd.f32 %v5048, %v5208
      %v5210 = vpop.f32.mrf.mxu0
      %5211 = vmatprep.mubr.bf16.mxu0 %v4312
      %5212 = vmatmul.mubr.bf16.gmra.mxu0 %v4311
      %v5213 = vpop.f32.mrf.mxu0
      %v5214 = vadd.f32 %v5053, %v5213
      %v5215 = vpop.f32.mrf.mxu0
      %v5216 = vpop.f32.mrf.mxu0
      %v5217 = vadd.f32 %v5056, %v5216
      %v5218 = vpop.f32.mrf.mxu0
      %5219 = vdwg.mxu0
      %5220 = vmatprep.subr.bf16.mxu0 0
      %5221 = vmatpush1.bf16.msra.mxu0 %v4793
      %5222 = vmatprep.subr.bf16.mxu0 0
      %5223 = vmatpush1.bf16.msra.mxu0 %v4792
      %5224 = vmatprep.subr.bf16.mxu0 0
      %5225 = vmatpush1.bf16.msra.mxu0 %v4791
      %5226 = vmatprep.subr.bf16.mxu0 0
      %5227 = vmatpush1.bf16.msra.mxu0 %v4790
      %5228 = vmatprep.subr.bf16.mxu0 0
      %5229 = vmatpush1.bf16.msra.mxu0 %v4789
      %5230 = vmatprep.subr.bf16.mxu0 0
      %5231 = vmatpush1.bf16.msra.mxu0 %v4788
      %5232 = vmatprep.subr.bf16.mxu0 0
      %5233 = vmatpush1.bf16.msra.mxu0 %v4787
      %5234 = vmatprep.subr.bf16.mxu0 0
      %5235 = vmatpush1.bf16.msra.mxu0 %v4786
      %5236 = vmatprep.subr.bf16.mxu0 0
      %5237 = vmatpush2.bf16.msra.mxu0 %v4801
      %5238 = vmatprep.subr.bf16.mxu0 0
      %5239 = vmatpush2.bf16.msra.mxu0 %v4800
      %5240 = vmatprep.subr.bf16.mxu0 0
      %5241 = vmatpush2.bf16.msra.mxu0 %v4799
      %5242 = vmatprep.subr.bf16.mxu0 0
      %5243 = vmatpush2.bf16.msra.mxu0 %v4798
      %5244 = vmatprep.subr.bf16.mxu0 0
      %5245 = vmatpush2.bf16.msra.mxu0 %v4797
      %5246 = vmatprep.subr.bf16.mxu0 0
      %5247 = vmatpush2.bf16.msra.mxu0 %v4796
      %5248 = vmatprep.subr.bf16.mxu0 0
      %5249 = vmatpush2.bf16.msra.mxu0 %v4795
      %5250 = vmatprep.subr.bf16.mxu0 0
      %5251 = vmatpush2.bf16.msra.mxu0 %v4794
      %5252 = vmatprep.mubr.bf16.mxu0 %v4269
      %5253 = vmatmul.mubr.bf16.gmra.mxu0 %v4268
      %v5254 = vpop.f32.mrf.mxu0
      %v5255 = vadd.f32 %v5094, %v5254
      %v5256 = vpop.f32.mrf.mxu0
      %v5257 = vpop.f32.mrf.mxu0
      %v5258 = vadd.f32 %v5097, %v5257
      %v5259 = vpop.f32.mrf.mxu0
      %5260 = vmatprep.mubr.bf16.mxu0 %v4272
      %5261 = vmatmul.mubr.bf16.gmra.mxu0 %v4271
      %v5262 = vpop.f32.mrf.mxu0
      %v5263 = vadd.f32 %v5102, %v5262
      %v5264 = vpop.f32.mrf.mxu0
      %v5265 = vpop.f32.mrf.mxu0
      %v5266 = vadd.f32 %v5105, %v5265
      %v5267 = vpop.f32.mrf.mxu0
      %5268 = vmatprep.mubr.bf16.mxu0 %v4275
      %5269 = vmatmul.mubr.bf16.gmra.mxu0 %v4274
      %v5270 = vpop.f32.mrf.mxu0
      %v5271 = vadd.f32 %v5110, %v5270
      %v5272 = vpop.f32.mrf.mxu0
      %v5273 = vpop.f32.mrf.mxu0
      %v5274 = vadd.f32 %v5113, %v5273
      %v5275 = vpop.f32.mrf.mxu0
      %5276 = vmatprep.mubr.bf16.mxu0 %v4278
      %5277 = vmatmul.mubr.bf16.gmra.mxu0 %v4277
      %v5278 = vpop.f32.mrf.mxu0
      %v5279 = vadd.f32 %v5118, %v5278
      %v5280 = vpop.f32.mrf.mxu0
      %v5281 = vpop.f32.mrf.mxu0
      %v5282 = vadd.f32 %v5121, %v5281
      %v5283 = vpop.f32.mrf.mxu0
      %5284 = vmatprep.mubr.bf16.mxu0 %v4281
      %5285 = vmatmul.mubr.bf16.gmra.mxu0 %v4280
      %v5286 = vpop.f32.mrf.mxu0
      %v5287 = vadd.f32 %v5126, %v5286
      %v5288 = vpop.f32.mrf.mxu0
      %v5289 = vpop.f32.mrf.mxu0
      %v5290 = vadd.f32 %v5129, %v5289
      %v5291 = vpop.f32.mrf.mxu0
      %5292 = vmatprep.mubr.bf16.mxu0 %v4284
      %5293 = vmatmul.mubr.bf16.gmra.mxu0 %v4283
      %v5294 = vpop.f32.mrf.mxu0
      %v5295 = vadd.f32 %v5134, %v5294
      %v5296 = vpop.f32.mrf.mxu0
      %v5297 = vpop.f32.mrf.mxu0
      %v5298 = vadd.f32 %v5137, %v5297
      %v5299 = vpop.f32.mrf.mxu0
      %5300 = vmatprep.mubr.bf16.mxu0 %v4287
      %5301 = vmatmul.mubr.bf16.gmra.mxu0 %v4286
      %v5302 = vpop.f32.mrf.mxu0
      %v5303 = vadd.f32 %v5142, %v5302
      %v5304 = vpop.f32.mrf.mxu0
      %v5305 = vpop.f32.mrf.mxu0
      %v5306 = vadd.f32 %v5145, %v5305
      %v5307 = vpop.f32.mrf.mxu0
      %5308 = vmatprep.mubr.bf16.mxu0 %v4290
      %5309 = vmatmul.mubr.bf16.gmra.mxu0 %v4289
      %v5310 = vpop.f32.mrf.mxu0
      %v5311 = vadd.f32 %v5150, %v5310
      %v5312 = vpop.f32.mrf.mxu0
      %v5313 = vpop.f32.mrf.mxu0
      %v5314 = vadd.f32 %v5153, %v5313
      %v5315 = vpop.f32.mrf.mxu0
      %5316 = vmatprep.mubr.bf16.mxu0 %v4293
      %5317 = vmatmul.mubr.bf16.gmra.mxu0 %v4292
      %v5318 = vpop.f32.mrf.mxu0
      %v5319 = vadd.f32 %v5158, %v5318
      %v5320 = vpop.f32.mrf.mxu0
      %v5321 = vpop.f32.mrf.mxu0
      %v5322 = vadd.f32 %v5161, %v5321
      %v5323 = vpop.f32.mrf.mxu0
      %5324 = vmatprep.mubr.bf16.mxu0 %v4296
      %5325 = vmatmul.mubr.bf16.gmra.mxu0 %v4295
      %v5326 = vpop.f32.mrf.mxu0
      %v5327 = vadd.f32 %v5166, %v5326
      %v5328 = vpop.f32.mrf.mxu0
      %v5329 = vpop.f32.mrf.mxu0
      %v5330 = vadd.f32 %v5169, %v5329
      %v5331 = vpop.f32.mrf.mxu0
      %5332 = vmatprep.mubr.bf16.mxu0 %v4299
      %5333 = vmatmul.mubr.bf16.gmra.mxu0 %v4298
      %v5334 = vpop.f32.mrf.mxu0
      %v5335 = vadd.f32 %v5174, %v5334
      %v5336 = vpop.f32.mrf.mxu0
      %v5337 = vpop.f32.mrf.mxu0
      %v5338 = vadd.f32 %v5177, %v5337
      %v5339 = vpop.f32.mrf.mxu0
      %5340 = vmatprep.mubr.bf16.mxu0 %v4302
      %5341 = vmatmul.mubr.bf16.gmra.mxu0 %v4301
      %v5342 = vpop.f32.mrf.mxu0
      %v5343 = vadd.f32 %v5182, %v5342
      %v5344 = vpop.f32.mrf.mxu0
      %v5345 = vpop.f32.mrf.mxu0
      %v5346 = vadd.f32 %v5185, %v5345
      %v5347 = vpop.f32.mrf.mxu0
      %5348 = vmatprep.mubr.bf16.mxu0 %v4305
      %5349 = vmatmul.mubr.bf16.gmra.mxu0 %v4304
      %v5350 = vpop.f32.mrf.mxu0
      %v5351 = vadd.f32 %v5190, %v5350
      %v5352 = vpop.f32.mrf.mxu0
      %v5353 = vpop.f32.mrf.mxu0
      %v5354 = vadd.f32 %v5193, %v5353
      %v5355 = vpop.f32.mrf.mxu0
      %5356 = vmatprep.mubr.bf16.mxu0 %v4308
      %5357 = vmatmul.mubr.bf16.gmra.mxu0 %v4307
      %v5358 = vpop.f32.mrf.mxu0
      %v5359 = vadd.f32 %v5198, %v5358
      %v5360 = vpop.f32.mrf.mxu0
      %v5361 = vpop.f32.mrf.mxu0
      %v5362 = vadd.f32 %v5201, %v5361
      %v5363 = vpop.f32.mrf.mxu0
      %5364 = vmatprep.mubr.bf16.mxu0 %v4311
      %5365 = vmatmul.mubr.bf16.gmra.mxu0 %v4310
      %v5366 = vpop.f32.mrf.mxu0
      %v5367 = vadd.f32 %v5206, %v5366
      %v5368 = vpop.f32.mrf.mxu0
      %v5369 = vpop.f32.mrf.mxu0
      %v5370 = vadd.f32 %v5209, %v5369
      %v5371 = vpop.f32.mrf.mxu0
      %5372 = vmatprep.mubr.bf16.mxu0 %v4314
      %5373 = vmatmul.mubr.bf16.gmra.mxu0 %v4313
      %v5374 = vpop.f32.mrf.mxu0
      %v5375 = vadd.f32 %v5214, %v5374
      %v5376 = vpop.f32.mrf.mxu0
      %v5377 = vpop.f32.mrf.mxu0
      %v5378 = vadd.f32 %v5217, %v5377
      %v5379 = vpop.f32.mrf.mxu0
      %5380 = vdwg.mxu0
      %5381 = vmatprep.subr.bf16.mxu0 0
      %5382 = vmatpush1.bf16.msra.mxu0 %v4809
      %5383 = vmatprep.subr.bf16.mxu0 0
      %5384 = vmatpush1.bf16.msra.mxu0 %v4808
      %5385 = vmatprep.subr.bf16.mxu0 0
      %5386 = vmatpush1.bf16.msra.mxu0 %v4807
      %5387 = vmatprep.subr.bf16.mxu0 0
      %5388 = vmatpush1.bf16.msra.mxu0 %v4806
      %5389 = vmatprep.subr.bf16.mxu0 0
      %5390 = vmatpush1.bf16.msra.mxu0 %v4805
      %5391 = vmatprep.subr.bf16.mxu0 0
      %5392 = vmatpush1.bf16.msra.mxu0 %v4804
      %5393 = vmatprep.subr.bf16.mxu0 0
      %5394 = vmatpush1.bf16.msra.mxu0 %v4803
      %5395 = vmatprep.subr.bf16.mxu0 0
      %5396 = vmatpush1.bf16.msra.mxu0 %v4802
      %5397 = vmatprep.subr.bf16.mxu0 0
      %5398 = vmatpush2.bf16.msra.mxu0 %v4817
      %5399 = vmatprep.subr.bf16.mxu0 0
      %5400 = vmatpush2.bf16.msra.mxu0 %v4816
      %5401 = vmatprep.subr.bf16.mxu0 0
      %5402 = vmatpush2.bf16.msra.mxu0 %v4815
      %5403 = vmatprep.subr.bf16.mxu0 0
      %5404 = vmatpush2.bf16.msra.mxu0 %v4814
      %5405 = vmatprep.subr.bf16.mxu0 0
      %5406 = vmatpush2.bf16.msra.mxu0 %v4813
      %5407 = vmatprep.subr.bf16.mxu0 0
      %5408 = vmatpush2.bf16.msra.mxu0 %v4812
      %5409 = vmatprep.subr.bf16.mxu0 0
      %5410 = vmatpush2.bf16.msra.mxu0 %v4811
      %5411 = vmatprep.subr.bf16.mxu0 0
      %5412 = vmatpush2.bf16.msra.mxu0 %v4810
      %5413 = vmatprep.mubr.bf16.mxu0 %v4271
      %5414 = vmatmul.mubr.bf16.gmra.mxu0 %v4270
      %v5415 = vpop.f32.mrf.mxu0
      %v5416 = vadd.f32 %v5255, %v5415
      %v5417 = vpop.f32.mrf.mxu0
      %v5418 = vpop.f32.mrf.mxu0
      %v5419 = vadd.f32 %v5258, %v5418
      %v5420 = vpop.f32.mrf.mxu0
      %5421 = vmatprep.mubr.bf16.mxu0 %v4274
      %5422 = vmatmul.mubr.bf16.gmra.mxu0 %v4273
      %v5423 = vpop.f32.mrf.mxu0
      %v5424 = vadd.f32 %v5263, %v5423
      %v5425 = vpop.f32.mrf.mxu0
      %v5426 = vpop.f32.mrf.mxu0
      %v5427 = vadd.f32 %v5266, %v5426
      %v5428 = vpop.f32.mrf.mxu0
      %5429 = vmatprep.mubr.bf16.mxu0 %v4277
      %5430 = vmatmul.mubr.bf16.gmra.mxu0 %v4276
      %v5431 = vpop.f32.mrf.mxu0
      %v5432 = vadd.f32 %v5271, %v5431
      %v5433 = vpop.f32.mrf.mxu0
      %v5434 = vpop.f32.mrf.mxu0
      %v5435 = vadd.f32 %v5274, %v5434
      %v5436 = vpop.f32.mrf.mxu0
      %5437 = vmatprep.mubr.bf16.mxu0 %v4280
      %5438 = vmatmul.mubr.bf16.gmra.mxu0 %v4279
      %v5439 = vpop.f32.mrf.mxu0
      %v5440 = vadd.f32 %v5279, %v5439
      %v5441 = vpop.f32.mrf.mxu0
      %v5442 = vpop.f32.mrf.mxu0
      %v5443 = vadd.f32 %v5282, %v5442
      %v5444 = vpop.f32.mrf.mxu0
      %5445 = vmatprep.mubr.bf16.mxu0 %v4283
      %5446 = vmatmul.mubr.bf16.gmra.mxu0 %v4282
      %v5447 = vpop.f32.mrf.mxu0
      %v5448 = vadd.f32 %v5287, %v5447
      %v5449 = vpop.f32.mrf.mxu0
      %v5450 = vpop.f32.mrf.mxu0
      %v5451 = vadd.f32 %v5290, %v5450
      %v5452 = vpop.f32.mrf.mxu0
      %5453 = vmatprep.mubr.bf16.mxu0 %v4286
      %5454 = vmatmul.mubr.bf16.gmra.mxu0 %v4285
      %v5455 = vpop.f32.mrf.mxu0
      %v5456 = vadd.f32 %v5295, %v5455
      %v5457 = vpop.f32.mrf.mxu0
      %v5458 = vpop.f32.mrf.mxu0
      %v5459 = vadd.f32 %v5298, %v5458
      %v5460 = vpop.f32.mrf.mxu0
      %5461 = vmatprep.mubr.bf16.mxu0 %v4289
      %5462 = vmatmul.mubr.bf16.gmra.mxu0 %v4288
      %v5463 = vpop.f32.mrf.mxu0
      %v5464 = vadd.f32 %v5303, %v5463
      %v5465 = vpop.f32.mrf.mxu0
      %v5466 = vpop.f32.mrf.mxu0
      %v5467 = vadd.f32 %v5306, %v5466
      %v5468 = vpop.f32.mrf.mxu0
      %5469 = vmatprep.mubr.bf16.mxu0 %v4292
      %5470 = vmatmul.mubr.bf16.gmra.mxu0 %v4291
      %v5471 = vpop.f32.mrf.mxu0
      %v5472 = vadd.f32 %v5311, %v5471
      %v5473 = vpop.f32.mrf.mxu0
      %v5474 = vpop.f32.mrf.mxu0
      %v5475 = vadd.f32 %v5314, %v5474
      %v5476 = vpop.f32.mrf.mxu0
      %5477 = vmatprep.mubr.bf16.mxu0 %v4295
      %5478 = vmatmul.mubr.bf16.gmra.mxu0 %v4294
      %v5479 = vpop.f32.mrf.mxu0
      %v5480 = vadd.f32 %v5319, %v5479
      %v5481 = vpop.f32.mrf.mxu0
      %v5482 = vpop.f32.mrf.mxu0
      %v5483 = vadd.f32 %v5322, %v5482
      %v5484 = vpop.f32.mrf.mxu0
      %5485 = vmatprep.mubr.bf16.mxu0 %v4298
      %5486 = vmatmul.mubr.bf16.gmra.mxu0 %v4297
      %v5487 = vpop.f32.mrf.mxu0
      %v5488 = vadd.f32 %v5327, %v5487
      %v5489 = vpop.f32.mrf.mxu0
      %v5490 = vpop.f32.mrf.mxu0
      %v5491 = vadd.f32 %v5330, %v5490
      %v5492 = vpop.f32.mrf.mxu0
      %5493 = vmatprep.mubr.bf16.mxu0 %v4301
      %5494 = vmatmul.mubr.bf16.gmra.mxu0 %v4300
      %v5495 = vpop.f32.mrf.mxu0
      %v5496 = vadd.f32 %v5335, %v5495
      %v5497 = vpop.f32.mrf.mxu0
      %v5498 = vpop.f32.mrf.mxu0
      %v5499 = vadd.f32 %v5338, %v5498
      %v5500 = vpop.f32.mrf.mxu0
      %5501 = vmatprep.mubr.bf16.mxu0 %v4304
      %5502 = vmatmul.mubr.bf16.gmra.mxu0 %v4303
      %v5503 = vpop.f32.mrf.mxu0
      %v5504 = vadd.f32 %v5343, %v5503
      %v5505 = vpop.f32.mrf.mxu0
      %v5506 = vpop.f32.mrf.mxu0
      %v5507 = vadd.f32 %v5346, %v5506
      %v5508 = vpop.f32.mrf.mxu0
      %5509 = vmatprep.mubr.bf16.mxu0 %v4307
      %5510 = vmatmul.mubr.bf16.gmra.mxu0 %v4306
      %v5511 = vpop.f32.mrf.mxu0
      %v5512 = vadd.f32 %v5351, %v5511
      %v5513 = vpop.f32.mrf.mxu0
      %v5514 = vpop.f32.mrf.mxu0
      %v5515 = vadd.f32 %v5354, %v5514
      %v5516 = vpop.f32.mrf.mxu0
      %5517 = vmatprep.mubr.bf16.mxu0 %v4310
      %5518 = vmatmul.mubr.bf16.gmra.mxu0 %v4309
      %v5519 = vpop.f32.mrf.mxu0
      %v5520 = vadd.f32 %v5359, %v5519
      %v5521 = vpop.f32.mrf.mxu0
      %v5522 = vpop.f32.mrf.mxu0
      %v5523 = vadd.f32 %v5362, %v5522
      %v5524 = vpop.f32.mrf.mxu0
      %5525 = vmatprep.mubr.bf16.mxu0 %v4313
      %5526 = vmatmul.mubr.bf16.gmra.mxu0 %v4312
      %v5527 = vpop.f32.mrf.mxu0
      %v5528 = vadd.f32 %v5367, %v5527
      %v5529 = vpop.f32.mrf.mxu0
      %v5530 = vpop.f32.mrf.mxu0
      %v5531 = vadd.f32 %v5370, %v5530
      %v5532 = vpop.f32.mrf.mxu0
      %5533 = vmatprep.mubr.bf16.mxu0 %v881
      %5534 = vmatmul.mubr.bf16.gmra.mxu0 %v880
      %v5535 = vpop.f32.mrf.mxu0
      %v5536 = vadd.f32 %v5375, %v5535
      %v5537 = vpop.f32.mrf.mxu0
      %v5538 = vpop.f32.mrf.mxu0
      %v5539 = vadd.f32 %v5378, %v5538
      %v5540 = vpop.f32.mrf.mxu0
      %5541 = vdwg.mxu0
      %5542 = vmatprep.subr.bf16.mxu0 0
      %5543 = vmatpush1.bf16.msra.mxu0 %v4825
      %5544 = vmatprep.subr.bf16.mxu0 0
      %5545 = vmatpush1.bf16.msra.mxu0 %v4824
      %5546 = vmatprep.subr.bf16.mxu0 0
      %5547 = vmatpush1.bf16.msra.mxu0 %v4823
      %5548 = vmatprep.subr.bf16.mxu0 0
      %5549 = vmatpush1.bf16.msra.mxu0 %v4822
      %5550 = vmatprep.subr.bf16.mxu0 0
      %5551 = vmatpush1.bf16.msra.mxu0 %v4821
      %5552 = vmatprep.subr.bf16.mxu0 0
      %5553 = vmatpush1.bf16.msra.mxu0 %v4820
      %5554 = vmatprep.subr.bf16.mxu0 0
      %5555 = vmatpush1.bf16.msra.mxu0 %v4819
      %5556 = vmatprep.subr.bf16.mxu0 0
      %5557 = vmatpush1.bf16.msra.mxu0 %v4818
      %5558 = vmatprep.subr.bf16.mxu0 0
      %5559 = vmatpush2.bf16.msra.mxu0 0
      %5560 = vmatprep.subr.bf16.mxu0 0
      %5561 = vmatpush2.bf16.msra.mxu0 0
      %5562 = vmatprep.subr.bf16.mxu0 0
      %5563 = vmatpush2.bf16.msra.mxu0 0
      %5564 = vmatprep.subr.bf16.mxu0 0
      %5565 = vmatpush2.bf16.msra.mxu0 0
      %5566 = vmatprep.subr.bf16.mxu0 0
      %5567 = vmatpush2.bf16.msra.mxu0 0
      %5568 = vmatprep.subr.bf16.mxu0 0
      %5569 = vmatpush2.bf16.msra.mxu0 0
      %5570 = vmatprep.subr.bf16.mxu0 0
      %5571 = vmatpush2.bf16.msra.mxu0 0
      %5572 = vmatprep.subr.bf16.mxu0 0
      %5573 = vmatpush2.bf16.msra.mxu0 0
      %5574 = vmatprep.mubr.bf16.mxu0 0
      %5575 = vmatmul.mubr.bf16.gmra.mxu0 %v4272
      %v5576 = vpop.f32.mrf.mxu0
      %v5577 = vadd.f32 %v5416, %v5576
      %v5578 = vpop.f32.mrf.mxu0
      %v5579 = vpop.f32.mrf.mxu0
      %v5580 = vadd.f32 %v5419, %v5579
      %v5581 = vpop.f32.mrf.mxu0
      %5582 = vmatprep.mubr.bf16.mxu0 0
      %5583 = vmatmul.mubr.bf16.gmra.mxu0 %v4275
      %v5584 = vpop.f32.mrf.mxu0
      %v5585 = vadd.f32 %v5424, %v5584
      %v5586 = vpop.f32.mrf.mxu0
      %v5587 = vpop.f32.mrf.mxu0
      %v5588 = vadd.f32 %v5427, %v5587
      %v5589 = vpop.f32.mrf.mxu0
      %5590 = vmatprep.mubr.bf16.mxu0 0
      %5591 = vmatmul.mubr.bf16.gmra.mxu0 %v4278
      %v5592 = vpop.f32.mrf.mxu0
      %v5593 = vadd.f32 %v5432, %v5592
      %v5594 = vpop.f32.mrf.mxu0
      %v5595 = vpop.f32.mrf.mxu0
      %v5596 = vadd.f32 %v5435, %v5595
      %v5597 = vpop.f32.mrf.mxu0
      %5598 = vmatprep.mubr.bf16.mxu0 0
      %5599 = vmatmul.mubr.bf16.gmra.mxu0 %v4281
      %v5600 = vpop.f32.mrf.mxu0
      %v5601 = vadd.f32 %v5440, %v5600
      %v5602 = vpop.f32.mrf.mxu0
      %v5603 = vpop.f32.mrf.mxu0
      %v5604 = vadd.f32 %v5443, %v5603
      %v5605 = vpop.f32.mrf.mxu0
      %5606 = vmatprep.mubr.bf16.mxu0 0
      %5607 = vmatmul.mubr.bf16.gmra.mxu0 %v4284
      %v5608 = vpop.f32.mrf.mxu0
      %v5609 = vadd.f32 %v5448, %v5608
      %v5610 = vpop.f32.mrf.mxu0
      %v5611 = vpop.f32.mrf.mxu0
      %v5612 = vadd.f32 %v5451, %v5611
      %v5613 = vpop.f32.mrf.mxu0
      %5614 = vmatprep.mubr.bf16.mxu0 0
      %5615 = vmatmul.mubr.bf16.gmra.mxu0 %v4287
      %v5616 = vpop.f32.mrf.mxu0
      %v5617 = vadd.f32 %v5456, %v5616
      %v5618 = vpop.f32.mrf.mxu0
      %v5619 = vpop.f32.mrf.mxu0
      %v5620 = vadd.f32 %v5459, %v5619
      %v5621 = vpop.f32.mrf.mxu0
      %5622 = vmatprep.mubr.bf16.mxu0 0
      %5623 = vmatmul.mubr.bf16.gmra.mxu0 %v4290
      %v5624 = vpop.f32.mrf.mxu0
      %v5625 = vadd.f32 %v5464, %v5624
      %v5626 = vpop.f32.mrf.mxu0
      %v5627 = vpop.f32.mrf.mxu0
      %v5628 = vadd.f32 %v5467, %v5627
      %v5629 = vpop.f32.mrf.mxu0
      %5630 = vmatprep.mubr.bf16.mxu0 0
      %5631 = vmatmul.mubr.bf16.gmra.mxu0 %v4293
      %v5632 = vpop.f32.mrf.mxu0
      %v5633 = vadd.f32 %v5472, %v5632
      %v5634 = vpop.f32.mrf.mxu0
      %v5635 = vpop.f32.mrf.mxu0
      %v5636 = vadd.f32 %v5475, %v5635
      %v5637 = vpop.f32.mrf.mxu0
      %5638 = vmatprep.mubr.bf16.mxu0 0
      %5639 = vmatmul.mubr.bf16.gmra.mxu0 %v4296
      %v5640 = vpop.f32.mrf.mxu0
      %v5641 = vadd.f32 %v5480, %v5640
      %v5642 = vpop.f32.mrf.mxu0
      %v5643 = vpop.f32.mrf.mxu0
      %v5644 = vadd.f32 %v5483, %v5643
      %v5645 = vpop.f32.mrf.mxu0
      %5646 = vmatprep.mubr.bf16.mxu0 0
      %5647 = vmatmul.mubr.bf16.gmra.mxu0 %v4299
      %v5648 = vpop.f32.mrf.mxu0
      %v5649 = vadd.f32 %v5488, %v5648
      %v5650 = vpop.f32.mrf.mxu0
      %v5651 = vpop.f32.mrf.mxu0
      %v5652 = vadd.f32 %v5491, %v5651
      %v5653 = vpop.f32.mrf.mxu0
      %5654 = vmatprep.mubr.bf16.mxu0 0
      %5655 = vmatmul.mubr.bf16.gmra.mxu0 %v4302
      %v5656 = vpop.f32.mrf.mxu0
      %v5657 = vadd.f32 %v5496, %v5656
      %v5658 = vpop.f32.mrf.mxu0
      %v5659 = vpop.f32.mrf.mxu0
      %v5660 = vadd.f32 %v5499, %v5659
      %v5661 = vpop.f32.mrf.mxu0
      %5662 = vmatprep.mubr.bf16.mxu0 0
      %5663 = vmatmul.mubr.bf16.gmra.mxu0 %v4305
      %v5664 = vpop.f32.mrf.mxu0
      %v5665 = vadd.f32 %v5504, %v5664
      %v5666 = vpop.f32.mrf.mxu0
      %v5667 = vpop.f32.mrf.mxu0
      %v5668 = vadd.f32 %v5507, %v5667
      %v5669 = vpop.f32.mrf.mxu0
      %5670 = vmatprep.mubr.bf16.mxu0 0
      %5671 = vmatmul.mubr.bf16.gmra.mxu0 %v4308
      %v5672 = vpop.f32.mrf.mxu0
      %v5673 = vadd.f32 %v5512, %v5672
      %v5674 = vpop.f32.mrf.mxu0
      %v5675 = vpop.f32.mrf.mxu0
      %v5676 = vadd.f32 %v5515, %v5675
      %v5677 = vpop.f32.mrf.mxu0
      %5678 = vmatprep.mubr.bf16.mxu0 0
      %5679 = vmatmul.mubr.bf16.gmra.mxu0 %v4311
      %v5680 = vpop.f32.mrf.mxu0
      %v5681 = vadd.f32 %v5520, %v5680
      %v5682 = vpop.f32.mrf.mxu0
      %v5683 = vpop.f32.mrf.mxu0
      %v5684 = vadd.f32 %v5523, %v5683
      %v5685 = vpop.f32.mrf.mxu0
      %5686 = vmatprep.mubr.bf16.mxu0 0
      %5687 = vmatmul.mubr.bf16.gmra.mxu0 %v4314
      %v5688 = vpop.f32.mrf.mxu0
      %v5689 = vadd.f32 %v5528, %v5688
      %v5690 = vpop.f32.mrf.mxu0
      %v5691 = vpop.f32.mrf.mxu0
      %v5692 = vadd.f32 %v5531, %v5691
      %v5693 = vpop.f32.mrf.mxu0
      %5694 = vmatprep.mubr.bf16.mxu0 0
      %5695 = vmatmul.mubr.bf16.gmra.mxu0 %v882
      %v5696 = vpop.f32.mrf.mxu0
      %v5697 = vadd.f32 %v5536, %v5696
      %v5698 = vpop.f32.mrf.mxu0
      %v5699 = vpop.f32.mrf.mxu0
      %v5700 = vadd.f32 %v5539, %v5699
      %v5701 = vpop.f32.mrf.mxu0
      %5702 = vdwg.mxu0
      %vm5703 = vcmask 7168
      %5704 = vst.msk [vmem:[%s334] sm:$0xff] %vm5703, %v5577
      %5705 = vst.msk [vmem:[%s334 + $0x8] sm:$0xff] %vm5703, %v5580
      %5706 = vst.msk [vmem:[%s334 + $0x10] sm:$0xff] %vm5703, %v5585
      %5707 = vst.msk [vmem:[%s334 + $0x18] sm:$0xff] %vm5703, %v5588
      %5708 = vst.msk [vmem:[%s334 + $0x20] sm:$0xff] %vm5703, %v5593
      %5709 = vst.msk [vmem:[%s334 + $0x28] sm:$0xff] %vm5703, %v5596
      %5710 = vst.msk [vmem:[%s334 + $0x30] sm:$0xff] %vm5703, %v5601
      %5711 = vst.msk [vmem:[%s334 + $0x38] sm:$0xff] %vm5703, %v5604
      %5712 = vst.msk [vmem:[%s334 + $0x40] sm:$0xff] %vm5703, %v5609
      %5713 = vst.msk [vmem:[%s334 + $0x48] sm:$0xff] %vm5703, %v5612
      %5714 = vst.msk [vmem:[%s334 + $0x50] sm:$0xff] %vm5703, %v5617
      %5715 = vst.msk [vmem:[%s334 + $0x58] sm:$0xff] %vm5703, %v5620
      %5716 = vst.msk [vmem:[%s334 + $0x60] sm:$0xff] %vm5703, %v5625
      %5717 = vst.msk [vmem:[%s334 + $0x68] sm:$0xff] %vm5703, %v5628
      %5718 = vst.msk [vmem:[%s334 + $0x70] sm:$0xff] %vm5703, %v5633
      %5719 = vst.msk [vmem:[%s334 + $0x78] sm:$0xff] %vm5703, %v5636
      %5720 = vst.msk [vmem:[%s334 + $0x80] sm:$0xff] %vm5703, %v5641
      %5721 = vst.msk [vmem:[%s334 + $0x88] sm:$0xff] %vm5703, %v5644
      %5722 = vst.msk [vmem:[%s334 + $0x90] sm:$0xff] %vm5703, %v5649
      %5723 = vst.msk [vmem:[%s334 + $0x98] sm:$0xff] %vm5703, %v5652
      %5724 = vst.msk [vmem:[%s334 + $0xa0] sm:$0xff] %vm5703, %v5657
      %5725 = vst.msk [vmem:[%s334 + $0xa8] sm:$0xff] %vm5703, %v5660
      %5726 = vst.msk [vmem:[%s334 + $0xb0] sm:$0xff] %vm5703, %v5665
      %5727 = vst.msk [vmem:[%s334 + $0xb8] sm:$0xff] %vm5703, %v5668
      %5728 = vst.msk [vmem:[%s334 + $0xc0] sm:$0xff] %vm5703, %v5673
      %5729 = vst.msk [vmem:[%s334 + $0xc8] sm:$0xff] %vm5703, %v5676
      %5730 = vst.msk [vmem:[%s334 + $0xd0] sm:$0xff] %vm5703, %v5681
      %5731 = vst.msk [vmem:[%s334 + $0xd8] sm:$0xff] %vm5703, %v5684
      %5732 = vst.msk [vmem:[%s334 + $0xe0] sm:$0xff] %vm5703, %v5689
      %5733 = vst.msk [vmem:[%s334 + $0xe8] sm:$0xff] %vm5703, %v5692
      %5734 = vst.msk [vmem:[%s334 + $0xf0] sm:$0xff] %vm5703, %v5697
      %5735 = vst.msk [vmem:[%s334 + $0xf8] sm:$0xff] %vm5703, %v5700
      %p5736 = scmp.lt.s32.totalorder %s22, 1
      %s5737 = scalar_select %p5736, %s22, 1
      %s5738 = smul.addr %s5737, 32
      %s5739 = smul.addr %s5738, 8
      %s5740 = scalar_lea.vmem %s9, %s5739
      // Predicated region
      $region57: #{model_forward.2} parent=55 // pred_check
        %p5741 = pneg %p234
      $region58: #{model_forward.2} parent=55 // pred_check_branch
        %5743 = sbr.rel (%p5741) target = $region60
      $region59: #{model_forward.2} parent=55 // pred_region
        _
      $region60: #{model_forward.2} parent=55 // pred_fallthru
        _
    $region56: #{model_forward.2} parent=5 // pred_fallthru
      _
    %p5744 = scmp.le.s32.totalorder 2, %s17
    // Predicated region
    $region61: #{model_forward.2} parent=5 // pred_check
      %p5745 = pneg %p5744
    $region62: #{model_forward.2} parent=5 // pred_check_branch
      %5747 = sbr.rel (%p5745) target = $region64
    $region63: #{model_forward.2} parent=5 // pred_region
      %s5748 = ssub.s32 %s17, 2
      // Predicated region
      $region65: #{model_forward.2} parent=63 // pred_check
        %p5749 = pneg %p240
      $region66: #{model_forward.2} parent=63 // pred_check_branch
        %5751 = sbr.rel (%p5749) target = $region68
      $region67: #{model_forward.2} parent=63 // pred_region
        %p5752 = scmp.lt.s32.totalorder %s23, 1
        %s5753 = scalar_select %p5752, %s23, 1
        %s5754 = smul.addr %s5753, 32
        %s5755 = smul.addr %s5754, 8
        %s5756 = scalar_lea.vmem %s9, %s5755
      $region68: #{model_forward.2} parent=63 // pred_fallthru
        _
    $region64: #{model_forward.2} parent=5 // pred_fallthru
      _
  $region6: #{model_forward.2} parent=0 // loop_footer
    %s21 = sadd.s32 1, %s17
  $region7: #{model_forward.2} parent=0 // loop_footer_branch
    %16 = sbr.rel target = $region3
  $region8: #{model_forward.2} parent=0 // loop_exit
    _

</llo_original>
